<compile_context>
chip_gen: v5e
topology: v5e:2x2
jax: 0.10.0
libtpu: 0.0.40
codegen_flags: <defaults>
</compile_context>

<pallas_src>
import functools

import numpy as np
import jax
import jax.numpy as jnp
from jax import lax
from jax.experimental import pallas as pl
from jax.experimental.pallas import tpu as pltpu

CONFIG = dict(
    image_size=16,
    conv_layers=2,
    num_of_filter=4,
    filter_multiplier=2,
    filter_size=[3, 3],
    actv_func="relu",            # kernel implements ReLU (config value)
    batch_normalization=True,
    dense_layer_size=32,
    dropout=0.5,
    num_classes=10,
)

_LANE = 128
_VMEM = pl.BlockSpec(memory_space=pltpu.MemorySpace.VMEM)


# ----------------------------- static shape plan -----------------------------

def _conv_plan(config):
    """Per-layer static dims mirroring FlexibleCNN._make_feature_extractor."""
    layers = []
    in_ch, hw = 3, config["image_size"]
    for i in range(config["conv_layers"]):
        oc = int(config["num_of_filter"] * config["filter_multiplier"] ** i)
        k = config["filter_size"][i]
        oh = hw - k + 1                     # VALID conv
        ph = oh // 2                        # MaxPool2d(2), floor
        layers.append(dict(H=hw, W=hw, C=in_ch, K=k, OC=oc,
                           OH=oh, OW=oh, PH=ph, PW=ph))
        in_ch, hw = oc, ph
    feat_dim = in_ch * hw * hw
    return layers, feat_dim


def _selection_matrices(layers, n_batch):
    """0/1 matrices doing 2x2-pool stride-2 selection + relayout in one matmul.

    For layer l they pick rows (n, 2*ph, 2*pw) out of the pooled-anchor tensor T_l
    (length N*H*W - W - 1) and place them either in the next layer's (n, h, w)
    activation-row order (with trailing zero rows for its im2col shift padding), or
    -- for the last layer -- in p-major order (p = ph*PW + pw outer, n inner) so the
    classifier can consume contiguous row blocks.
    """
    mats = []
    for l, L in enumerate(layers):
        H, W, PH, PW = L["H"], L["W"], L["PH"], L["PW"]
        t_len = n_batch * H * W - W - 1
        if l == len(layers) - 1:
            pp = PH * PW
            s = np.zeros((pp * n_batch, t_len), np.float32)
            for ph in range(PH):
                for pw in range(PW):
                    p = ph * PW + pw
                    for b in range(n_batch):
                        s[p * n_batch + b, b * H * W + 2 * ph * W + 2 * pw] = 1.0
        else:
            nxt = layers[l + 1]
            H2, W2, K2 = nxt["H"], nxt["W"], nxt["K"]
            pad2 = (K2 - 1) * (W2 + 1)      # zero rows for next layer's im2col shifts
            s = np.zeros((n_batch * H2 * W2 + pad2, t_len), np.float32)
            for b in range(n_batch):
                for h2 in range(H2):
                    for w2 in range(W2):
                        dst = b * H2 * W2 + h2 * W2 + w2
                        s[dst, b * H * W + 2 * h2 * W + 2 * w2] = 1.0
        mats.append(jnp.asarray(s))
    return mats


# ----------------------------- fused Pallas kernel ---------------------------

def _make_fused_kernel(layers, n_batch):
    n_layers = len(layers)
    pp = layers[-1]["PH"] * layers[-1]["PW"]
    oc_last = layers[-1]["OC"]

    def kernel(*refs):
        # inputs: x_rows, (wf, bias, sel) per conv layer, w1, b1, w2, b2
        # outputs: logits (padded to 128 lanes)
        # scratch: one im2col patch buffer per conv layer
        x_ref = refs[0]
        conv_refs = [refs[1 + 3 * l: 4 + 3 * l] for l in range(n_layers)]
        base = 1 + 3 * n_layers
        w1_ref, b1_ref, w2_ref, b2_ref, out_ref = refs[base:base + 5]
        p_refs = refs[base + 5: base + 5 + n_layers]

        # Activation as 2D rows: row (n*H*W + h*W + w), lanes = channels.
        a = x_ref[...]                       # zero-padded (N*H*W + pad, C)

        for l, L in enumerate(layers):
            wf_ref, bias_ref, sel_ref = conv_refs[l]
            W, C, K = L["W"], L["C"], L["K"]
            rows = n_batch * L["H"] * W
            p_ref = p_refs[l]

            # ---- im2col: K*K shifted contiguous block copies into the patch
            # scratch (j-outer so the unaligned sublane shift happens only K times;
            # the inner i*W offsets are sublane-aligned for W % 8 == 0).
            for j in range(K):
                aj = a[j: j + rows + (K - 1) * W, :]
                for i in range(K):
                    col = (i * K + j) * C
                    p_ref[:, col:col + C] = aj[i * W: i * W + rows, :]

            # ---- conv (BN scale folded into weights) + bias + ReLU: ONE MXU dot.
            r = jnp.dot(p_ref[...], wf_ref[...], preferred_element_type=jnp.float32)
            r = jnp.maximum(r + bias_ref[...], 0.0)

            # ---- 2x2 max pool at every anchor row via two shifted maxima.
            q = jnp.maximum(r[: rows - 1, :], r[1:rows, :])            # pair over w
            t = jnp.maximum(q[: rows - W - 1, :], q[W: rows - 1, :])   # pair over h

            # ---- stride-2 down-sample + relayout with one exact 0/1 selection
            # matmul (also zero-fills the next layer's im2col padding rows).
            a = jnp.dot(sel_ref[...], t, preferred_element_type=jnp.float32)

        # ---- classifier: Linear -> ReLU -> Dropout(eval: identity) -> Linear.
        # `a` is (PH*PW*N, OC) in p-major order: fc1 is the sum of per-position
        # blocks, so no flattened-feature scratch or lane concat is needed.
        h = None
        for p in range(pp):
            blk = jnp.dot(a[p * n_batch:(p + 1) * n_batch, :],
                          w1_ref[p * oc_last:(p + 1) * oc_last, :],
                          preferred_element_type=jnp.float32)
            h = blk if h is None else h + blk
        h = jnp.maximum(h + b1_ref[...], 0.0)
        # TODO(synk): nn.Dropout is identity in eval mode; a training-mode mask
        # would need pltpu.prng_seed / prng_random_bits.
        out_ref[...] = (jnp.dot(h, w2_ref[...], preferred_element_type=jnp.float32)
                        + b2_ref[...])

    return kernel


# ------------------------------ wrapper ---------------------------------------

def flexible_cnn_forward(kparams, x_nchw, config):
    layers, feat_dim = _conv_plan(config)
    n = x_nchw.shape[0]
    ncls = config["num_classes"]
    dense = config["dense_layer_size"]
    ncls_pad = kparams["w2"].shape[1]
    L0 = layers[0]

    # NCHW -> NHWC -> (N*H*W, C) rows, zero-padded for the in-kernel im2col shifts.
    x_rows = jnp.transpose(x_nchw, (0, 2, 3, 1)).astype(jnp.float32)
    x_rows = x_rows.reshape(n * L0["H"] * L0["W"], L0["C"])
    pad0 = (L0["K"] - 1) * (L0["W"] + 1)
    x_rows = jnp.pad(x_rows, ((0, pad0), (0, 0)))

    inputs = [x_rows]
    for lp in kparams["conv"]:
        inputs += [lp["w"], lp["bias"], lp["sel"]]
    inputs += [kparams["w1"], kparams["b1"], kparams["w2"], kparams["b2"]]

    scratch = [pltpu.VMEM((n * L["H"] * L["W"], L["K"] * L["K"] * L["C"]), jnp.float32)
               for L in layers]

    flops = 2 * n * (feat_dim * dense + dense * ncls_pad)
    for lp, L in zip(kparams["conv"], layers):
        rows = n * L["H"] * L["W"]
        flops += 2 * rows * L["K"] * L["K"] * L["C"] * L["OC"]
        flops += 2 * lp["sel"].shape[0] * lp["sel"].shape[1] * L["OC"]
    bytes_accessed = n * ncls_pad * 4 + sum(int(a.size) * a.dtype.itemsize for a in inputs)

    out = pl.pallas_call(
        _make_fused_kernel(layers, n),
        out_shape=jax.ShapeDtypeStruct((n, ncls_pad), jnp.float32),
        in_specs=[_VMEM] * len(inputs),
        out_specs=_VMEM,
        scratch_shapes=scratch,
        cost_estimate=pl.CostEstimate(flops=flops, transcendentals=0,
                                      bytes_accessed=bytes_accessed),
    )(*inputs)
    return out[:, :ncls]


# ------------------------------ parameters ------------------------------------

def init_params(key, config):
    """PyTorch-convention parameters (same semantics as nn.Module defaults, eval)."""
    params = {"conv": []}
    in_ch, hw, eps = 3, config["image_size"], 1e-5
    for i in range(config["conv_layers"]):
        out_ch = int(config["num_of_filter"] * config["filter_multiplier"] ** i)
        k = config["filter_size"][i]
        key, kw_key, kb_key = jax.random.split(key, 3)
        bound = 1.0 / float(in_ch * k * k) ** 0.5
        w = jax.random.uniform(kw_key, (k, k, in_ch, out_ch), jnp.float32, -bound, bound)
        b = jax.random.uniform(kb_key, (1, out_ch), jnp.float32, -bound, bound)
        if config.get("batch_normalization", False):
            # BatchNorm2d default init, eval: gamma=1, beta=0, r_mean=0, r_var=1
            gamma = jnp.ones((1, out_ch), jnp.float32)
            beta = jnp.zeros((1, out_ch), jnp.float32)
            rmean = jnp.zeros((1, out_ch), jnp.float32)
            rvar = jnp.ones((1, out_ch), jnp.float32)
            scale = gamma / jnp.sqrt(rvar + eps)
            shift = beta - rmean * scale
        else:
            scale = jnp.ones((1, out_ch), jnp.float32)
            shift = jnp.zeros((1, out_ch), jnp.float32)
        params["conv"].append(dict(w=w, b=b, scale=scale, shift=shift, k=k))
        in_ch = out_ch
        hw = (hw - k + 1) // 2
    feat_dim = in_ch * hw * hw
    dense, ncls = config["dense_layer_size"], config["num_classes"]
    key, k1, k2, k3, k4 = jax.random.split(key, 5)
    b1lim, b2lim = 1.0 / float(feat_dim) ** 0.5, 1.0 / float(dense) ** 0.5
    params["fc"] = dict(
        w1=jax.random.uniform(k1, (feat_dim, dense), jnp.float32, -b1lim, b1lim),
        b1=jax.random.uniform(k2, (1, dense), jnp.float32, -b1lim, b1lim),
        w2=jax.random.uniform(k3, (dense, ncls), jnp.float32, -b2lim, b2lim),
        b2=jax.random.uniform(k4, (1, ncls), jnp.float32, -b2lim, b2lim),
    )
    return params


def prepare_kernel_params(params, config, n_batch):
    """One-time folding / permutation into kernel-ready arrays (off the hot path)."""
    layers, _ = _conv_plan(config)
    sels = _selection_matrices(layers, n_batch)

    kconv = []
    for lp, L, sel in zip(params["conv"], layers, sels):
        K, C, OC = L["K"], L["C"], L["OC"]
        # (K, K, C, OC) -> (K*K*C, OC); row (i*K + j)*C + c matches im2col columns.
        wf = lp["w"].reshape(K * K * C, OC) * lp["scale"]        # fold BN scale
        bias = lp["b"] * lp["scale"] + lp["shift"]               # fold conv bias
        kconv.append(dict(w=wf, bias=bias, sel=sel))

    # fc1: permute rows from torch NCHW-flatten order to the kernel's p-major
    # (NHWC) order: feature column (ph*PW + pw)*OC + c  <-  c*PH*PW + ph*PW + pw.
    Ll = layers[-1]
    PH, PW, OC = Ll["PH"], Ll["PW"], Ll["OC"]
    perm = []
    for ph in range(PH):
        for pw in range(PW):
            for c in range(OC):
                perm.append(c * PH * PW + ph * PW + pw)
    w1p = params["fc"]["w1"][jnp.array(perm), :]

    dense, ncls = config["dense_layer_size"], config["num_classes"]
    ncls_pad = -(-ncls // _LANE) * _LANE                         # lane-dense HBM store
    w2p = jnp.zeros((dense, ncls_pad), jnp.float32).at[:, :ncls].set(params["fc"]["w2"])
    b2p = jnp.zeros((1, ncls_pad), jnp.float32).at[:, :ncls].set(params["fc"]["b2"])
    return dict(conv=kconv, w1=w1p, b1=params["fc"]["b1"], w2=w2p, b2=b2p)


# ------------------------------ pure-JAX reference -----------------------------

def reference_forward(params, x_nchw):
    """Matches PyTorch eval-mode FlexibleCNN forward semantics (f32 precision)."""
    hp = lax.Precision.HIGHEST
    x = x_nchw.astype(jnp.float32)
    for layer in params["conv"]:
        w = jnp.transpose(layer["w"], (3, 2, 0, 1))              # HWIO -> OIHW
        x = lax.conv_general_dilated(x, w, (1, 1), "VALID",
                                     dimension_numbers=("NCHW", "OIHW", "NCHW"),
                                     precision=hp)
        x = x + layer["b"].reshape(1, -1, 1, 1)
        x = x * layer["scale"].reshape(1, -1, 1, 1) + layer["shift"].reshape(1, -1, 1, 1)
        x = jnp.maximum(x, 0.0)
        x = lax.reduce_window(x, -jnp.inf, lax.max, (1, 1, 2, 2), (1, 1, 2, 2), "VALID")
    x = x.reshape(x.shape[0], -1)
    h = jnp.maximum(jnp.dot(x, params["fc"]["w1"], precision=hp) + params["fc"]["b1"], 0.0)
    return jnp.dot(h, params["fc"]["w2"], precision=hp) + params["fc"]["b2"]


# ------------------------------------ main -------------------------------------

if __name__ == "__main__":
    key = jax.random.PRNGKey(0)
    pkey, xkey = jax.random.split(key)
    batch = 2
    params = init_params(pkey, CONFIG)
    kparams = prepare_kernel_params(params, CONFIG, batch)
    x = jax.random.normal(xkey, (batch, 3, CONFIG["image_size"], CONFIG["image_size"]),
                          dtype=jnp.float32)

    fwd = jax.jit(functools.partial(flexible_cnn_forward, config=CONFIG))
    out = jax.block_until_ready(fwd(kparams, x))
    ref = jax.block_until_ready(reference_forward(params, x))

    assert out.shape == (batch, CONFIG["num_classes"]), out.shape
    err = float(jnp.max(jnp.abs(out - ref)))
    # Tolerance covers MXU-pass accumulation-order differences vs the XLA reference.
    assert jnp.allclose(out, ref, atol=1e-3, rtol=1e-3), f"max abs diff = {err}"
    print("KERNEL_OK")
</pallas_src>

<mosaic_0001>
module attributes {stable_mosaic.version = 11 : i64} {
  func.func @kernel(%arg0: memref<546x3xf32, #tpu.memory_space<vmem>>, %arg1: memref<27x4xf32, #tpu.memory_space<vmem>>, %arg2: memref<1x4xf32, #tpu.memory_space<vmem>>, %arg3: memref<114x495xf32, #tpu.memory_space<vmem>>, %arg4: memref<36x8xf32, #tpu.memory_space<vmem>>, %arg5: memref<1x8xf32, #tpu.memory_space<vmem>>, %arg6: memref<8x90xf32, #tpu.memory_space<vmem>>, %arg7: memref<32x32xf32, #tpu.memory_space<vmem>>, %arg8: memref<1x32xf32, #tpu.memory_space<vmem>>, %arg9: memref<32x128xf32, #tpu.memory_space<vmem>>, %arg10: memref<1x128xf32, #tpu.memory_space<vmem>>, %arg11: memref<2x128xf32, #tpu.memory_space<vmem>>, %arg12: memref<512x27xf32, #tpu.memory_space<vmem>>, %arg13: memref<98x36xf32, #tpu.memory_space<vmem>>) attributes {dimension_semantics = [], scalar_prefetch = 0 : i64, scratch_operands = 2 : i64, tpu.core_type = #tpu.core_type<tc>} {
    %c0 = arith.constant 0 : index
    %c0_0 = arith.constant 0 : index
    %0 = vector.load %arg0[%c0, %c0_0] : memref<546x3xf32, #tpu.memory_space<vmem>>, vector<546x3xf32>
    %1 = vector.extract_strided_slice %0 {offsets = [0, 0], sizes = [544, 3], strides = [1, 1]} : vector<546x3xf32> to vector<544x3xf32>
    %2 = vector.extract_strided_slice %1 {offsets = [0, 0], sizes = [512, 3], strides = [1, 1]} : vector<544x3xf32> to vector<512x3xf32>
    %c0_1 = arith.constant 0 : index
    %c0_2 = arith.constant 0 : index
    %3 = vector.load %arg12[%c0_1, %c0_2] : memref<512x27xf32, #tpu.memory_space<vmem>>, vector<512x3xf32>
    tpu.vector_store %arg12[%c0_1, %c0_2], %2 {strides = array<i32>} : memref<512x27xf32, #tpu.memory_space<vmem>>, vector<512x3xf32>,
    %4 = vector.extract_strided_slice %1 {offsets = [16, 0], sizes = [512, 3], strides = [1, 1]} : vector<544x3xf32> to vector<512x3xf32>
    %c0_3 = arith.constant 0 : index
    %c9 = arith.constant 9 : index
    %5 = vector.load %arg12[%c0_3, %c9] : memref<512x27xf32, #tpu.memory_space<vmem>>, vector<512x3xf32>
    tpu.vector_store %arg12[%c0_3, %c9], %4 {strides = array<i32>} : memref<512x27xf32, #tpu.memory_space<vmem>>, vector<512x3xf32>,
    %6 = vector.extract_strided_slice %1 {offsets = [32, 0], sizes = [512, 3], strides = [1, 1]} : vector<544x3xf32> to vector<512x3xf32>
    %c0_4 = arith.constant 0 : index
    %c18 = arith.constant 18 : index
    %7 = vector.load %arg12[%c0_4, %c18] : memref<512x27xf32, #tpu.memory_space<vmem>>, vector<512x3xf32>
    tpu.vector_store %arg12[%c0_4, %c18], %6 {strides = array<i32>} : memref<512x27xf32, #tpu.memory_space<vmem>>, vector<512x3xf32>,
    %8 = vector.extract_strided_slice %0 {offsets = [1, 0], sizes = [544, 3], strides = [1, 1]} : vector<546x3xf32> to vector<544x3xf32>
    %9 = vector.extract_strided_slice %8 {offsets = [0, 0], sizes = [512, 3], strides = [1, 1]} : vector<544x3xf32> to vector<512x3xf32>
    %c0_5 = arith.constant 0 : index
    %c3 = arith.constant 3 : index
    %10 = vector.load %arg12[%c0_5, %c3] : memref<512x27xf32, #tpu.memory_space<vmem>>, vector<512x3xf32>
    tpu.vector_store %arg12[%c0_5, %c3], %9 {strides = array<i32>} : memref<512x27xf32, #tpu.memory_space<vmem>>, vector<512x3xf32>,
    %11 = vector.extract_strided_slice %8 {offsets = [16, 0], sizes = [512, 3], strides = [1, 1]} : vector<544x3xf32> to vector<512x3xf32>
    %c0_6 = arith.constant 0 : index
    %c12 = arith.constant 12 : index
    %12 = vector.load %arg12[%c0_6, %c12] : memref<512x27xf32, #tpu.memory_space<vmem>>, vector<512x3xf32>
    tpu.vector_store %arg12[%c0_6, %c12], %11 {strides = array<i32>} : memref<512x27xf32, #tpu.memory_space<vmem>>, vector<512x3xf32>,
    %13 = vector.extract_strided_slice %8 {offsets = [32, 0], sizes = [512, 3], strides = [1, 1]} : vector<544x3xf32> to vector<512x3xf32>
    %c0_7 = arith.constant 0 : index
    %c21 = arith.constant 21 : index
    %14 = vector.load %arg12[%c0_7, %c21] : memref<512x27xf32, #tpu.memory_space<vmem>>, vector<512x3xf32>
    tpu.vector_store %arg12[%c0_7, %c21], %13 {strides = array<i32>} : memref<512x27xf32, #tpu.memory_space<vmem>>, vector<512x3xf32>,
    %15 = vector.extract_strided_slice %0 {offsets = [2, 0], sizes = [544, 3], strides = [1, 1]} : vector<546x3xf32> to vector<544x3xf32>
    %16 = vector.extract_strided_slice %15 {offsets = [0, 0], sizes = [512, 3], strides = [1, 1]} : vector<544x3xf32> to vector<512x3xf32>
    %c0_8 = arith.constant 0 : index
    %c6 = arith.constant 6 : index
    %17 = vector.load %arg12[%c0_8, %c6] : memref<512x27xf32, #tpu.memory_space<vmem>>, vector<512x3xf32>
    tpu.vector_store %arg12[%c0_8, %c6], %16 {strides = array<i32>} : memref<512x27xf32, #tpu.memory_space<vmem>>, vector<512x3xf32>,
    %18 = vector.extract_strided_slice %15 {offsets = [16, 0], sizes = [512, 3], strides = [1, 1]} : vector<544x3xf32> to vector<512x3xf32>
    %c0_9 = arith.constant 0 : index
    %c15 = arith.constant 15 : index
    %19 = vector.load %arg12[%c0_9, %c15] : memref<512x27xf32, #tpu.memory_space<vmem>>, vector<512x3xf32>
    tpu.vector_store %arg12[%c0_9, %c15], %18 {strides = array<i32>} : memref<512x27xf32, #tpu.memory_space<vmem>>, vector<512x3xf32>,
    %20 = vector.extract_strided_slice %15 {offsets = [32, 0], sizes = [512, 3], strides = [1, 1]} : vector<544x3xf32> to vector<512x3xf32>
    %c0_10 = arith.constant 0 : index
    %c24 = arith.constant 24 : index
    %21 = vector.load %arg12[%c0_10, %c24] : memref<512x27xf32, #tpu.memory_space<vmem>>, vector<512x3xf32>
    tpu.vector_store %arg12[%c0_10, %c24], %20 {strides = array<i32>} : memref<512x27xf32, #tpu.memory_space<vmem>>, vector<512x3xf32>,
    %c0_11 = arith.constant 0 : index
    %c0_12 = arith.constant 0 : index
    %22 = vector.load %arg12[%c0_11, %c0_12] : memref<512x27xf32, #tpu.memory_space<vmem>>, vector<512x27xf32>
    %c0_13 = arith.constant 0 : index
    %c0_14 = arith.constant 0 : index
    %23 = vector.load %arg1[%c0_13, %c0_14] : memref<27x4xf32, #tpu.memory_space<vmem>>, vector<27x4xf32>
    %cst = arith.constant dense<0.000000e+00> : vector<512x4xf32>
    %24 = tpu.matmul %22, %23, %cst {dimension_numbers = #tpu.dot_dimension_numbers<[1], [0], [0], [1], [0, 0, 1, 1], [], []>} : vector<512x27xf32>, vector<27x4xf32>, vector<512x4xf32> -> vector<512x4xf32>
    %c0_15 = arith.constant 0 : index
    %c0_16 = arith.constant 0 : index
    %25 = vector.load %arg2[%c0_15, %c0_16] : memref<1x4xf32, #tpu.memory_space<vmem>>, vector<1x4xf32>
    %26 = vector.broadcast %25 : vector<1x4xf32> to vector<512x4xf32>
    %27 = arith.addf %24, %26 : vector<512x4xf32>
    %cst_17 = arith.constant 0.000000e+00 : f32
    %28 = vector.broadcast %cst_17 : f32 to vector<512x4xf32>
    %29 = arith.maximumf %27, %28 : vector<512x4xf32>
    %30 = vector.extract_strided_slice %29 {offsets = [0, 0], sizes = [511, 4], strides = [1, 1]} : vector<512x4xf32> to vector<511x4xf32>
    %31 = vector.extract_strided_slice %29 {offsets = [1, 0], sizes = [511, 4], strides = [1, 1]} : vector<512x4xf32> to vector<511x4xf32>
    %32 = arith.maximumf %30, %31 : vector<511x4xf32>
    %33 = vector.extract_strided_slice %32 {offsets = [0, 0], sizes = [495, 4], strides = [1, 1]} : vector<511x4xf32> to vector<495x4xf32>
    %34 = vector.extract_strided_slice %32 {offsets = [16, 0], sizes = [495, 4], strides = [1, 1]} : vector<511x4xf32> to vector<495x4xf32>
    %35 = arith.maximumf %33, %34 : vector<495x4xf32>
    %c0_18 = arith.constant 0 : index
    %c0_19 = arith.constant 0 : index
    %36 = vector.load %arg3[%c0_18, %c0_19] : memref<114x495xf32, #tpu.memory_space<vmem>>, vector<114x495xf32>
    %cst_20 = arith.constant dense<0.000000e+00> : vector<114x4xf32>
    %37 = tpu.matmul %36, %35, %cst_20 {dimension_numbers = #tpu.dot_dimension_numbers<[1], [0], [0], [1], [0, 0, 1, 1], [], []>} : vector<114x495xf32>, vector<495x4xf32>, vector<114x4xf32> -> vector<114x4xf32>
    %38 = vector.extract_strided_slice %37 {offsets = [0, 0], sizes = [112, 4], strides = [1, 1]} : vector<114x4xf32> to vector<112x4xf32>
    %39 = vector.extract_strided_slice %38 {offsets = [0, 0], sizes = [98, 4], strides = [1, 1]} : vector<112x4xf32> to vector<98x4xf32>
    %c0_21 = arith.constant 0 : index
    %c0_22 = arith.constant 0 : index
    %40 = vector.load %arg13[%c0_21, %c0_22] : memref<98x36xf32, #tpu.memory_space<vmem>>, vector<98x4xf32>
    tpu.vector_store %arg13[%c0_21, %c0_22], %39 {strides = array<i32>} : memref<98x36xf32, #tpu.memory_space<vmem>>, vector<98x4xf32>,
    %41 = vector.extract_strided_slice %38 {offsets = [7, 0], sizes = [98, 4], strides = [1, 1]} : vector<112x4xf32> to vector<98x4xf32>
    %c0_23 = arith.constant 0 : index
    %c12_24 = arith.constant 12 : index
    %42 = vector.load %arg13[%c0_23, %c12_24] : memref<98x36xf32, #tpu.memory_space<vmem>>, vector<98x4xf32>
    tpu.vector_store %arg13[%c0_23, %c12_24], %41 {strides = array<i32>} : memref<98x36xf32, #tpu.memory_space<vmem>>, vector<98x4xf32>,
    %43 = vector.extract_strided_slice %38 {offsets = [14, 0], sizes = [98, 4], strides = [1, 1]} : vector<112x4xf32> to vector<98x4xf32>
    %c0_25 = arith.constant 0 : index
    %c24_26 = arith.constant 24 : index
    %44 = vector.load %arg13[%c0_25, %c24_26] : memref<98x36xf32, #tpu.memory_space<vmem>>, vector<98x4xf32>
    tpu.vector_store %arg13[%c0_25, %c24_26], %43 {strides = array<i32>} : memref<98x36xf32, #tpu.memory_space<vmem>>, vector<98x4xf32>,
    %45 = vector.extract_strided_slice %37 {offsets = [1, 0], sizes = [112, 4], strides = [1, 1]} : vector<114x4xf32> to vector<112x4xf32>
    %46 = vector.extract_strided_slice %45 {offsets = [0, 0], sizes = [98, 4], strides = [1, 1]} : vector<112x4xf32> to vector<98x4xf32>
    %c0_27 = arith.constant 0 : index
    %c4 = arith.constant 4 : index
    %47 = vector.load %arg13[%c0_27, %c4] : memref<98x36xf32, #tpu.memory_space<vmem>>, vector<98x4xf32>
    tpu.vector_store %arg13[%c0_27, %c4], %46 {strides = array<i32>} : memref<98x36xf32, #tpu.memory_space<vmem>>, vector<98x4xf32>,
    %48 = vector.extract_strided_slice %45 {offsets = [7, 0], sizes = [98, 4], strides = [1, 1]} : vector<112x4xf32> to vector<98x4xf32>
    %c0_28 = arith.constant 0 : index
    %c16 = arith.constant 16 : index
    %49 = vector.load %arg13[%c0_28, %c16] : memref<98x36xf32, #tpu.memory_space<vmem>>, vector<98x4xf32>
    tpu.vector_store %arg13[%c0_28, %c16], %48 {strides = array<i32>} : memref<98x36xf32, #tpu.memory_space<vmem>>, vector<98x4xf32>,
    %50 = vector.extract_strided_slice %45 {offsets = [14, 0], sizes = [98, 4], strides = [1, 1]} : vector<112x4xf32> to vector<98x4xf32>
    %c0_29 = arith.constant 0 : index
    %c28 = arith.constant 28 : index
    %51 = vector.load %arg13[%c0_29, %c28] : memref<98x36xf32, #tpu.memory_space<vmem>>, vector<98x4xf32>
    tpu.vector_store %arg13[%c0_29, %c28], %50 {strides = array<i32>} : memref<98x36xf32, #tpu.memory_space<vmem>>, vector<98x4xf32>,
    %52 = vector.extract_strided_slice %37 {offsets = [2, 0], sizes = [112, 4], strides = [1, 1]} : vector<114x4xf32> to vector<112x4xf32>
    %53 = vector.extract_strided_slice %52 {offsets = [0, 0], sizes = [98, 4], strides = [1, 1]} : vector<112x4xf32> to vector<98x4xf32>
    %c0_30 = arith.constant 0 : index
    %c8 = arith.constant 8 : index
    %54 = vector.load %arg13[%c0_30, %c8] : memref<98x36xf32, #tpu.memory_space<vmem>>, vector<98x4xf32>
    tpu.vector_store %arg13[%c0_30, %c8], %53 {strides = array<i32>} : memref<98x36xf32, #tpu.memory_space<vmem>>, vector<98x4xf32>,
    %55 = vector.extract_strided_slice %52 {offsets = [7, 0], sizes = [98, 4], strides = [1, 1]} : vector<112x4xf32> to vector<98x4xf32>
    %c0_31 = arith.constant 0 : index
    %c20 = arith.constant 20 : index
    %56 = vector.load %arg13[%c0_31, %c20] : memref<98x36xf32, #tpu.memory_space<vmem>>, vector<98x4xf32>
    tpu.vector_store %arg13[%c0_31, %c20], %55 {strides = array<i32>} : memref<98x36xf32, #tpu.memory_space<vmem>>, vector<98x4xf32>,
    %57 = vector.extract_strided_slice %52 {offsets = [14, 0], sizes = [98, 4], strides = [1, 1]} : vector<112x4xf32> to vector<98x4xf32>
    %c0_32 = arith.constant 0 : index
    %c32 = arith.constant 32 : index
    %58 = vector.load %arg13[%c0_32, %c32] : memref<98x36xf32, #tpu.memory_space<vmem>>, vector<98x4xf32>
    tpu.vector_store %arg13[%c0_32, %c32], %57 {strides = array<i32>} : memref<98x36xf32, #tpu.memory_space<vmem>>, vector<98x4xf32>,
    %c0_33 = arith.constant 0 : index
    %c0_34 = arith.constant 0 : index
    %59 = vector.load %arg13[%c0_33, %c0_34] : memref<98x36xf32, #tpu.memory_space<vmem>>, vector<98x36xf32>
    %c0_35 = arith.constant 0 : index
    %c0_36 = arith.constant 0 : index
    %60 = vector.load %arg4[%c0_35, %c0_36] : memref<36x8xf32, #tpu.memory_space<vmem>>, vector<36x8xf32>
    %cst_37 = arith.constant dense<0.000000e+00> : vector<98x8xf32>
    %61 = tpu.matmul %59, %60, %cst_37 {dimension_numbers = #tpu.dot_dimension_numbers<[1], [0], [0], [1], [0, 0, 1, 1], [], []>} : vector<98x36xf32>, vector<36x8xf32>, vector<98x8xf32> -> vector<98x8xf32>
    %c0_38 = arith.constant 0 : index
    %c0_39 = arith.constant 0 : index
    %62 = vector.load %arg5[%c0_38, %c0_39] : memref<1x8xf32, #tpu.memory_space<vmem>>, vector<1x8xf32>
    %63 = vector.broadcast %62 : vector<1x8xf32> to vector<98x8xf32>
    %64 = arith.addf %61, %63 : vector<98x8xf32>
    %cst_40 = arith.constant 0.000000e+00 : f32
    %65 = vector.broadcast %cst_40 : f32 to vector<98x8xf32>
    %66 = arith.maximumf %64, %65 : vector<98x8xf32>
    %67 = vector.extract_strided_slice %66 {offsets = [0, 0], sizes = [97, 8], strides = [1, 1]} : vector<98x8xf32> to vector<97x8xf32>
    %68 = vector.extract_strided_slice %66 {offsets = [1, 0], sizes = [97, 8], strides = [1, 1]} : vector<98x8xf32> to vector<97x8xf32>
    %69 = arith.maximumf %67, %68 : vector<97x8xf32>
    %70 = vector.extract_strided_slice %69 {offsets = [0, 0], sizes = [90, 8], strides = [1, 1]} : vector<97x8xf32> to vector<90x8xf32>
    %71 = vector.extract_strided_slice %69 {offsets = [7, 0], sizes = [90, 8], strides = [1, 1]} : vector<97x8xf32> to vector<90x8xf32>
    %72 = arith.maximumf %70, %71 : vector<90x8xf32>
    %c0_41 = arith.constant 0 : index
    %c0_42 = arith.constant 0 : index
    %73 = vector.load %arg6[%c0_41, %c0_42] : memref<8x90xf32, #tpu.memory_space<vmem>>, vector<8x90xf32>
    %cst_43 = arith.constant dense<0.000000e+00> : vector<8x8xf32>
    %74 = tpu.matmul %73, %72, %cst_43 {dimension_numbers = #tpu.dot_dimension_numbers<[1], [0], [0], [1], [0, 0, 1, 1], [], []>} : vector<8x90xf32>, vector<90x8xf32>, vector<8x8xf32> -> vector<8x8xf32>
    %75 = vector.extract_strided_slice %74 {offsets = [0, 0], sizes = [2, 8], strides = [1, 1]} : vector<8x8xf32> to vector<2x8xf32>
    %c0_44 = arith.constant 0 : index
    %c0_45 = arith.constant 0 : index
    %76 = vector.load %arg7[%c0_44, %c0_45] : memref<32x32xf32, #tpu.memory_space<vmem>>, vector<8x32xf32>
    %cst_46 = arith.constant dense<0.000000e+00> : vector<2x32xf32>
    %77 = tpu.matmul %75, %76, %cst_46 {dimension_numbers = #tpu.dot_dimension_numbers<[1], [0], [0], [1], [0, 0, 1, 1], [], []>} : vector<2x8xf32>, vector<8x32xf32>, vector<2x32xf32> -> vector<2x32xf32>
    %78 = vector.extract_strided_slice %74 {offsets = [2, 0], sizes = [2, 8], strides = [1, 1]} : vector<8x8xf32> to vector<2x8xf32>
    %c8_47 = arith.constant 8 : index
    %c0_48 = arith.constant 0 : index
    %79 = vector.load %arg7[%c8_47, %c0_48] : memref<32x32xf32, #tpu.memory_space<vmem>>, vector<8x32xf32>
    %cst_49 = arith.constant dense<0.000000e+00> : vector<2x32xf32>
    %80 = tpu.matmul %78, %79, %cst_49 {dimension_numbers = #tpu.dot_dimension_numbers<[1], [0], [0], [1], [0, 0, 1, 1], [], []>} : vector<2x8xf32>, vector<8x32xf32>, vector<2x32xf32> -> vector<2x32xf32>
    %81 = arith.addf %77, %80 : vector<2x32xf32>
    %82 = vector.extract_strided_slice %74 {offsets = [4, 0], sizes = [2, 8], strides = [1, 1]} : vector<8x8xf32> to vector<2x8xf32>
    %c16_50 = arith.constant 16 : index
    %c0_51 = arith.constant 0 : index
    %83 = vector.load %arg7[%c16_50, %c0_51] : memref<32x32xf32, #tpu.memory_space<vmem>>, vector<8x32xf32>
    %cst_52 = arith.constant dense<0.000000e+00> : vector<2x32xf32>
    %84 = tpu.matmul %82, %83, %cst_52 {dimension_numbers = #tpu.dot_dimension_numbers<[1], [0], [0], [1], [0, 0, 1, 1], [], []>} : vector<2x8xf32>, vector<8x32xf32>, vector<2x32xf32> -> vector<2x32xf32>
    %85 = arith.addf %81, %84 : vector<2x32xf32>
    %86 = vector.extract_strided_slice %74 {offsets = [6, 0], sizes = [2, 8], strides = [1, 1]} : vector<8x8xf32> to vector<2x8xf32>
    %c24_53 = arith.constant 24 : index
    %c0_54 = arith.constant 0 : index
    %87 = vector.load %arg7[%c24_53, %c0_54] : memref<32x32xf32, #tpu.memory_space<vmem>>, vector<8x32xf32>
    %cst_55 = arith.constant dense<0.000000e+00> : vector<2x32xf32>
    %88 = tpu.matmul %86, %87, %cst_55 {dimension_numbers = #tpu.dot_dimension_numbers<[1], [0], [0], [1], [0, 0, 1, 1], [], []>} : vector<2x8xf32>, vector<8x32xf32>, vector<2x32xf32> -> vector<2x32xf32>
    %89 = arith.addf %85, %88 : vector<2x32xf32>
    %c0_56 = arith.constant 0 : index
    %c0_57 = arith.constant 0 : index
    %90 = vector.load %arg8[%c0_56, %c0_57] : memref<1x32xf32, #tpu.memory_space<vmem>>, vector<1x32xf32>
    %91 = vector.broadcast %90 : vector<1x32xf32> to vector<2x32xf32>
    %92 = arith.addf %89, %91 : vector<2x32xf32>
    %cst_58 = arith.constant 0.000000e+00 : f32
    %93 = vector.broadcast %cst_58 : f32 to vector<2x32xf32>
    %94 = arith.maximumf %92, %93 : vector<2x32xf32>
    %c0_59 = arith.constant 0 : index
    %c0_60 = arith.constant 0 : index
    %95 = vector.load %arg9[%c0_59, %c0_60] : memref<32x128xf32, #tpu.memory_space<vmem>>, vector<32x128xf32>
    %cst_61 = arith.constant dense<0.000000e+00> : vector<2x128xf32>
    %96 = tpu.matmul %94, %95, %cst_61 {dimension_numbers = #tpu.dot_dimension_numbers<[1], [0], [0], [1], [0, 0, 1, 1], [], []>} : vector<2x32xf32>, vector<32x128xf32>, vector<2x128xf32> -> vector<2x128xf32>
    %c0_62 = arith.constant 0 : index
    %c0_63 = arith.constant 0 : index
    %97 = vector.load %arg10[%c0_62, %c0_63] : memref<1x128xf32, #tpu.memory_space<vmem>>, vector<1x128xf32>
    %98 = vector.broadcast %97 : vector<1x128xf32> to vector<2x128xf32>
    %99 = arith.addf %96, %98 : vector<2x128xf32>
    %c0_64 = arith.constant 0 : index
    %c0_65 = arith.constant 0 : index
    %100 = vector.load %arg11[%c0_64, %c0_65] : memref<2x128xf32, #tpu.memory_space<vmem>>, vector<2x128xf32>
    tpu.vector_store %arg11[%c0_64, %c0_65], %99 {strides = array<i32>} : memref<2x128xf32, #tpu.memory_space<vmem>>, vector<2x128xf32>,
    return
  }
}

</mosaic_0001>

<llo_original>
// kernel: flexible_cnn_forward.1
$region0: #{flexible_cnn_forward.1}
  #allocation0 [shape = 'u32[]', space=smem, size = 0x4, offset = 0x4, fixed_abs, tag = 'smem constant byte address 0x4 - core index']
  #allocation1 [shape = 'u32[72,128]{1,0:T(1,128)}', space=vmem, size = 0x9000, scoped, tag = 'internal scratch']
  #allocation2 [shape = 'f32[512,27]{1,0:T(8,128)}', space=vmem, size = 0x40000, scoped, tag = 'scratch operand']
  #allocation3 [shape = 'f32[98,36]{1,0:T(8,128)}', space=vmem, size = 0xd000, scoped, tag = 'scratch operand']
  %s0 = inlined_call_operand.vmem [shape: f32[546,3], index: 0, kind: input, shape index: {}]
  %s1 = inlined_call_operand.vmem [shape: f32[27,4], index: 1, kind: input, shape index: {}]
  %s2 = inlined_call_operand.vmem [shape: f32[1,4], index: 2, kind: input, shape index: {}]
  %s3 = inlined_call_operand.vmem [shape: f32[114,495], index: 3, kind: input, shape index: {}]
  %s4 = inlined_call_operand.vmem [shape: f32[36,8], index: 4, kind: input, shape index: {}]
  %s5 = inlined_call_operand.vmem [shape: f32[1,8], index: 5, kind: input, shape index: {}]
  %s6 = inlined_call_operand.vmem [shape: f32[8,90], index: 6, kind: input, shape index: {}]
  %s7 = inlined_call_operand.vmem [shape: f32[32,32], index: 7, kind: input, shape index: {}]
  %s8 = inlined_call_operand.vmem [shape: f32[1,32], index: 8, kind: input, shape index: {}]
  %s9 = inlined_call_operand.vmem [shape: f32[32,128], index: 9, kind: input, shape index: {}]
  %s10 = inlined_call_operand.vmem [shape: f32[1,128], index: 10, kind: input, shape index: {}]
  %s11 = inlined_call_operand.hbm [shape: f32[2,128], index: 11, kind: output, shape index: {}]
  %s12 = sld [smem:[#allocation0]]
  $region54: #{flexible_cnn_forward.1} parent=0
    _
  %s14 = ssub.s32 1, %s12
  %s15 = scalar_select 0, %s14, %s12
  $region1: #{flexible_cnn_forward.1} parent=0
    #allocation4 [shape = 'u8[1024]{0}', space=vmem, size = 0x400, scoped, tag = 'output window, operand 0, single buffered']
    #allocation5 [shape = 's32[1]{0}', space=sflag, size = 0x4, scoped, tag = 'scoped memory for flexible_cnn_forward.1']
    %16 = vsyncpa [#allocation5], 0
    // Predicated region
    $region2: #{flexible_cnn_forward.1} parent=1 // pred_check
      _
    $region3: #{flexible_cnn_forward.1} parent=1 // pred_check_branch
      %18 = sbr.rel (0) target = $region5
    $region4: #{flexible_cnn_forward.1} parent=1 // pred_region
      _
    $region5: #{flexible_cnn_forward.1} parent=1 // pred_fallthru
      _
    // Predicated region
    $region6: #{flexible_cnn_forward.1} parent=1 // pred_check
      _
    $region7: #{flexible_cnn_forward.1} parent=1 // pred_check_branch
      %20 = sbr.rel (0) target = $region9
    $region8: #{flexible_cnn_forward.1} parent=1 // pred_region
      _
    $region9: #{flexible_cnn_forward.1} parent=1 // pred_fallthru
      _
    // Predicated region
    $region10: #{flexible_cnn_forward.1} parent=1 // pred_check
      _
    $region11: #{flexible_cnn_forward.1} parent=1 // pred_check_branch
      %22 = sbr.rel (0) target = $region13
    $region12: #{flexible_cnn_forward.1} parent=1 // pred_region
      _
    $region13: #{flexible_cnn_forward.1} parent=1 // pred_fallthru
      _
    // Predicated region
    $region14: #{flexible_cnn_forward.1} parent=1 // pred_check
      _
    $region15: #{flexible_cnn_forward.1} parent=1 // pred_check_branch
      %24 = sbr.rel (0) target = $region17
    $region16: #{flexible_cnn_forward.1} parent=1 // pred_region
      _
    $region17: #{flexible_cnn_forward.1} parent=1 // pred_fallthru
      _
    // Predicated region
    $region18: #{flexible_cnn_forward.1} parent=1 // pred_check
      _
    $region19: #{flexible_cnn_forward.1} parent=1 // pred_check_branch
      %26 = sbr.rel (0) target = $region21
    $region20: #{flexible_cnn_forward.1} parent=1 // pred_region
      _
    $region21: #{flexible_cnn_forward.1} parent=1 // pred_fallthru
      _
    // Predicated region
    $region22: #{flexible_cnn_forward.1} parent=1 // pred_check
      _
    $region23: #{flexible_cnn_forward.1} parent=1 // pred_check_branch
      %28 = sbr.rel (0) target = $region25
    $region24: #{flexible_cnn_forward.1} parent=1 // pred_region
      _
    $region25: #{flexible_cnn_forward.1} parent=1 // pred_fallthru
      _
    // Predicated region
    $region26: #{flexible_cnn_forward.1} parent=1 // pred_check
      _
    $region27: #{flexible_cnn_forward.1} parent=1 // pred_check_branch
      %30 = sbr.rel (0) target = $region29
    $region28: #{flexible_cnn_forward.1} parent=1 // pred_region
      _
    $region29: #{flexible_cnn_forward.1} parent=1 // pred_fallthru
      _
    // Predicated region
    $region30: #{flexible_cnn_forward.1} parent=1 // pred_check
      _
    $region31: #{flexible_cnn_forward.1} parent=1 // pred_check_branch
      %32 = sbr.rel (0) target = $region33
    $region32: #{flexible_cnn_forward.1} parent=1 // pred_region
      _
    $region33: #{flexible_cnn_forward.1} parent=1 // pred_fallthru
      _
    // Predicated region
    $region34: #{flexible_cnn_forward.1} parent=1 // pred_check
      _
    $region35: #{flexible_cnn_forward.1} parent=1 // pred_check_branch
      %34 = sbr.rel (0) target = $region37
    $region36: #{flexible_cnn_forward.1} parent=1 // pred_region
      _
    $region37: #{flexible_cnn_forward.1} parent=1 // pred_fallthru
      _
    // Predicated region
    $region38: #{flexible_cnn_forward.1} parent=1 // pred_check
      _
    $region39: #{flexible_cnn_forward.1} parent=1 // pred_check_branch
      %36 = sbr.rel (0) target = $region41
    $region40: #{flexible_cnn_forward.1} parent=1 // pred_region
      _
    $region41: #{flexible_cnn_forward.1} parent=1 // pred_fallthru
      _
    // Predicated region
    $region42: #{flexible_cnn_forward.1} parent=1 // pred_check
      _
    $region43: #{flexible_cnn_forward.1} parent=1 // pred_check_branch
      %38 = sbr.rel (0) target = $region45
    $region44: #{flexible_cnn_forward.1} parent=1 // pred_region
      _
    $region45: #{flexible_cnn_forward.1} parent=1 // pred_fallthru
      _
    %v39 = vld [vmem:[%s0] sm:$0xff]
    %v40 = vld [vmem:[%s0 + $0x8] sm:$0xff]
    %v41 = vld [vmem:[%s0 + $0x10] sm:$0xff]
    %v42 = vld [vmem:[%s0 + $0x18] sm:$0xff]
    %v43 = vld [vmem:[%s0 + $0x20] sm:$0xff]
    %v44 = vld [vmem:[%s0 + $0x28] sm:$0xff]
    %v45 = vld [vmem:[%s0 + $0x30] sm:$0xff]
    %v46 = vld [vmem:[%s0 + $0x38] sm:$0xff]
    %v47 = vld [vmem:[%s0 + $0x40] sm:$0xff]
    %v48 = vld [vmem:[%s0 + $0x48] sm:$0xff]
    %v49 = vld [vmem:[%s0 + $0x50] sm:$0xff]
    %v50 = vld [vmem:[%s0 + $0x58] sm:$0xff]
    %v51 = vld [vmem:[%s0 + $0x60] sm:$0xff]
    %v52 = vld [vmem:[%s0 + $0x68] sm:$0xff]
    %v53 = vld [vmem:[%s0 + $0x70] sm:$0xff]
    %v54 = vld [vmem:[%s0 + $0x78] sm:$0xff]
    %v55 = vld [vmem:[%s0 + $0x80] sm:$0xff]
    %v56 = vld [vmem:[%s0 + $0x88] sm:$0xff]
    %v57 = vld [vmem:[%s0 + $0x90] sm:$0xff]
    %v58 = vld [vmem:[%s0 + $0x98] sm:$0xff]
    %v59 = vld [vmem:[%s0 + $0xa0] sm:$0xff]
    %v60 = vld [vmem:[%s0 + $0xa8] sm:$0xff]
    %v61 = vld [vmem:[%s0 + $0xb0] sm:$0xff]
    %v62 = vld [vmem:[%s0 + $0xb8] sm:$0xff]
    %v63 = vld [vmem:[%s0 + $0xc0] sm:$0xff]
    %v64 = vld [vmem:[%s0 + $0xc8] sm:$0xff]
    %v65 = vld [vmem:[%s0 + $0xd0] sm:$0xff]
    %v66 = vld [vmem:[%s0 + $0xd8] sm:$0xff]
    %v67 = vld [vmem:[%s0 + $0xe0] sm:$0xff]
    %v68 = vld [vmem:[%s0 + $0xe8] sm:$0xff]
    %v69 = vld [vmem:[%s0 + $0xf0] sm:$0xff]
    %v70 = vld [vmem:[%s0 + $0xf8] sm:$0xff]
    %v71 = vld [vmem:[%s0 + $0x100] sm:$0xff]
    %v72 = vld [vmem:[%s0 + $0x108] sm:$0xff]
    %v73 = vld [vmem:[%s0 + $0x110] sm:$0xff]
    %v74 = vld [vmem:[%s0 + $0x118] sm:$0xff]
    %v75 = vld [vmem:[%s0 + $0x120] sm:$0xff]
    %v76 = vld [vmem:[%s0 + $0x128] sm:$0xff]
    %v77 = vld [vmem:[%s0 + $0x130] sm:$0xff]
    %v78 = vld [vmem:[%s0 + $0x138] sm:$0xff]
    %v79 = vld [vmem:[%s0 + $0x140] sm:$0xff]
    %v80 = vld [vmem:[%s0 + $0x148] sm:$0xff]
    %v81 = vld [vmem:[%s0 + $0x150] sm:$0xff]
    %v82 = vld [vmem:[%s0 + $0x158] sm:$0xff]
    %v83 = vld [vmem:[%s0 + $0x160] sm:$0xff]
    %v84 = vld [vmem:[%s0 + $0x168] sm:$0xff]
    %v85 = vld [vmem:[%s0 + $0x170] sm:$0xff]
    %v86 = vld [vmem:[%s0 + $0x178] sm:$0xff]
    %v87 = vld [vmem:[%s0 + $0x180] sm:$0xff]
    %v88 = vld [vmem:[%s0 + $0x188] sm:$0xff]
    %v89 = vld [vmem:[%s0 + $0x190] sm:$0xff]
    %v90 = vld [vmem:[%s0 + $0x198] sm:$0xff]
    %v91 = vld [vmem:[%s0 + $0x1a0] sm:$0xff]
    %v92 = vld [vmem:[%s0 + $0x1a8] sm:$0xff]
    %v93 = vld [vmem:[%s0 + $0x1b0] sm:$0xff]
    %v94 = vld [vmem:[%s0 + $0x1b8] sm:$0xff]
    %v95 = vld [vmem:[%s0 + $0x1c0] sm:$0xff]
    %v96 = vld [vmem:[%s0 + $0x1c8] sm:$0xff]
    %v97 = vld [vmem:[%s0 + $0x1d0] sm:$0xff]
    %v98 = vld [vmem:[%s0 + $0x1d8] sm:$0xff]
    %v99 = vld [vmem:[%s0 + $0x1e0] sm:$0xff]
    %v100 = vld [vmem:[%s0 + $0x1e8] sm:$0xff]
    %v101 = vld [vmem:[%s0 + $0x1f0] sm:$0xff]
    %v102 = vld [vmem:[%s0 + $0x1f8] sm:$0xff]
    %v103 = vld [vmem:[%s0 + $0x200] sm:$0xff]
    %v104 = vld [vmem:[%s0 + $0x208] sm:$0xff]
    %v105 = vld [vmem:[%s0 + $0x210] sm:$0xff]
    %v106 = vld [vmem:[%s0 + $0x218] sm:$0xff]
    %v107 = vld [vmem:[%s0 + $0x220] sm:$0x3]
    %vm108 = vcmask 23552
    %109 = vst.msk [vmem:[#allocation2] sm:$0xff] %vm108, %v39
    %110 = vst.msk [vmem:[#allocation2 + $0x8] sm:$0xff] %vm108, %v40
    %111 = vst.msk [vmem:[#allocation2 + $0x10] sm:$0xff] %vm108, %v41
    %112 = vst.msk [vmem:[#allocation2 + $0x18] sm:$0xff] %vm108, %v42
    %113 = vst.msk [vmem:[#allocation2 + $0x20] sm:$0xff] %vm108, %v43
    %114 = vst.msk [vmem:[#allocation2 + $0x28] sm:$0xff] %vm108, %v44
    %115 = vst.msk [vmem:[#allocation2 + $0x30] sm:$0xff] %vm108, %v45
    %116 = vst.msk [vmem:[#allocation2 + $0x38] sm:$0xff] %vm108, %v46
    %117 = vst.msk [vmem:[#allocation2 + $0x40] sm:$0xff] %vm108, %v47
    %118 = vst.msk [vmem:[#allocation2 + $0x48] sm:$0xff] %vm108, %v48
    %119 = vst.msk [vmem:[#allocation2 + $0x50] sm:$0xff] %vm108, %v49
    %120 = vst.msk [vmem:[#allocation2 + $0x58] sm:$0xff] %vm108, %v50
    %121 = vst.msk [vmem:[#allocation2 + $0x60] sm:$0xff] %vm108, %v51
    %122 = vst.msk [vmem:[#allocation2 + $0x68] sm:$0xff] %vm108, %v52
    %123 = vst.msk [vmem:[#allocation2 + $0x70] sm:$0xff] %vm108, %v53
    %124 = vst.msk [vmem:[#allocation2 + $0x78] sm:$0xff] %vm108, %v54
    %125 = vst.msk [vmem:[#allocation2 + $0x80] sm:$0xff] %vm108, %v55
    %126 = vst.msk [vmem:[#allocation2 + $0x88] sm:$0xff] %vm108, %v56
    %127 = vst.msk [vmem:[#allocation2 + $0x90] sm:$0xff] %vm108, %v57
    %128 = vst.msk [vmem:[#allocation2 + $0x98] sm:$0xff] %vm108, %v58
    %129 = vst.msk [vmem:[#allocation2 + $0xa0] sm:$0xff] %vm108, %v59
    %130 = vst.msk [vmem:[#allocation2 + $0xa8] sm:$0xff] %vm108, %v60
    %131 = vst.msk [vmem:[#allocation2 + $0xb0] sm:$0xff] %vm108, %v61
    %132 = vst.msk [vmem:[#allocation2 + $0xb8] sm:$0xff] %vm108, %v62
    %133 = vst.msk [vmem:[#allocation2 + $0xc0] sm:$0xff] %vm108, %v63
    %134 = vst.msk [vmem:[#allocation2 + $0xc8] sm:$0xff] %vm108, %v64
    %135 = vst.msk [vmem:[#allocation2 + $0xd0] sm:$0xff] %vm108, %v65
    %136 = vst.msk [vmem:[#allocation2 + $0xd8] sm:$0xff] %vm108, %v66
    %137 = vst.msk [vmem:[#allocation2 + $0xe0] sm:$0xff] %vm108, %v67
    %138 = vst.msk [vmem:[#allocation2 + $0xe8] sm:$0xff] %vm108, %v68
    %139 = vst.msk [vmem:[#allocation2 + $0xf0] sm:$0xff] %vm108, %v69
    %140 = vst.msk [vmem:[#allocation2 + $0xf8] sm:$0xff] %vm108, %v70
    %141 = vst.msk [vmem:[#allocation2 + $0x100] sm:$0xff] %vm108, %v71
    %142 = vst.msk [vmem:[#allocation2 + $0x108] sm:$0xff] %vm108, %v72
    %143 = vst.msk [vmem:[#allocation2 + $0x110] sm:$0xff] %vm108, %v73
    %144 = vst.msk [vmem:[#allocation2 + $0x118] sm:$0xff] %vm108, %v74
    %145 = vst.msk [vmem:[#allocation2 + $0x120] sm:$0xff] %vm108, %v75
    %146 = vst.msk [vmem:[#allocation2 + $0x128] sm:$0xff] %vm108, %v76
    %147 = vst.msk [vmem:[#allocation2 + $0x130] sm:$0xff] %vm108, %v77
    %148 = vst.msk [vmem:[#allocation2 + $0x138] sm:$0xff] %vm108, %v78
    %149 = vst.msk [vmem:[#allocation2 + $0x140] sm:$0xff] %vm108, %v79
    %150 = vst.msk [vmem:[#allocation2 + $0x148] sm:$0xff] %vm108, %v80
    %151 = vst.msk [vmem:[#allocation2 + $0x150] sm:$0xff] %vm108, %v81
    %152 = vst.msk [vmem:[#allocation2 + $0x158] sm:$0xff] %vm108, %v82
    %153 = vst.msk [vmem:[#allocation2 + $0x160] sm:$0xff] %vm108, %v83
    %154 = vst.msk [vmem:[#allocation2 + $0x168] sm:$0xff] %vm108, %v84
    %155 = vst.msk [vmem:[#allocation2 + $0x170] sm:$0xff] %vm108, %v85
    %156 = vst.msk [vmem:[#allocation2 + $0x178] sm:$0xff] %vm108, %v86
    %157 = vst.msk [vmem:[#allocation2 + $0x180] sm:$0xff] %vm108, %v87
    %158 = vst.msk [vmem:[#allocation2 + $0x188] sm:$0xff] %vm108, %v88
    %159 = vst.msk [vmem:[#allocation2 + $0x190] sm:$0xff] %vm108, %v89
    %160 = vst.msk [vmem:[#allocation2 + $0x198] sm:$0xff] %vm108, %v90
    %161 = vst.msk [vmem:[#allocation2 + $0x1a0] sm:$0xff] %vm108, %v91
    %162 = vst.msk [vmem:[#allocation2 + $0x1a8] sm:$0xff] %vm108, %v92
    %163 = vst.msk [vmem:[#allocation2 + $0x1b0] sm:$0xff] %vm108, %v93
    %164 = vst.msk [vmem:[#allocation2 + $0x1b8] sm:$0xff] %vm108, %v94
    %165 = vst.msk [vmem:[#allocation2 + $0x1c0] sm:$0xff] %vm108, %v95
    %166 = vst.msk [vmem:[#allocation2 + $0x1c8] sm:$0xff] %vm108, %v96
    %167 = vst.msk [vmem:[#allocation2 + $0x1d0] sm:$0xff] %vm108, %v97
    %168 = vst.msk [vmem:[#allocation2 + $0x1d8] sm:$0xff] %vm108, %v98
    %169 = vst.msk [vmem:[#allocation2 + $0x1e0] sm:$0xff] %vm108, %v99
    %170 = vst.msk [vmem:[#allocation2 + $0x1e8] sm:$0xff] %vm108, %v100
    %171 = vst.msk [vmem:[#allocation2 + $0x1f0] sm:$0xff] %vm108, %v101
    %172 = vst.msk [vmem:[#allocation2 + $0x1f8] sm:$0xff] %vm108, %v102
    %237 = vrot.lane.b32.xlu0 %v41, 9
    %v238 = vpop.permute.xlu0 %237
    %239 = vrot.lane.b32.xlu0 %v42, 9
    %v240 = vpop.permute.xlu0 %239
    %241 = vrot.lane.b32.xlu0 %v43, 9
    %v242 = vpop.permute.xlu0 %241
    %243 = vrot.lane.b32.xlu0 %v44, 9
    %v244 = vpop.permute.xlu0 %243
    %245 = vrot.lane.b32.xlu0 %v45, 9
    %v246 = vpop.permute.xlu0 %245
    %247 = vrot.lane.b32.xlu0 %v46, 9
    %v248 = vpop.permute.xlu0 %247
    %249 = vrot.lane.b32.xlu0 %v47, 9
    %v250 = vpop.permute.xlu0 %249
    %251 = vrot.lane.b32.xlu0 %v48, 9
    %v252 = vpop.permute.xlu0 %251
    %253 = vrot.lane.b32.xlu0 %v49, 9
    %v254 = vpop.permute.xlu0 %253
    %255 = vrot.lane.b32.xlu0 %v50, 9
    %v256 = vpop.permute.xlu0 %255
    %257 = vrot.lane.b32.xlu0 %v51, 9
    %v258 = vpop.permute.xlu0 %257
    %259 = vrot.lane.b32.xlu0 %v52, 9
    %v260 = vpop.permute.xlu0 %259
    %261 = vrot.lane.b32.xlu0 %v53, 9
    %v262 = vpop.permute.xlu0 %261
    %263 = vrot.lane.b32.xlu0 %v54, 9
    %v264 = vpop.permute.xlu0 %263
    %265 = vrot.lane.b32.xlu0 %v55, 9
    %v266 = vpop.permute.xlu0 %265
    %267 = vrot.lane.b32.xlu0 %v56, 9
    %v268 = vpop.permute.xlu0 %267
    %269 = vrot.lane.b32.xlu0 %v57, 9
    %v270 = vpop.permute.xlu0 %269
    %271 = vrot.lane.b32.xlu0 %v58, 9
    %v272 = vpop.permute.xlu0 %271
    %273 = vrot.lane.b32.xlu0 %v59, 9
    %v274 = vpop.permute.xlu0 %273
    %275 = vrot.lane.b32.xlu0 %v60, 9
    %v276 = vpop.permute.xlu0 %275
    %277 = vrot.lane.b32.xlu0 %v61, 9
    %v278 = vpop.permute.xlu0 %277
    %279 = vrot.lane.b32.xlu0 %v62, 9
    %v280 = vpop.permute.xlu0 %279
    %281 = vrot.lane.b32.xlu0 %v63, 9
    %v282 = vpop.permute.xlu0 %281
    %283 = vrot.lane.b32.xlu0 %v64, 9
    %v284 = vpop.permute.xlu0 %283
    %285 = vrot.lane.b32.xlu0 %v65, 9
    %v286 = vpop.permute.xlu0 %285
    %287 = vrot.lane.b32.xlu0 %v66, 9
    %v288 = vpop.permute.xlu0 %287
    %289 = vrot.lane.b32.xlu0 %v67, 9
    %v290 = vpop.permute.xlu0 %289
    %291 = vrot.lane.b32.xlu0 %v68, 9
    %v292 = vpop.permute.xlu0 %291
    %293 = vrot.lane.b32.xlu0 %v69, 9
    %v294 = vpop.permute.xlu0 %293
    %295 = vrot.lane.b32.xlu0 %v70, 9
    %v296 = vpop.permute.xlu0 %295
    %297 = vrot.lane.b32.xlu0 %v71, 9
    %v298 = vpop.permute.xlu0 %297
    %299 = vrot.lane.b32.xlu0 %v72, 9
    %v300 = vpop.permute.xlu0 %299
    %301 = vrot.lane.b32.xlu0 %v73, 9
    %v302 = vpop.permute.xlu0 %301
    %303 = vrot.lane.b32.xlu0 %v74, 9
    %v304 = vpop.permute.xlu0 %303
    %305 = vrot.lane.b32.xlu0 %v75, 9
    %v306 = vpop.permute.xlu0 %305
    %307 = vrot.lane.b32.xlu0 %v76, 9
    %v308 = vpop.permute.xlu0 %307
    %309 = vrot.lane.b32.xlu0 %v77, 9
    %v310 = vpop.permute.xlu0 %309
    %311 = vrot.lane.b32.xlu0 %v78, 9
    %v312 = vpop.permute.xlu0 %311
    %313 = vrot.lane.b32.xlu0 %v79, 9
    %v314 = vpop.permute.xlu0 %313
    %315 = vrot.lane.b32.xlu0 %v80, 9
    %v316 = vpop.permute.xlu0 %315
    %317 = vrot.lane.b32.xlu0 %v81, 9
    %v318 = vpop.permute.xlu0 %317
    %319 = vrot.lane.b32.xlu0 %v82, 9
    %v320 = vpop.permute.xlu0 %319
    %321 = vrot.lane.b32.xlu0 %v83, 9
    %v322 = vpop.permute.xlu0 %321
    %323 = vrot.lane.b32.xlu0 %v84, 9
    %v324 = vpop.permute.xlu0 %323
    %325 = vrot.lane.b32.xlu0 %v85, 9
    %v326 = vpop.permute.xlu0 %325
    %327 = vrot.lane.b32.xlu0 %v86, 9
    %v328 = vpop.permute.xlu0 %327
    %329 = vrot.lane.b32.xlu0 %v87, 9
    %v330 = vpop.permute.xlu0 %329
    %331 = vrot.lane.b32.xlu0 %v88, 9
    %v332 = vpop.permute.xlu0 %331
    %333 = vrot.lane.b32.xlu0 %v89, 9
    %v334 = vpop.permute.xlu0 %333
    %335 = vrot.lane.b32.xlu0 %v90, 9
    %v336 = vpop.permute.xlu0 %335
    %337 = vrot.lane.b32.xlu0 %v91, 9
    %v338 = vpop.permute.xlu0 %337
    %339 = vrot.lane.b32.xlu0 %v92, 9
    %v340 = vpop.permute.xlu0 %339
    %341 = vrot.lane.b32.xlu0 %v93, 9
    %v342 = vpop.permute.xlu0 %341
    %343 = vrot.lane.b32.xlu0 %v94, 9
    %v344 = vpop.permute.xlu0 %343
    %345 = vrot.lane.b32.xlu0 %v95, 9
    %v346 = vpop.permute.xlu0 %345
    %347 = vrot.lane.b32.xlu0 %v96, 9
    %v348 = vpop.permute.xlu0 %347
    %349 = vrot.lane.b32.xlu0 %v97, 9
    %v350 = vpop.permute.xlu0 %349
    %351 = vrot.lane.b32.xlu0 %v98, 9
    %v352 = vpop.permute.xlu0 %351
    %353 = vrot.lane.b32.xlu0 %v99, 9
    %v354 = vpop.permute.xlu0 %353
    %355 = vrot.lane.b32.xlu0 %v100, 9
    %v356 = vpop.permute.xlu0 %355
    %357 = vrot.lane.b32.xlu0 %v101, 9
    %v358 = vpop.permute.xlu0 %357
    %359 = vrot.lane.b32.xlu0 %v102, 9
    %v360 = vpop.permute.xlu0 %359
    %361 = vrot.lane.b32.xlu0 %v103, 9
    %v362 = vpop.permute.xlu0 %361
    %363 = vrot.lane.b32.xlu0 %v104, 9
    %v364 = vpop.permute.xlu0 %363
    %vm429 = vcmask 97352
    %430 = vst.msk [vmem:[#allocation2] sm:$0xff] %vm429, %v238
    %431 = vst.msk [vmem:[#allocation2 + $0x8] sm:$0xff] %vm429, %v240
    %432 = vst.msk [vmem:[#allocation2 + $0x10] sm:$0xff] %vm429, %v242
    %433 = vst.msk [vmem:[#allocation2 + $0x18] sm:$0xff] %vm429, %v244
    %434 = vst.msk [vmem:[#allocation2 + $0x20] sm:$0xff] %vm429, %v246
    %435 = vst.msk [vmem:[#allocation2 + $0x28] sm:$0xff] %vm429, %v248
    %436 = vst.msk [vmem:[#allocation2 + $0x30] sm:$0xff] %vm429, %v250
    %437 = vst.msk [vmem:[#allocation2 + $0x38] sm:$0xff] %vm429, %v252
    %438 = vst.msk [vmem:[#allocation2 + $0x40] sm:$0xff] %vm429, %v254
    %439 = vst.msk [vmem:[#allocation2 + $0x48] sm:$0xff] %vm429, %v256
    %440 = vst.msk [vmem:[#allocation2 + $0x50] sm:$0xff] %vm429, %v258
    %441 = vst.msk [vmem:[#allocation2 + $0x58] sm:$0xff] %vm429, %v260
    %442 = vst.msk [vmem:[#allocation2 + $0x60] sm:$0xff] %vm429, %v262
    %443 = vst.msk [vmem:[#allocation2 + $0x68] sm:$0xff] %vm429, %v264
    %444 = vst.msk [vmem:[#allocation2 + $0x70] sm:$0xff] %vm429, %v266
    %445 = vst.msk [vmem:[#allocation2 + $0x78] sm:$0xff] %vm429, %v268
    %446 = vst.msk [vmem:[#allocation2 + $0x80] sm:$0xff] %vm429, %v270
    %447 = vst.msk [vmem:[#allocation2 + $0x88] sm:$0xff] %vm429, %v272
    %448 = vst.msk [vmem:[#allocation2 + $0x90] sm:$0xff] %vm429, %v274
    %449 = vst.msk [vmem:[#allocation2 + $0x98] sm:$0xff] %vm429, %v276
    %450 = vst.msk [vmem:[#allocation2 + $0xa0] sm:$0xff] %vm429, %v278
    %451 = vst.msk [vmem:[#allocation2 + $0xa8] sm:$0xff] %vm429, %v280
    %452 = vst.msk [vmem:[#allocation2 + $0xb0] sm:$0xff] %vm429, %v282
    %453 = vst.msk [vmem:[#allocation2 + $0xb8] sm:$0xff] %vm429, %v284
    %454 = vst.msk [vmem:[#allocation2 + $0xc0] sm:$0xff] %vm429, %v286
    %455 = vst.msk [vmem:[#allocation2 + $0xc8] sm:$0xff] %vm429, %v288
    %456 = vst.msk [vmem:[#allocation2 + $0xd0] sm:$0xff] %vm429, %v290
    %457 = vst.msk [vmem:[#allocation2 + $0xd8] sm:$0xff] %vm429, %v292
    %458 = vst.msk [vmem:[#allocation2 + $0xe0] sm:$0xff] %vm429, %v294
    %459 = vst.msk [vmem:[#allocation2 + $0xe8] sm:$0xff] %vm429, %v296
    %460 = vst.msk [vmem:[#allocation2 + $0xf0] sm:$0xff] %vm429, %v298
    %461 = vst.msk [vmem:[#allocation2 + $0xf8] sm:$0xff] %vm429, %v300
    %462 = vst.msk [vmem:[#allocation2 + $0x100] sm:$0xff] %vm429, %v302
    %463 = vst.msk [vmem:[#allocation2 + $0x108] sm:$0xff] %vm429, %v304
    %464 = vst.msk [vmem:[#allocation2 + $0x110] sm:$0xff] %vm429, %v306
    %465 = vst.msk [vmem:[#allocation2 + $0x118] sm:$0xff] %vm429, %v308
    %466 = vst.msk [vmem:[#allocation2 + $0x120] sm:$0xff] %vm429, %v310
    %467 = vst.msk [vmem:[#allocation2 + $0x128] sm:$0xff] %vm429, %v312
    %468 = vst.msk [vmem:[#allocation2 + $0x130] sm:$0xff] %vm429, %v314
    %469 = vst.msk [vmem:[#allocation2 + $0x138] sm:$0xff] %vm429, %v316
    %470 = vst.msk [vmem:[#allocation2 + $0x140] sm:$0xff] %vm429, %v318
    %471 = vst.msk [vmem:[#allocation2 + $0x148] sm:$0xff] %vm429, %v320
    %472 = vst.msk [vmem:[#allocation2 + $0x150] sm:$0xff] %vm429, %v322
    %473 = vst.msk [vmem:[#allocation2 + $0x158] sm:$0xff] %vm429, %v324
    %474 = vst.msk [vmem:[#allocation2 + $0x160] sm:$0xff] %vm429, %v326
    %475 = vst.msk [vmem:[#allocation2 + $0x168] sm:$0xff] %vm429, %v328
    %476 = vst.msk [vmem:[#allocation2 + $0x170] sm:$0xff] %vm429, %v330
    %477 = vst.msk [vmem:[#allocation2 + $0x178] sm:$0xff] %vm429, %v332
    %478 = vst.msk [vmem:[#allocation2 + $0x180] sm:$0xff] %vm429, %v334
    %479 = vst.msk [vmem:[#allocation2 + $0x188] sm:$0xff] %vm429, %v336
    %480 = vst.msk [vmem:[#allocation2 + $0x190] sm:$0xff] %vm429, %v338
    %481 = vst.msk [vmem:[#allocation2 + $0x198] sm:$0xff] %vm429, %v340
    %482 = vst.msk [vmem:[#allocation2 + $0x1a0] sm:$0xff] %vm429, %v342
    %483 = vst.msk [vmem:[#allocation2 + $0x1a8] sm:$0xff] %vm429, %v344
    %484 = vst.msk [vmem:[#allocation2 + $0x1b0] sm:$0xff] %vm429, %v346
    %485 = vst.msk [vmem:[#allocation2 + $0x1b8] sm:$0xff] %vm429, %v348
    %486 = vst.msk [vmem:[#allocation2 + $0x1c0] sm:$0xff] %vm429, %v350
    %487 = vst.msk [vmem:[#allocation2 + $0x1c8] sm:$0xff] %vm429, %v352
    %488 = vst.msk [vmem:[#allocation2 + $0x1d0] sm:$0xff] %vm429, %v354
    %489 = vst.msk [vmem:[#allocation2 + $0x1d8] sm:$0xff] %vm429, %v356
    %490 = vst.msk [vmem:[#allocation2 + $0x1e0] sm:$0xff] %vm429, %v358
    %491 = vst.msk [vmem:[#allocation2 + $0x1e8] sm:$0xff] %vm429, %v360
    %492 = vst.msk [vmem:[#allocation2 + $0x1f0] sm:$0xff] %vm429, %v362
    %493 = vst.msk [vmem:[#allocation2 + $0x1f8] sm:$0xff] %vm429, %v364
    %496 = vrot.lane.b32.xlu0 %v43, 18
    %v497 = vpop.permute.xlu0 %496
    %498 = vrot.lane.b32.xlu0 %v44, 18
    %v499 = vpop.permute.xlu0 %498
    %500 = vrot.lane.b32.xlu0 %v45, 18
    %v501 = vpop.permute.xlu0 %500
    %502 = vrot.lane.b32.xlu0 %v46, 18
    %v503 = vpop.permute.xlu0 %502
    %504 = vrot.lane.b32.xlu0 %v47, 18
    %v505 = vpop.permute.xlu0 %504
    %506 = vrot.lane.b32.xlu0 %v48, 18
    %v507 = vpop.permute.xlu0 %506
    %508 = vrot.lane.b32.xlu0 %v49, 18
    %v509 = vpop.permute.xlu0 %508
    %510 = vrot.lane.b32.xlu0 %v50, 18
    %v511 = vpop.permute.xlu0 %510
    %512 = vrot.lane.b32.xlu0 %v51, 18
    %v513 = vpop.permute.xlu0 %512
    %514 = vrot.lane.b32.xlu0 %v52, 18
    %v515 = vpop.permute.xlu0 %514
    %516 = vrot.lane.b32.xlu0 %v53, 18
    %v517 = vpop.permute.xlu0 %516
    %518 = vrot.lane.b32.xlu0 %v54, 18
    %v519 = vpop.permute.xlu0 %518
    %520 = vrot.lane.b32.xlu0 %v55, 18
    %v521 = vpop.permute.xlu0 %520
    %522 = vrot.lane.b32.xlu0 %v56, 18
    %v523 = vpop.permute.xlu0 %522
    %524 = vrot.lane.b32.xlu0 %v57, 18
    %v525 = vpop.permute.xlu0 %524
    %526 = vrot.lane.b32.xlu0 %v58, 18
    %v527 = vpop.permute.xlu0 %526
    %528 = vrot.lane.b32.xlu0 %v59, 18
    %v529 = vpop.permute.xlu0 %528
    %530 = vrot.lane.b32.xlu0 %v60, 18
    %v531 = vpop.permute.xlu0 %530
    %532 = vrot.lane.b32.xlu0 %v61, 18
    %v533 = vpop.permute.xlu0 %532
    %534 = vrot.lane.b32.xlu0 %v62, 18
    %v535 = vpop.permute.xlu0 %534
    %536 = vrot.lane.b32.xlu0 %v63, 18
    %v537 = vpop.permute.xlu0 %536
    %538 = vrot.lane.b32.xlu0 %v64, 18
    %v539 = vpop.permute.xlu0 %538
    %540 = vrot.lane.b32.xlu0 %v65, 18
    %v541 = vpop.permute.xlu0 %540
    %542 = vrot.lane.b32.xlu0 %v66, 18
    %v543 = vpop.permute.xlu0 %542
    %544 = vrot.lane.b32.xlu0 %v67, 18
    %v545 = vpop.permute.xlu0 %544
    %546 = vrot.lane.b32.xlu0 %v68, 18
    %v547 = vpop.permute.xlu0 %546
    %548 = vrot.lane.b32.xlu0 %v69, 18
    %v549 = vpop.permute.xlu0 %548
    %550 = vrot.lane.b32.xlu0 %v70, 18
    %v551 = vpop.permute.xlu0 %550
    %552 = vrot.lane.b32.xlu0 %v71, 18
    %v553 = vpop.permute.xlu0 %552
    %554 = vrot.lane.b32.xlu0 %v72, 18
    %v555 = vpop.permute.xlu0 %554
    %556 = vrot.lane.b32.xlu0 %v73, 18
    %v557 = vpop.permute.xlu0 %556
    %558 = vrot.lane.b32.xlu0 %v74, 18
    %v559 = vpop.permute.xlu0 %558
    %560 = vrot.lane.b32.xlu0 %v75, 18
    %v561 = vpop.permute.xlu0 %560
    %562 = vrot.lane.b32.xlu0 %v76, 18
    %v563 = vpop.permute.xlu0 %562
    %564 = vrot.lane.b32.xlu0 %v77, 18
    %v565 = vpop.permute.xlu0 %564
    %566 = vrot.lane.b32.xlu0 %v78, 18
    %v567 = vpop.permute.xlu0 %566
    %568 = vrot.lane.b32.xlu0 %v79, 18
    %v569 = vpop.permute.xlu0 %568
    %570 = vrot.lane.b32.xlu0 %v80, 18
    %v571 = vpop.permute.xlu0 %570
    %572 = vrot.lane.b32.xlu0 %v81, 18
    %v573 = vpop.permute.xlu0 %572
    %574 = vrot.lane.b32.xlu0 %v82, 18
    %v575 = vpop.permute.xlu0 %574
    %576 = vrot.lane.b32.xlu0 %v83, 18
    %v577 = vpop.permute.xlu0 %576
    %578 = vrot.lane.b32.xlu0 %v84, 18
    %v579 = vpop.permute.xlu0 %578
    %580 = vrot.lane.b32.xlu0 %v85, 18
    %v581 = vpop.permute.xlu0 %580
    %582 = vrot.lane.b32.xlu0 %v86, 18
    %v583 = vpop.permute.xlu0 %582
    %584 = vrot.lane.b32.xlu0 %v87, 18
    %v585 = vpop.permute.xlu0 %584
    %586 = vrot.lane.b32.xlu0 %v88, 18
    %v587 = vpop.permute.xlu0 %586
    %588 = vrot.lane.b32.xlu0 %v89, 18
    %v589 = vpop.permute.xlu0 %588
    %590 = vrot.lane.b32.xlu0 %v90, 18
    %v591 = vpop.permute.xlu0 %590
    %592 = vrot.lane.b32.xlu0 %v91, 18
    %v593 = vpop.permute.xlu0 %592
    %594 = vrot.lane.b32.xlu0 %v92, 18
    %v595 = vpop.permute.xlu0 %594
    %596 = vrot.lane.b32.xlu0 %v93, 18
    %v597 = vpop.permute.xlu0 %596
    %598 = vrot.lane.b32.xlu0 %v94, 18
    %v599 = vpop.permute.xlu0 %598
    %600 = vrot.lane.b32.xlu0 %v95, 18
    %v601 = vpop.permute.xlu0 %600
    %602 = vrot.lane.b32.xlu0 %v96, 18
    %v603 = vpop.permute.xlu0 %602
    %604 = vrot.lane.b32.xlu0 %v97, 18
    %v605 = vpop.permute.xlu0 %604
    %606 = vrot.lane.b32.xlu0 %v98, 18
    %v607 = vpop.permute.xlu0 %606
    %608 = vrot.lane.b32.xlu0 %v99, 18
    %v609 = vpop.permute.xlu0 %608
    %610 = vrot.lane.b32.xlu0 %v100, 18
    %v611 = vpop.permute.xlu0 %610
    %612 = vrot.lane.b32.xlu0 %v101, 18
    %v613 = vpop.permute.xlu0 %612
    %614 = vrot.lane.b32.xlu0 %v102, 18
    %v615 = vpop.permute.xlu0 %614
    %616 = vrot.lane.b32.xlu0 %v103, 18
    %v617 = vpop.permute.xlu0 %616
    %618 = vrot.lane.b32.xlu0 %v104, 18
    %v619 = vpop.permute.xlu0 %618
    %620 = vrot.lane.b32.xlu0 %v105, 18
    %v621 = vpop.permute.xlu0 %620
    %622 = vrot.lane.b32.xlu0 %v106, 18
    %v623 = vpop.permute.xlu0 %622
    %vm688 = vcmask 171152
    %689 = vst.msk [vmem:[#allocation2] sm:$0xff] %vm688, %v497
    %690 = vst.msk [vmem:[#allocation2 + $0x8] sm:$0xff] %vm688, %v499
    %691 = vst.msk [vmem:[#allocation2 + $0x10] sm:$0xff] %vm688, %v501
    %692 = vst.msk [vmem:[#allocation2 + $0x18] sm:$0xff] %vm688, %v503
    %693 = vst.msk [vmem:[#allocation2 + $0x20] sm:$0xff] %vm688, %v505
    %694 = vst.msk [vmem:[#allocation2 + $0x28] sm:$0xff] %vm688, %v507
    %695 = vst.msk [vmem:[#allocation2 + $0x30] sm:$0xff] %vm688, %v509
    %696 = vst.msk [vmem:[#allocation2 + $0x38] sm:$0xff] %vm688, %v511
    %697 = vst.msk [vmem:[#allocation2 + $0x40] sm:$0xff] %vm688, %v513
    %698 = vst.msk [vmem:[#allocation2 + $0x48] sm:$0xff] %vm688, %v515
    %699 = vst.msk [vmem:[#allocation2 + $0x50] sm:$0xff] %vm688, %v517
    %700 = vst.msk [vmem:[#allocation2 + $0x58] sm:$0xff] %vm688, %v519
    %701 = vst.msk [vmem:[#allocation2 + $0x60] sm:$0xff] %vm688, %v521
    %702 = vst.msk [vmem:[#allocation2 + $0x68] sm:$0xff] %vm688, %v523
    %703 = vst.msk [vmem:[#allocation2 + $0x70] sm:$0xff] %vm688, %v525
    %704 = vst.msk [vmem:[#allocation2 + $0x78] sm:$0xff] %vm688, %v527
    %705 = vst.msk [vmem:[#allocation2 + $0x80] sm:$0xff] %vm688, %v529
    %706 = vst.msk [vmem:[#allocation2 + $0x88] sm:$0xff] %vm688, %v531
    %707 = vst.msk [vmem:[#allocation2 + $0x90] sm:$0xff] %vm688, %v533
    %708 = vst.msk [vmem:[#allocation2 + $0x98] sm:$0xff] %vm688, %v535
    %709 = vst.msk [vmem:[#allocation2 + $0xa0] sm:$0xff] %vm688, %v537
    %710 = vst.msk [vmem:[#allocation2 + $0xa8] sm:$0xff] %vm688, %v539
    %711 = vst.msk [vmem:[#allocation2 + $0xb0] sm:$0xff] %vm688, %v541
    %712 = vst.msk [vmem:[#allocation2 + $0xb8] sm:$0xff] %vm688, %v543
    %713 = vst.msk [vmem:[#allocation2 + $0xc0] sm:$0xff] %vm688, %v545
    %714 = vst.msk [vmem:[#allocation2 + $0xc8] sm:$0xff] %vm688, %v547
    %715 = vst.msk [vmem:[#allocation2 + $0xd0] sm:$0xff] %vm688, %v549
    %716 = vst.msk [vmem:[#allocation2 + $0xd8] sm:$0xff] %vm688, %v551
    %717 = vst.msk [vmem:[#allocation2 + $0xe0] sm:$0xff] %vm688, %v553
    %718 = vst.msk [vmem:[#allocation2 + $0xe8] sm:$0xff] %vm688, %v555
    %719 = vst.msk [vmem:[#allocation2 + $0xf0] sm:$0xff] %vm688, %v557
    %720 = vst.msk [vmem:[#allocation2 + $0xf8] sm:$0xff] %vm688, %v559
    %721 = vst.msk [vmem:[#allocation2 + $0x100] sm:$0xff] %vm688, %v561
    %722 = vst.msk [vmem:[#allocation2 + $0x108] sm:$0xff] %vm688, %v563
    %723 = vst.msk [vmem:[#allocation2 + $0x110] sm:$0xff] %vm688, %v565
    %724 = vst.msk [vmem:[#allocation2 + $0x118] sm:$0xff] %vm688, %v567
    %725 = vst.msk [vmem:[#allocation2 + $0x120] sm:$0xff] %vm688, %v569
    %726 = vst.msk [vmem:[#allocation2 + $0x128] sm:$0xff] %vm688, %v571
    %727 = vst.msk [vmem:[#allocation2 + $0x130] sm:$0xff] %vm688, %v573
    %728 = vst.msk [vmem:[#allocation2 + $0x138] sm:$0xff] %vm688, %v575
    %729 = vst.msk [vmem:[#allocation2 + $0x140] sm:$0xff] %vm688, %v577
    %730 = vst.msk [vmem:[#allocation2 + $0x148] sm:$0xff] %vm688, %v579
    %731 = vst.msk [vmem:[#allocation2 + $0x150] sm:$0xff] %vm688, %v581
    %732 = vst.msk [vmem:[#allocation2 + $0x158] sm:$0xff] %vm688, %v583
    %733 = vst.msk [vmem:[#allocation2 + $0x160] sm:$0xff] %vm688, %v585
    %734 = vst.msk [vmem:[#allocation2 + $0x168] sm:$0xff] %vm688, %v587
    %735 = vst.msk [vmem:[#allocation2 + $0x170] sm:$0xff] %vm688, %v589
    %736 = vst.msk [vmem:[#allocation2 + $0x178] sm:$0xff] %vm688, %v591
    %737 = vst.msk [vmem:[#allocation2 + $0x180] sm:$0xff] %vm688, %v593
    %738 = vst.msk [vmem:[#allocation2 + $0x188] sm:$0xff] %vm688, %v595
    %739 = vst.msk [vmem:[#allocation2 + $0x190] sm:$0xff] %vm688, %v597
    %740 = vst.msk [vmem:[#allocation2 + $0x198] sm:$0xff] %vm688, %v599
    %741 = vst.msk [vmem:[#allocation2 + $0x1a0] sm:$0xff] %vm688, %v601
    %742 = vst.msk [vmem:[#allocation2 + $0x1a8] sm:$0xff] %vm688, %v603
    %743 = vst.msk [vmem:[#allocation2 + $0x1b0] sm:$0xff] %vm688, %v605
    %744 = vst.msk [vmem:[#allocation2 + $0x1b8] sm:$0xff] %vm688, %v607
    %745 = vst.msk [vmem:[#allocation2 + $0x1c0] sm:$0xff] %vm688, %v609
    %746 = vst.msk [vmem:[#allocation2 + $0x1c8] sm:$0xff] %vm688, %v611
    %747 = vst.msk [vmem:[#allocation2 + $0x1d0] sm:$0xff] %vm688, %v613
    %748 = vst.msk [vmem:[#allocation2 + $0x1d8] sm:$0xff] %vm688, %v615
    %749 = vst.msk [vmem:[#allocation2 + $0x1e0] sm:$0xff] %vm688, %v617
    %750 = vst.msk [vmem:[#allocation2 + $0x1e8] sm:$0xff] %vm688, %v619
    %751 = vst.msk [vmem:[#allocation2 + $0x1f0] sm:$0xff] %vm688, %v621
    %752 = vst.msk [vmem:[#allocation2 + $0x1f8] sm:$0xff] %vm688, %v623
    %755 = vrot.lane.b32.xlu0 %v39, 3
    %v756 = vpop.permute.xlu0 %755
    %757 = vrot.lane.b32.xlu0 %v40, 3
    %v758 = vpop.permute.xlu0 %757
    %759 = vrot.lane.b32.xlu0 %v41, 3
    %v760 = vpop.permute.xlu0 %759
    %761 = vrot.lane.b32.xlu0 %v42, 3
    %v762 = vpop.permute.xlu0 %761
    %763 = vrot.lane.b32.xlu0 %v43, 3
    %v764 = vpop.permute.xlu0 %763
    %765 = vrot.lane.b32.xlu0 %v44, 3
    %v766 = vpop.permute.xlu0 %765
    %767 = vrot.lane.b32.xlu0 %v45, 3
    %v768 = vpop.permute.xlu0 %767
    %769 = vrot.lane.b32.xlu0 %v46, 3
    %v770 = vpop.permute.xlu0 %769
    %771 = vrot.lane.b32.xlu0 %v47, 3
    %v772 = vpop.permute.xlu0 %771
    %773 = vrot.lane.b32.xlu0 %v48, 3
    %v774 = vpop.permute.xlu0 %773
    %775 = vrot.lane.b32.xlu0 %v49, 3
    %v776 = vpop.permute.xlu0 %775
    %777 = vrot.lane.b32.xlu0 %v50, 3
    %v778 = vpop.permute.xlu0 %777
    %779 = vrot.lane.b32.xlu0 %v51, 3
    %v780 = vpop.permute.xlu0 %779
    %781 = vrot.lane.b32.xlu0 %v52, 3
    %v782 = vpop.permute.xlu0 %781
    %783 = vrot.lane.b32.xlu0 %v53, 3
    %v784 = vpop.permute.xlu0 %783
    %785 = vrot.lane.b32.xlu0 %v54, 3
    %v786 = vpop.permute.xlu0 %785
    %787 = vrot.lane.b32.xlu0 %v55, 3
    %v788 = vpop.permute.xlu0 %787
    %789 = vrot.lane.b32.xlu0 %v56, 3
    %v790 = vpop.permute.xlu0 %789
    %791 = vrot.lane.b32.xlu0 %v57, 3
    %v792 = vpop.permute.xlu0 %791
    %793 = vrot.lane.b32.xlu0 %v58, 3
    %v794 = vpop.permute.xlu0 %793
    %795 = vrot.lane.b32.xlu0 %v59, 3
    %v796 = vpop.permute.xlu0 %795
    %797 = vrot.lane.b32.xlu0 %v60, 3
    %v798 = vpop.permute.xlu0 %797
    %799 = vrot.lane.b32.xlu0 %v61, 3
    %v800 = vpop.permute.xlu0 %799
    %801 = vrot.lane.b32.xlu0 %v62, 3
    %v802 = vpop.permute.xlu0 %801
    %803 = vrot.lane.b32.xlu0 %v63, 3
    %v804 = vpop.permute.xlu0 %803
    %805 = vrot.lane.b32.xlu0 %v64, 3
    %v806 = vpop.permute.xlu0 %805
    %807 = vrot.lane.b32.xlu0 %v65, 3
    %v808 = vpop.permute.xlu0 %807
    %809 = vrot.lane.b32.xlu0 %v66, 3
    %v810 = vpop.permute.xlu0 %809
    %811 = vrot.lane.b32.xlu0 %v67, 3
    %v812 = vpop.permute.xlu0 %811
    %813 = vrot.lane.b32.xlu0 %v68, 3
    %v814 = vpop.permute.xlu0 %813
    %815 = vrot.lane.b32.xlu0 %v69, 3
    %v816 = vpop.permute.xlu0 %815
    %817 = vrot.lane.b32.xlu0 %v70, 3
    %v818 = vpop.permute.xlu0 %817
    %819 = vrot.lane.b32.xlu0 %v71, 3
    %v820 = vpop.permute.xlu0 %819
    %821 = vrot.lane.b32.xlu0 %v72, 3
    %v822 = vpop.permute.xlu0 %821
    %823 = vrot.lane.b32.xlu0 %v73, 3
    %v824 = vpop.permute.xlu0 %823
    %825 = vrot.lane.b32.xlu0 %v74, 3
    %v826 = vpop.permute.xlu0 %825
    %827 = vrot.lane.b32.xlu0 %v75, 3
    %v828 = vpop.permute.xlu0 %827
    %829 = vrot.lane.b32.xlu0 %v76, 3
    %v830 = vpop.permute.xlu0 %829
    %831 = vrot.lane.b32.xlu0 %v77, 3
    %v832 = vpop.permute.xlu0 %831
    %833 = vrot.lane.b32.xlu0 %v78, 3
    %v834 = vpop.permute.xlu0 %833
    %835 = vrot.lane.b32.xlu0 %v79, 3
    %v836 = vpop.permute.xlu0 %835
    %837 = vrot.lane.b32.xlu0 %v80, 3
    %v838 = vpop.permute.xlu0 %837
    %839 = vrot.lane.b32.xlu0 %v81, 3
    %v840 = vpop.permute.xlu0 %839
    %841 = vrot.lane.b32.xlu0 %v82, 3
    %v842 = vpop.permute.xlu0 %841
    %843 = vrot.lane.b32.xlu0 %v83, 3
    %v844 = vpop.permute.xlu0 %843
    %845 = vrot.lane.b32.xlu0 %v84, 3
    %v846 = vpop.permute.xlu0 %845
    %847 = vrot.lane.b32.xlu0 %v85, 3
    %v848 = vpop.permute.xlu0 %847
    %849 = vrot.lane.b32.xlu0 %v86, 3
    %v850 = vpop.permute.xlu0 %849
    %851 = vrot.lane.b32.xlu0 %v87, 3
    %v852 = vpop.permute.xlu0 %851
    %853 = vrot.lane.b32.xlu0 %v88, 3
    %v854 = vpop.permute.xlu0 %853
    %855 = vrot.lane.b32.xlu0 %v89, 3
    %v856 = vpop.permute.xlu0 %855
    %857 = vrot.lane.b32.xlu0 %v90, 3
    %v858 = vpop.permute.xlu0 %857
    %859 = vrot.lane.b32.xlu0 %v91, 3
    %v860 = vpop.permute.xlu0 %859
    %861 = vrot.lane.b32.xlu0 %v92, 3
    %v862 = vpop.permute.xlu0 %861
    %863 = vrot.lane.b32.xlu0 %v93, 3
    %v864 = vpop.permute.xlu0 %863
    %865 = vrot.lane.b32.xlu0 %v94, 3
    %v866 = vpop.permute.xlu0 %865
    %867 = vrot.lane.b32.xlu0 %v95, 3
    %v868 = vpop.permute.xlu0 %867
    %869 = vrot.lane.b32.xlu0 %v96, 3
    %v870 = vpop.permute.xlu0 %869
    %871 = vrot.lane.b32.xlu0 %v97, 3
    %v872 = vpop.permute.xlu0 %871
    %873 = vrot.lane.b32.xlu0 %v98, 3
    %v874 = vpop.permute.xlu0 %873
    %875 = vrot.lane.b32.xlu0 %v99, 3
    %v876 = vpop.permute.xlu0 %875
    %877 = vrot.lane.b32.xlu0 %v100, 3
    %v878 = vpop.permute.xlu0 %877
    %879 = vrot.lane.b32.xlu0 %v101, 3
    %v880 = vpop.permute.xlu0 %879
    %881 = vrot.lane.b32.xlu0 %v102, 3
    %v882 = vpop.permute.xlu0 %881
    %883 = vrot.lane.b32.xlu0 %v103, 3
    %v884 = vpop.permute.xlu0 %883
    %vm950 = vcmask 48153
    %951 = vst.msk [vmem:[#allocation2 - $0x1] sm:$0xfe] %vm950, %v756
    %vm952 = vcmask 48152
    %953 = vst.msk [vmem:[#allocation2 + $0x7] sm:$0xff] %vm952, %v758
    %954 = vst.msk [vmem:[#allocation2 + $0xf] sm:$0xff] %vm952, %v760
    %955 = vst.msk [vmem:[#allocation2 + $0x17] sm:$0xff] %vm952, %v762
    %956 = vst.msk [vmem:[#allocation2 + $0x1f] sm:$0xff] %vm952, %v764
    %957 = vst.msk [vmem:[#allocation2 + $0x27] sm:$0xff] %vm952, %v766
    %958 = vst.msk [vmem:[#allocation2 + $0x2f] sm:$0xff] %vm952, %v768
    %959 = vst.msk [vmem:[#allocation2 + $0x37] sm:$0xff] %vm952, %v770
    %960 = vst.msk [vmem:[#allocation2 + $0x3f] sm:$0xff] %vm952, %v772
    %961 = vst.msk [vmem:[#allocation2 + $0x47] sm:$0xff] %vm952, %v774
    %962 = vst.msk [vmem:[#allocation2 + $0x4f] sm:$0xff] %vm952, %v776
    %963 = vst.msk [vmem:[#allocation2 + $0x57] sm:$0xff] %vm952, %v778
    %964 = vst.msk [vmem:[#allocation2 + $0x5f] sm:$0xff] %vm952, %v780
    %965 = vst.msk [vmem:[#allocation2 + $0x67] sm:$0xff] %vm952, %v782
    %966 = vst.msk [vmem:[#allocation2 + $0x6f] sm:$0xff] %vm952, %v784
    %967 = vst.msk [vmem:[#allocation2 + $0x77] sm:$0xff] %vm952, %v786
    %968 = vst.msk [vmem:[#allocation2 + $0x7f] sm:$0xff] %vm952, %v788
    %969 = vst.msk [vmem:[#allocation2 + $0x87] sm:$0xff] %vm952, %v790
    %970 = vst.msk [vmem:[#allocation2 + $0x8f] sm:$0xff] %vm952, %v792
    %971 = vst.msk [vmem:[#allocation2 + $0x97] sm:$0xff] %vm952, %v794
    %972 = vst.msk [vmem:[#allocation2 + $0x9f] sm:$0xff] %vm952, %v796
    %973 = vst.msk [vmem:[#allocation2 + $0xa7] sm:$0xff] %vm952, %v798
    %974 = vst.msk [vmem:[#allocation2 + $0xaf] sm:$0xff] %vm952, %v800
    %975 = vst.msk [vmem:[#allocation2 + $0xb7] sm:$0xff] %vm952, %v802
    %976 = vst.msk [vmem:[#allocation2 + $0xbf] sm:$0xff] %vm952, %v804
    %977 = vst.msk [vmem:[#allocation2 + $0xc7] sm:$0xff] %vm952, %v806
    %978 = vst.msk [vmem:[#allocation2 + $0xcf] sm:$0xff] %vm952, %v808
    %979 = vst.msk [vmem:[#allocation2 + $0xd7] sm:$0xff] %vm952, %v810
    %980 = vst.msk [vmem:[#allocation2 + $0xdf] sm:$0xff] %vm952, %v812
    %981 = vst.msk [vmem:[#allocation2 + $0xe7] sm:$0xff] %vm952, %v814
    %982 = vst.msk [vmem:[#allocation2 + $0xef] sm:$0xff] %vm952, %v816
    %983 = vst.msk [vmem:[#allocation2 + $0xf7] sm:$0xff] %vm952, %v818
    %984 = vst.msk [vmem:[#allocation2 + $0xff] sm:$0xff] %vm952, %v820
    %985 = vst.msk [vmem:[#allocation2 + $0x107] sm:$0xff] %vm952, %v822
    %986 = vst.msk [vmem:[#allocation2 + $0x10f] sm:$0xff] %vm952, %v824
    %987 = vst.msk [vmem:[#allocation2 + $0x117] sm:$0xff] %vm952, %v826
    %988 = vst.msk [vmem:[#allocation2 + $0x11f] sm:$0xff] %vm952, %v828
    %989 = vst.msk [vmem:[#allocation2 + $0x127] sm:$0xff] %vm952, %v830
    %990 = vst.msk [vmem:[#allocation2 + $0x12f] sm:$0xff] %vm952, %v832
    %991 = vst.msk [vmem:[#allocation2 + $0x137] sm:$0xff] %vm952, %v834
    %992 = vst.msk [vmem:[#allocation2 + $0x13f] sm:$0xff] %vm952, %v836
    %993 = vst.msk [vmem:[#allocation2 + $0x147] sm:$0xff] %vm952, %v838
    %994 = vst.msk [vmem:[#allocation2 + $0x14f] sm:$0xff] %vm952, %v840
    %995 = vst.msk [vmem:[#allocation2 + $0x157] sm:$0xff] %vm952, %v842
    %996 = vst.msk [vmem:[#allocation2 + $0x15f] sm:$0xff] %vm952, %v844
    %997 = vst.msk [vmem:[#allocation2 + $0x167] sm:$0xff] %vm952, %v846
    %998 = vst.msk [vmem:[#allocation2 + $0x16f] sm:$0xff] %vm952, %v848
    %999 = vst.msk [vmem:[#allocation2 + $0x177] sm:$0xff] %vm952, %v850
    %1000 = vst.msk [vmem:[#allocation2 + $0x17f] sm:$0xff] %vm952, %v852
    %1001 = vst.msk [vmem:[#allocation2 + $0x187] sm:$0xff] %vm952, %v854
    %1002 = vst.msk [vmem:[#allocation2 + $0x18f] sm:$0xff] %vm952, %v856
    %1003 = vst.msk [vmem:[#allocation2 + $0x197] sm:$0xff] %vm952, %v858
    %1004 = vst.msk [vmem:[#allocation2 + $0x19f] sm:$0xff] %vm952, %v860
    %1005 = vst.msk [vmem:[#allocation2 + $0x1a7] sm:$0xff] %vm952, %v862
    %1006 = vst.msk [vmem:[#allocation2 + $0x1af] sm:$0xff] %vm952, %v864
    %1007 = vst.msk [vmem:[#allocation2 + $0x1b7] sm:$0xff] %vm952, %v866
    %1008 = vst.msk [vmem:[#allocation2 + $0x1bf] sm:$0xff] %vm952, %v868
    %1009 = vst.msk [vmem:[#allocation2 + $0x1c7] sm:$0xff] %vm952, %v870
    %1010 = vst.msk [vmem:[#allocation2 + $0x1cf] sm:$0xff] %vm952, %v872
    %1011 = vst.msk [vmem:[#allocation2 + $0x1d7] sm:$0xff] %vm952, %v874
    %1012 = vst.msk [vmem:[#allocation2 + $0x1df] sm:$0xff] %vm952, %v876
    %1013 = vst.msk [vmem:[#allocation2 + $0x1e7] sm:$0xff] %vm952, %v878
    %1014 = vst.msk [vmem:[#allocation2 + $0x1ef] sm:$0xff] %vm952, %v880
    %1015 = vst.msk [vmem:[#allocation2 + $0x1f7] sm:$0xff] %vm952, %v882
    %vm1016 = vcmask 40984
    %1017 = vst.msk [vmem:[#allocation2 + $0x1ff] sm:$0x1] %vm1016, %v884
    %1018 = vrot.lane.b32.xlu0 %v41, 12
    %v1019 = vpop.permute.xlu0 %1018
    %1020 = vrot.lane.b32.xlu0 %v42, 12
    %v1021 = vpop.permute.xlu0 %1020
    %1022 = vrot.lane.b32.xlu0 %v43, 12
    %v1023 = vpop.permute.xlu0 %1022
    %1024 = vrot.lane.b32.xlu0 %v44, 12
    %v1025 = vpop.permute.xlu0 %1024
    %1026 = vrot.lane.b32.xlu0 %v45, 12
    %v1027 = vpop.permute.xlu0 %1026
    %1028 = vrot.lane.b32.xlu0 %v46, 12
    %v1029 = vpop.permute.xlu0 %1028
    %1030 = vrot.lane.b32.xlu0 %v47, 12
    %v1031 = vpop.permute.xlu0 %1030
    %1032 = vrot.lane.b32.xlu0 %v48, 12
    %v1033 = vpop.permute.xlu0 %1032
    %1034 = vrot.lane.b32.xlu0 %v49, 12
    %v1035 = vpop.permute.xlu0 %1034
    %1036 = vrot.lane.b32.xlu0 %v50, 12
    %v1037 = vpop.permute.xlu0 %1036
    %1038 = vrot.lane.b32.xlu0 %v51, 12
    %v1039 = vpop.permute.xlu0 %1038
    %1040 = vrot.lane.b32.xlu0 %v52, 12
    %v1041 = vpop.permute.xlu0 %1040
    %1042 = vrot.lane.b32.xlu0 %v53, 12
    %v1043 = vpop.permute.xlu0 %1042
    %1044 = vrot.lane.b32.xlu0 %v54, 12
    %v1045 = vpop.permute.xlu0 %1044
    %1046 = vrot.lane.b32.xlu0 %v55, 12
    %v1047 = vpop.permute.xlu0 %1046
    %1048 = vrot.lane.b32.xlu0 %v56, 12
    %v1049 = vpop.permute.xlu0 %1048
    %1050 = vrot.lane.b32.xlu0 %v57, 12
    %v1051 = vpop.permute.xlu0 %1050
    %1052 = vrot.lane.b32.xlu0 %v58, 12
    %v1053 = vpop.permute.xlu0 %1052
    %1054 = vrot.lane.b32.xlu0 %v59, 12
    %v1055 = vpop.permute.xlu0 %1054
    %1056 = vrot.lane.b32.xlu0 %v60, 12
    %v1057 = vpop.permute.xlu0 %1056
    %1058 = vrot.lane.b32.xlu0 %v61, 12
    %v1059 = vpop.permute.xlu0 %1058
    %1060 = vrot.lane.b32.xlu0 %v62, 12
    %v1061 = vpop.permute.xlu0 %1060
    %1062 = vrot.lane.b32.xlu0 %v63, 12
    %v1063 = vpop.permute.xlu0 %1062
    %1064 = vrot.lane.b32.xlu0 %v64, 12
    %v1065 = vpop.permute.xlu0 %1064
    %1066 = vrot.lane.b32.xlu0 %v65, 12
    %v1067 = vpop.permute.xlu0 %1066
    %1068 = vrot.lane.b32.xlu0 %v66, 12
    %v1069 = vpop.permute.xlu0 %1068
    %1070 = vrot.lane.b32.xlu0 %v67, 12
    %v1071 = vpop.permute.xlu0 %1070
    %1072 = vrot.lane.b32.xlu0 %v68, 12
    %v1073 = vpop.permute.xlu0 %1072
    %1074 = vrot.lane.b32.xlu0 %v69, 12
    %v1075 = vpop.permute.xlu0 %1074
    %1076 = vrot.lane.b32.xlu0 %v70, 12
    %v1077 = vpop.permute.xlu0 %1076
    %1078 = vrot.lane.b32.xlu0 %v71, 12
    %v1079 = vpop.permute.xlu0 %1078
    %1080 = vrot.lane.b32.xlu0 %v72, 12
    %v1081 = vpop.permute.xlu0 %1080
    %1082 = vrot.lane.b32.xlu0 %v73, 12
    %v1083 = vpop.permute.xlu0 %1082
    %1084 = vrot.lane.b32.xlu0 %v74, 12
    %v1085 = vpop.permute.xlu0 %1084
    %1086 = vrot.lane.b32.xlu0 %v75, 12
    %v1087 = vpop.permute.xlu0 %1086
    %1088 = vrot.lane.b32.xlu0 %v76, 12
    %v1089 = vpop.permute.xlu0 %1088
    %1090 = vrot.lane.b32.xlu0 %v77, 12
    %v1091 = vpop.permute.xlu0 %1090
    %1092 = vrot.lane.b32.xlu0 %v78, 12
    %v1093 = vpop.permute.xlu0 %1092
    %1094 = vrot.lane.b32.xlu0 %v79, 12
    %v1095 = vpop.permute.xlu0 %1094
    %1096 = vrot.lane.b32.xlu0 %v80, 12
    %v1097 = vpop.permute.xlu0 %1096
    %1098 = vrot.lane.b32.xlu0 %v81, 12
    %v1099 = vpop.permute.xlu0 %1098
    %1100 = vrot.lane.b32.xlu0 %v82, 12
    %v1101 = vpop.permute.xlu0 %1100
    %1102 = vrot.lane.b32.xlu0 %v83, 12
    %v1103 = vpop.permute.xlu0 %1102
    %1104 = vrot.lane.b32.xlu0 %v84, 12
    %v1105 = vpop.permute.xlu0 %1104
    %1106 = vrot.lane.b32.xlu0 %v85, 12
    %v1107 = vpop.permute.xlu0 %1106
    %1108 = vrot.lane.b32.xlu0 %v86, 12
    %v1109 = vpop.permute.xlu0 %1108
    %1110 = vrot.lane.b32.xlu0 %v87, 12
    %v1111 = vpop.permute.xlu0 %1110
    %1112 = vrot.lane.b32.xlu0 %v88, 12
    %v1113 = vpop.permute.xlu0 %1112
    %1114 = vrot.lane.b32.xlu0 %v89, 12
    %v1115 = vpop.permute.xlu0 %1114
    %1116 = vrot.lane.b32.xlu0 %v90, 12
    %v1117 = vpop.permute.xlu0 %1116
    %1118 = vrot.lane.b32.xlu0 %v91, 12
    %v1119 = vpop.permute.xlu0 %1118
    %1120 = vrot.lane.b32.xlu0 %v92, 12
    %v1121 = vpop.permute.xlu0 %1120
    %1122 = vrot.lane.b32.xlu0 %v93, 12
    %v1123 = vpop.permute.xlu0 %1122
    %1124 = vrot.lane.b32.xlu0 %v94, 12
    %v1125 = vpop.permute.xlu0 %1124
    %1126 = vrot.lane.b32.xlu0 %v95, 12
    %v1127 = vpop.permute.xlu0 %1126
    %1128 = vrot.lane.b32.xlu0 %v96, 12
    %v1129 = vpop.permute.xlu0 %1128
    %1130 = vrot.lane.b32.xlu0 %v97, 12
    %v1131 = vpop.permute.xlu0 %1130
    %1132 = vrot.lane.b32.xlu0 %v98, 12
    %v1133 = vpop.permute.xlu0 %1132
    %1134 = vrot.lane.b32.xlu0 %v99, 12
    %v1135 = vpop.permute.xlu0 %1134
    %1136 = vrot.lane.b32.xlu0 %v100, 12
    %v1137 = vpop.permute.xlu0 %1136
    %1138 = vrot.lane.b32.xlu0 %v101, 12
    %v1139 = vpop.permute.xlu0 %1138
    %1140 = vrot.lane.b32.xlu0 %v102, 12
    %v1141 = vpop.permute.xlu0 %1140
    %1142 = vrot.lane.b32.xlu0 %v103, 12
    %v1143 = vpop.permute.xlu0 %1142
    %1144 = vrot.lane.b32.xlu0 %v104, 12
    %v1145 = vpop.permute.xlu0 %1144
    %1146 = vrot.lane.b32.xlu0 %v105, 12
    %v1147 = vpop.permute.xlu0 %1146
    %vm1213 = vcmask 121953
    %1214 = vst.msk [vmem:[#allocation2 - $0x1] sm:$0xfe] %vm1213, %v1019
    %vm1215 = vcmask 121952
    %1216 = vst.msk [vmem:[#allocation2 + $0x7] sm:$0xff] %vm1215, %v1021
    %1217 = vst.msk [vmem:[#allocation2 + $0xf] sm:$0xff] %vm1215, %v1023
    %1218 = vst.msk [vmem:[#allocation2 + $0x17] sm:$0xff] %vm1215, %v1025
    %1219 = vst.msk [vmem:[#allocation2 + $0x1f] sm:$0xff] %vm1215, %v1027
    %1220 = vst.msk [vmem:[#allocation2 + $0x27] sm:$0xff] %vm1215, %v1029
    %1221 = vst.msk [vmem:[#allocation2 + $0x2f] sm:$0xff] %vm1215, %v1031
    %1222 = vst.msk [vmem:[#allocation2 + $0x37] sm:$0xff] %vm1215, %v1033
    %1223 = vst.msk [vmem:[#allocation2 + $0x3f] sm:$0xff] %vm1215, %v1035
    %1224 = vst.msk [vmem:[#allocation2 + $0x47] sm:$0xff] %vm1215, %v1037
    %1225 = vst.msk [vmem:[#allocation2 + $0x4f] sm:$0xff] %vm1215, %v1039
    %1226 = vst.msk [vmem:[#allocation2 + $0x57] sm:$0xff] %vm1215, %v1041
    %1227 = vst.msk [vmem:[#allocation2 + $0x5f] sm:$0xff] %vm1215, %v1043
    %1228 = vst.msk [vmem:[#allocation2 + $0x67] sm:$0xff] %vm1215, %v1045
    %1229 = vst.msk [vmem:[#allocation2 + $0x6f] sm:$0xff] %vm1215, %v1047
    %1230 = vst.msk [vmem:[#allocation2 + $0x77] sm:$0xff] %vm1215, %v1049
    %1231 = vst.msk [vmem:[#allocation2 + $0x7f] sm:$0xff] %vm1215, %v1051
    %1232 = vst.msk [vmem:[#allocation2 + $0x87] sm:$0xff] %vm1215, %v1053
    %1233 = vst.msk [vmem:[#allocation2 + $0x8f] sm:$0xff] %vm1215, %v1055
    %1234 = vst.msk [vmem:[#allocation2 + $0x97] sm:$0xff] %vm1215, %v1057
    %1235 = vst.msk [vmem:[#allocation2 + $0x9f] sm:$0xff] %vm1215, %v1059
    %1236 = vst.msk [vmem:[#allocation2 + $0xa7] sm:$0xff] %vm1215, %v1061
    %1237 = vst.msk [vmem:[#allocation2 + $0xaf] sm:$0xff] %vm1215, %v1063
    %1238 = vst.msk [vmem:[#allocation2 + $0xb7] sm:$0xff] %vm1215, %v1065
    %1239 = vst.msk [vmem:[#allocation2 + $0xbf] sm:$0xff] %vm1215, %v1067
    %1240 = vst.msk [vmem:[#allocation2 + $0xc7] sm:$0xff] %vm1215, %v1069
    %1241 = vst.msk [vmem:[#allocation2 + $0xcf] sm:$0xff] %vm1215, %v1071
    %1242 = vst.msk [vmem:[#allocation2 + $0xd7] sm:$0xff] %vm1215, %v1073
    %1243 = vst.msk [vmem:[#allocation2 + $0xdf] sm:$0xff] %vm1215, %v1075
    %1244 = vst.msk [vmem:[#allocation2 + $0xe7] sm:$0xff] %vm1215, %v1077
    %1245 = vst.msk [vmem:[#allocation2 + $0xef] sm:$0xff] %vm1215, %v1079
    %1246 = vst.msk [vmem:[#allocation2 + $0xf7] sm:$0xff] %vm1215, %v1081
    %1247 = vst.msk [vmem:[#allocation2 + $0xff] sm:$0xff] %vm1215, %v1083
    %1248 = vst.msk [vmem:[#allocation2 + $0x107] sm:$0xff] %vm1215, %v1085
    %1249 = vst.msk [vmem:[#allocation2 + $0x10f] sm:$0xff] %vm1215, %v1087
    %1250 = vst.msk [vmem:[#allocation2 + $0x117] sm:$0xff] %vm1215, %v1089
    %1251 = vst.msk [vmem:[#allocation2 + $0x11f] sm:$0xff] %vm1215, %v1091
    %1252 = vst.msk [vmem:[#allocation2 + $0x127] sm:$0xff] %vm1215, %v1093
    %1253 = vst.msk [vmem:[#allocation2 + $0x12f] sm:$0xff] %vm1215, %v1095
    %1254 = vst.msk [vmem:[#allocation2 + $0x137] sm:$0xff] %vm1215, %v1097
    %1255 = vst.msk [vmem:[#allocation2 + $0x13f] sm:$0xff] %vm1215, %v1099
    %1256 = vst.msk [vmem:[#allocation2 + $0x147] sm:$0xff] %vm1215, %v1101
    %1257 = vst.msk [vmem:[#allocation2 + $0x14f] sm:$0xff] %vm1215, %v1103
    %1258 = vst.msk [vmem:[#allocation2 + $0x157] sm:$0xff] %vm1215, %v1105
    %1259 = vst.msk [vmem:[#allocation2 + $0x15f] sm:$0xff] %vm1215, %v1107
    %1260 = vst.msk [vmem:[#allocation2 + $0x167] sm:$0xff] %vm1215, %v1109
    %1261 = vst.msk [vmem:[#allocation2 + $0x16f] sm:$0xff] %vm1215, %v1111
    %1262 = vst.msk [vmem:[#allocation2 + $0x177] sm:$0xff] %vm1215, %v1113
    %1263 = vst.msk [vmem:[#allocation2 + $0x17f] sm:$0xff] %vm1215, %v1115
    %1264 = vst.msk [vmem:[#allocation2 + $0x187] sm:$0xff] %vm1215, %v1117
    %1265 = vst.msk [vmem:[#allocation2 + $0x18f] sm:$0xff] %vm1215, %v1119
    %1266 = vst.msk [vmem:[#allocation2 + $0x197] sm:$0xff] %vm1215, %v1121
    %1267 = vst.msk [vmem:[#allocation2 + $0x19f] sm:$0xff] %vm1215, %v1123
    %1268 = vst.msk [vmem:[#allocation2 + $0x1a7] sm:$0xff] %vm1215, %v1125
    %1269 = vst.msk [vmem:[#allocation2 + $0x1af] sm:$0xff] %vm1215, %v1127
    %1270 = vst.msk [vmem:[#allocation2 + $0x1b7] sm:$0xff] %vm1215, %v1129
    %1271 = vst.msk [vmem:[#allocation2 + $0x1bf] sm:$0xff] %vm1215, %v1131
    %1272 = vst.msk [vmem:[#allocation2 + $0x1c7] sm:$0xff] %vm1215, %v1133
    %1273 = vst.msk [vmem:[#allocation2 + $0x1cf] sm:$0xff] %vm1215, %v1135
    %1274 = vst.msk [vmem:[#allocation2 + $0x1d7] sm:$0xff] %vm1215, %v1137
    %1275 = vst.msk [vmem:[#allocation2 + $0x1df] sm:$0xff] %vm1215, %v1139
    %1276 = vst.msk [vmem:[#allocation2 + $0x1e7] sm:$0xff] %vm1215, %v1141
    %1277 = vst.msk [vmem:[#allocation2 + $0x1ef] sm:$0xff] %vm1215, %v1143
    %1278 = vst.msk [vmem:[#allocation2 + $0x1f7] sm:$0xff] %vm1215, %v1145
    %vm1279 = vcmask 114784
    %1280 = vst.msk [vmem:[#allocation2 + $0x1ff] sm:$0x1] %vm1279, %v1147
    %1282 = vrot.lane.b32.xlu0 %v43, 21
    %v1283 = vpop.permute.xlu0 %1282
    %1284 = vrot.lane.b32.xlu0 %v44, 21
    %v1285 = vpop.permute.xlu0 %1284
    %1286 = vrot.lane.b32.xlu0 %v45, 21
    %v1287 = vpop.permute.xlu0 %1286
    %1288 = vrot.lane.b32.xlu0 %v46, 21
    %v1289 = vpop.permute.xlu0 %1288
    %1290 = vrot.lane.b32.xlu0 %v47, 21
    %v1291 = vpop.permute.xlu0 %1290
    %1292 = vrot.lane.b32.xlu0 %v48, 21
    %v1293 = vpop.permute.xlu0 %1292
    %1294 = vrot.lane.b32.xlu0 %v49, 21
    %v1295 = vpop.permute.xlu0 %1294
    %1296 = vrot.lane.b32.xlu0 %v50, 21
    %v1297 = vpop.permute.xlu0 %1296
    %1298 = vrot.lane.b32.xlu0 %v51, 21
    %v1299 = vpop.permute.xlu0 %1298
    %1300 = vrot.lane.b32.xlu0 %v52, 21
    %v1301 = vpop.permute.xlu0 %1300
    %1302 = vrot.lane.b32.xlu0 %v53, 21
    %v1303 = vpop.permute.xlu0 %1302
    %1304 = vrot.lane.b32.xlu0 %v54, 21
    %v1305 = vpop.permute.xlu0 %1304
    %1306 = vrot.lane.b32.xlu0 %v55, 21
    %v1307 = vpop.permute.xlu0 %1306
    %1308 = vrot.lane.b32.xlu0 %v56, 21
    %v1309 = vpop.permute.xlu0 %1308
    %1310 = vrot.lane.b32.xlu0 %v57, 21
    %v1311 = vpop.permute.xlu0 %1310
    %1312 = vrot.lane.b32.xlu0 %v58, 21
    %v1313 = vpop.permute.xlu0 %1312
    %1314 = vrot.lane.b32.xlu0 %v59, 21
    %v1315 = vpop.permute.xlu0 %1314
    %1316 = vrot.lane.b32.xlu0 %v60, 21
    %v1317 = vpop.permute.xlu0 %1316
    %1318 = vrot.lane.b32.xlu0 %v61, 21
    %v1319 = vpop.permute.xlu0 %1318
    %1320 = vrot.lane.b32.xlu0 %v62, 21
    %v1321 = vpop.permute.xlu0 %1320
    %1322 = vrot.lane.b32.xlu0 %v63, 21
    %v1323 = vpop.permute.xlu0 %1322
    %1324 = vrot.lane.b32.xlu0 %v64, 21
    %v1325 = vpop.permute.xlu0 %1324
    %1326 = vrot.lane.b32.xlu0 %v65, 21
    %v1327 = vpop.permute.xlu0 %1326
    %1328 = vrot.lane.b32.xlu0 %v66, 21
    %v1329 = vpop.permute.xlu0 %1328
    %1330 = vrot.lane.b32.xlu0 %v67, 21
    %v1331 = vpop.permute.xlu0 %1330
    %1332 = vrot.lane.b32.xlu0 %v68, 21
    %v1333 = vpop.permute.xlu0 %1332
    %1334 = vrot.lane.b32.xlu0 %v69, 21
    %v1335 = vpop.permute.xlu0 %1334
    %1336 = vrot.lane.b32.xlu0 %v70, 21
    %v1337 = vpop.permute.xlu0 %1336
    %1338 = vrot.lane.b32.xlu0 %v71, 21
    %v1339 = vpop.permute.xlu0 %1338
    %1340 = vrot.lane.b32.xlu0 %v72, 21
    %v1341 = vpop.permute.xlu0 %1340
    %1342 = vrot.lane.b32.xlu0 %v73, 21
    %v1343 = vpop.permute.xlu0 %1342
    %1344 = vrot.lane.b32.xlu0 %v74, 21
    %v1345 = vpop.permute.xlu0 %1344
    %1346 = vrot.lane.b32.xlu0 %v75, 21
    %v1347 = vpop.permute.xlu0 %1346
    %1348 = vrot.lane.b32.xlu0 %v76, 21
    %v1349 = vpop.permute.xlu0 %1348
    %1350 = vrot.lane.b32.xlu0 %v77, 21
    %v1351 = vpop.permute.xlu0 %1350
    %1352 = vrot.lane.b32.xlu0 %v78, 21
    %v1353 = vpop.permute.xlu0 %1352
    %1354 = vrot.lane.b32.xlu0 %v79, 21
    %v1355 = vpop.permute.xlu0 %1354
    %1356 = vrot.lane.b32.xlu0 %v80, 21
    %v1357 = vpop.permute.xlu0 %1356
    %1358 = vrot.lane.b32.xlu0 %v81, 21
    %v1359 = vpop.permute.xlu0 %1358
    %1360 = vrot.lane.b32.xlu0 %v82, 21
    %v1361 = vpop.permute.xlu0 %1360
    %1362 = vrot.lane.b32.xlu0 %v83, 21
    %v1363 = vpop.permute.xlu0 %1362
    %1364 = vrot.lane.b32.xlu0 %v84, 21
    %v1365 = vpop.permute.xlu0 %1364
    %1366 = vrot.lane.b32.xlu0 %v85, 21
    %v1367 = vpop.permute.xlu0 %1366
    %1368 = vrot.lane.b32.xlu0 %v86, 21
    %v1369 = vpop.permute.xlu0 %1368
    %1370 = vrot.lane.b32.xlu0 %v87, 21
    %v1371 = vpop.permute.xlu0 %1370
    %1372 = vrot.lane.b32.xlu0 %v88, 21
    %v1373 = vpop.permute.xlu0 %1372
    %1374 = vrot.lane.b32.xlu0 %v89, 21
    %v1375 = vpop.permute.xlu0 %1374
    %1376 = vrot.lane.b32.xlu0 %v90, 21
    %v1377 = vpop.permute.xlu0 %1376
    %1378 = vrot.lane.b32.xlu0 %v91, 21
    %v1379 = vpop.permute.xlu0 %1378
    %1380 = vrot.lane.b32.xlu0 %v92, 21
    %v1381 = vpop.permute.xlu0 %1380
    %1382 = vrot.lane.b32.xlu0 %v93, 21
    %v1383 = vpop.permute.xlu0 %1382
    %1384 = vrot.lane.b32.xlu0 %v94, 21
    %v1385 = vpop.permute.xlu0 %1384
    %1386 = vrot.lane.b32.xlu0 %v95, 21
    %v1387 = vpop.permute.xlu0 %1386
    %1388 = vrot.lane.b32.xlu0 %v96, 21
    %v1389 = vpop.permute.xlu0 %1388
    %1390 = vrot.lane.b32.xlu0 %v97, 21
    %v1391 = vpop.permute.xlu0 %1390
    %1392 = vrot.lane.b32.xlu0 %v98, 21
    %v1393 = vpop.permute.xlu0 %1392
    %1394 = vrot.lane.b32.xlu0 %v99, 21
    %v1395 = vpop.permute.xlu0 %1394
    %1396 = vrot.lane.b32.xlu0 %v100, 21
    %v1397 = vpop.permute.xlu0 %1396
    %1398 = vrot.lane.b32.xlu0 %v101, 21
    %v1399 = vpop.permute.xlu0 %1398
    %1400 = vrot.lane.b32.xlu0 %v102, 21
    %v1401 = vpop.permute.xlu0 %1400
    %1402 = vrot.lane.b32.xlu0 %v103, 21
    %v1403 = vpop.permute.xlu0 %1402
    %1404 = vrot.lane.b32.xlu0 %v104, 21
    %v1405 = vpop.permute.xlu0 %1404
    %1406 = vrot.lane.b32.xlu0 %v105, 21
    %v1407 = vpop.permute.xlu0 %1406
    %1408 = vrot.lane.b32.xlu0 %v106, 21
    %v1409 = vpop.permute.xlu0 %1408
    %1410 = vrot.lane.b32.xlu0 %v107, 21
    %v1411 = vpop.permute.xlu0 %1410
    %vm1477 = vcmask 195753
    %1478 = vst.msk [vmem:[#allocation2 - $0x1] sm:$0xfe] %vm1477, %v1283
    %vm1479 = vcmask 195752
    %1480 = vst.msk [vmem:[#allocation2 + $0x7] sm:$0xff] %vm1479, %v1285
    %1481 = vst.msk [vmem:[#allocation2 + $0xf] sm:$0xff] %vm1479, %v1287
    %1482 = vst.msk [vmem:[#allocation2 + $0x17] sm:$0xff] %vm1479, %v1289
    %1483 = vst.msk [vmem:[#allocation2 + $0x1f] sm:$0xff] %vm1479, %v1291
    %1484 = vst.msk [vmem:[#allocation2 + $0x27] sm:$0xff] %vm1479, %v1293
    %1485 = vst.msk [vmem:[#allocation2 + $0x2f] sm:$0xff] %vm1479, %v1295
    %1486 = vst.msk [vmem:[#allocation2 + $0x37] sm:$0xff] %vm1479, %v1297
    %1487 = vst.msk [vmem:[#allocation2 + $0x3f] sm:$0xff] %vm1479, %v1299
    %1488 = vst.msk [vmem:[#allocation2 + $0x47] sm:$0xff] %vm1479, %v1301
    %1489 = vst.msk [vmem:[#allocation2 + $0x4f] sm:$0xff] %vm1479, %v1303
    %1490 = vst.msk [vmem:[#allocation2 + $0x57] sm:$0xff] %vm1479, %v1305
    %1491 = vst.msk [vmem:[#allocation2 + $0x5f] sm:$0xff] %vm1479, %v1307
    %1492 = vst.msk [vmem:[#allocation2 + $0x67] sm:$0xff] %vm1479, %v1309
    %1493 = vst.msk [vmem:[#allocation2 + $0x6f] sm:$0xff] %vm1479, %v1311
    %1494 = vst.msk [vmem:[#allocation2 + $0x77] sm:$0xff] %vm1479, %v1313
    %1495 = vst.msk [vmem:[#allocation2 + $0x7f] sm:$0xff] %vm1479, %v1315
    %1496 = vst.msk [vmem:[#allocation2 + $0x87] sm:$0xff] %vm1479, %v1317
    %1497 = vst.msk [vmem:[#allocation2 + $0x8f] sm:$0xff] %vm1479, %v1319
    %1498 = vst.msk [vmem:[#allocation2 + $0x97] sm:$0xff] %vm1479, %v1321
    %1499 = vst.msk [vmem:[#allocation2 + $0x9f] sm:$0xff] %vm1479, %v1323
    %1500 = vst.msk [vmem:[#allocation2 + $0xa7] sm:$0xff] %vm1479, %v1325
    %1501 = vst.msk [vmem:[#allocation2 + $0xaf] sm:$0xff] %vm1479, %v1327
    %1502 = vst.msk [vmem:[#allocation2 + $0xb7] sm:$0xff] %vm1479, %v1329
    %1503 = vst.msk [vmem:[#allocation2 + $0xbf] sm:$0xff] %vm1479, %v1331
    %1504 = vst.msk [vmem:[#allocation2 + $0xc7] sm:$0xff] %vm1479, %v1333
    %1505 = vst.msk [vmem:[#allocation2 + $0xcf] sm:$0xff] %vm1479, %v1335
    %1506 = vst.msk [vmem:[#allocation2 + $0xd7] sm:$0xff] %vm1479, %v1337
    %1507 = vst.msk [vmem:[#allocation2 + $0xdf] sm:$0xff] %vm1479, %v1339
    %1508 = vst.msk [vmem:[#allocation2 + $0xe7] sm:$0xff] %vm1479, %v1341
    %1509 = vst.msk [vmem:[#allocation2 + $0xef] sm:$0xff] %vm1479, %v1343
    %1510 = vst.msk [vmem:[#allocation2 + $0xf7] sm:$0xff] %vm1479, %v1345
    %1511 = vst.msk [vmem:[#allocation2 + $0xff] sm:$0xff] %vm1479, %v1347
    %1512 = vst.msk [vmem:[#allocation2 + $0x107] sm:$0xff] %vm1479, %v1349
    %1513 = vst.msk [vmem:[#allocation2 + $0x10f] sm:$0xff] %vm1479, %v1351
    %1514 = vst.msk [vmem:[#allocation2 + $0x117] sm:$0xff] %vm1479, %v1353
    %1515 = vst.msk [vmem:[#allocation2 + $0x11f] sm:$0xff] %vm1479, %v1355
    %1516 = vst.msk [vmem:[#allocation2 + $0x127] sm:$0xff] %vm1479, %v1357
    %1517 = vst.msk [vmem:[#allocation2 + $0x12f] sm:$0xff] %vm1479, %v1359
    %1518 = vst.msk [vmem:[#allocation2 + $0x137] sm:$0xff] %vm1479, %v1361
    %1519 = vst.msk [vmem:[#allocation2 + $0x13f] sm:$0xff] %vm1479, %v1363
    %1520 = vst.msk [vmem:[#allocation2 + $0x147] sm:$0xff] %vm1479, %v1365
    %1521 = vst.msk [vmem:[#allocation2 + $0x14f] sm:$0xff] %vm1479, %v1367
    %1522 = vst.msk [vmem:[#allocation2 + $0x157] sm:$0xff] %vm1479, %v1369
    %1523 = vst.msk [vmem:[#allocation2 + $0x15f] sm:$0xff] %vm1479, %v1371
    %1524 = vst.msk [vmem:[#allocation2 + $0x167] sm:$0xff] %vm1479, %v1373
    %1525 = vst.msk [vmem:[#allocation2 + $0x16f] sm:$0xff] %vm1479, %v1375
    %1526 = vst.msk [vmem:[#allocation2 + $0x177] sm:$0xff] %vm1479, %v1377
    %1527 = vst.msk [vmem:[#allocation2 + $0x17f] sm:$0xff] %vm1479, %v1379
    %1528 = vst.msk [vmem:[#allocation2 + $0x187] sm:$0xff] %vm1479, %v1381
    %1529 = vst.msk [vmem:[#allocation2 + $0x18f] sm:$0xff] %vm1479, %v1383
    %1530 = vst.msk [vmem:[#allocation2 + $0x197] sm:$0xff] %vm1479, %v1385
    %1531 = vst.msk [vmem:[#allocation2 + $0x19f] sm:$0xff] %vm1479, %v1387
    %1532 = vst.msk [vmem:[#allocation2 + $0x1a7] sm:$0xff] %vm1479, %v1389
    %1533 = vst.msk [vmem:[#allocation2 + $0x1af] sm:$0xff] %vm1479, %v1391
    %1534 = vst.msk [vmem:[#allocation2 + $0x1b7] sm:$0xff] %vm1479, %v1393
    %1535 = vst.msk [vmem:[#allocation2 + $0x1bf] sm:$0xff] %vm1479, %v1395
    %1536 = vst.msk [vmem:[#allocation2 + $0x1c7] sm:$0xff] %vm1479, %v1397
    %1537 = vst.msk [vmem:[#allocation2 + $0x1cf] sm:$0xff] %vm1479, %v1399
    %1538 = vst.msk [vmem:[#allocation2 + $0x1d7] sm:$0xff] %vm1479, %v1401
    %1539 = vst.msk [vmem:[#allocation2 + $0x1df] sm:$0xff] %vm1479, %v1403
    %1540 = vst.msk [vmem:[#allocation2 + $0x1e7] sm:$0xff] %vm1479, %v1405
    %1541 = vst.msk [vmem:[#allocation2 + $0x1ef] sm:$0xff] %vm1479, %v1407
    %1542 = vst.msk [vmem:[#allocation2 + $0x1f7] sm:$0xff] %vm1479, %v1409
    %vm1543 = vcmask 188584
    %1544 = vst.msk [vmem:[#allocation2 + $0x1ff] sm:$0x1] %vm1543, %v1411
    %1545 = vrot.lane.b32.xlu0 %v39, 6
    %v1546 = vpop.permute.xlu0 %1545
    %1547 = vrot.lane.b32.xlu0 %v40, 6
    %v1548 = vpop.permute.xlu0 %1547
    %1549 = vrot.lane.b32.xlu0 %v41, 6
    %v1550 = vpop.permute.xlu0 %1549
    %1551 = vrot.lane.b32.xlu0 %v42, 6
    %v1552 = vpop.permute.xlu0 %1551
    %1553 = vrot.lane.b32.xlu0 %v43, 6
    %v1554 = vpop.permute.xlu0 %1553
    %1555 = vrot.lane.b32.xlu0 %v44, 6
    %v1556 = vpop.permute.xlu0 %1555
    %1557 = vrot.lane.b32.xlu0 %v45, 6
    %v1558 = vpop.permute.xlu0 %1557
    %1559 = vrot.lane.b32.xlu0 %v46, 6
    %v1560 = vpop.permute.xlu0 %1559
    %1561 = vrot.lane.b32.xlu0 %v47, 6
    %v1562 = vpop.permute.xlu0 %1561
    %1563 = vrot.lane.b32.xlu0 %v48, 6
    %v1564 = vpop.permute.xlu0 %1563
    %1565 = vrot.lane.b32.xlu0 %v49, 6
    %v1566 = vpop.permute.xlu0 %1565
    %1567 = vrot.lane.b32.xlu0 %v50, 6
    %v1568 = vpop.permute.xlu0 %1567
    %1569 = vrot.lane.b32.xlu0 %v51, 6
    %v1570 = vpop.permute.xlu0 %1569
    %1571 = vrot.lane.b32.xlu0 %v52, 6
    %v1572 = vpop.permute.xlu0 %1571
    %1573 = vrot.lane.b32.xlu0 %v53, 6
    %v1574 = vpop.permute.xlu0 %1573
    %1575 = vrot.lane.b32.xlu0 %v54, 6
    %v1576 = vpop.permute.xlu0 %1575
    %1577 = vrot.lane.b32.xlu0 %v55, 6
    %v1578 = vpop.permute.xlu0 %1577
    %1579 = vrot.lane.b32.xlu0 %v56, 6
    %v1580 = vpop.permute.xlu0 %1579
    %1581 = vrot.lane.b32.xlu0 %v57, 6
    %v1582 = vpop.permute.xlu0 %1581
    %1583 = vrot.lane.b32.xlu0 %v58, 6
    %v1584 = vpop.permute.xlu0 %1583
    %1585 = vrot.lane.b32.xlu0 %v59, 6
    %v1586 = vpop.permute.xlu0 %1585
    %1587 = vrot.lane.b32.xlu0 %v60, 6
    %v1588 = vpop.permute.xlu0 %1587
    %1589 = vrot.lane.b32.xlu0 %v61, 6
    %v1590 = vpop.permute.xlu0 %1589
    %1591 = vrot.lane.b32.xlu0 %v62, 6
    %v1592 = vpop.permute.xlu0 %1591
    %1593 = vrot.lane.b32.xlu0 %v63, 6
    %v1594 = vpop.permute.xlu0 %1593
    %1595 = vrot.lane.b32.xlu0 %v64, 6
    %v1596 = vpop.permute.xlu0 %1595
    %1597 = vrot.lane.b32.xlu0 %v65, 6
    %v1598 = vpop.permute.xlu0 %1597
    %1599 = vrot.lane.b32.xlu0 %v66, 6
    %v1600 = vpop.permute.xlu0 %1599
    %1601 = vrot.lane.b32.xlu0 %v67, 6
    %v1602 = vpop.permute.xlu0 %1601
    %1603 = vrot.lane.b32.xlu0 %v68, 6
    %v1604 = vpop.permute.xlu0 %1603
    %1605 = vrot.lane.b32.xlu0 %v69, 6
    %v1606 = vpop.permute.xlu0 %1605
    %1607 = vrot.lane.b32.xlu0 %v70, 6
    %v1608 = vpop.permute.xlu0 %1607
    %1609 = vrot.lane.b32.xlu0 %v71, 6
    %v1610 = vpop.permute.xlu0 %1609
    %1611 = vrot.lane.b32.xlu0 %v72, 6
    %v1612 = vpop.permute.xlu0 %1611
    %1613 = vrot.lane.b32.xlu0 %v73, 6
    %v1614 = vpop.permute.xlu0 %1613
    %1615 = vrot.lane.b32.xlu0 %v74, 6
    %v1616 = vpop.permute.xlu0 %1615
    %1617 = vrot.lane.b32.xlu0 %v75, 6
    %v1618 = vpop.permute.xlu0 %1617
    %1619 = vrot.lane.b32.xlu0 %v76, 6
    %v1620 = vpop.permute.xlu0 %1619
    %1621 = vrot.lane.b32.xlu0 %v77, 6
    %v1622 = vpop.permute.xlu0 %1621
    %1623 = vrot.lane.b32.xlu0 %v78, 6
    %v1624 = vpop.permute.xlu0 %1623
    %1625 = vrot.lane.b32.xlu0 %v79, 6
    %v1626 = vpop.permute.xlu0 %1625
    %1627 = vrot.lane.b32.xlu0 %v80, 6
    %v1628 = vpop.permute.xlu0 %1627
    %1629 = vrot.lane.b32.xlu0 %v81, 6
    %v1630 = vpop.permute.xlu0 %1629
    %1631 = vrot.lane.b32.xlu0 %v82, 6
    %v1632 = vpop.permute.xlu0 %1631
    %1633 = vrot.lane.b32.xlu0 %v83, 6
    %v1634 = vpop.permute.xlu0 %1633
    %1635 = vrot.lane.b32.xlu0 %v84, 6
    %v1636 = vpop.permute.xlu0 %1635
    %1637 = vrot.lane.b32.xlu0 %v85, 6
    %v1638 = vpop.permute.xlu0 %1637
    %1639 = vrot.lane.b32.xlu0 %v86, 6
    %v1640 = vpop.permute.xlu0 %1639
    %1641 = vrot.lane.b32.xlu0 %v87, 6
    %v1642 = vpop.permute.xlu0 %1641
    %1643 = vrot.lane.b32.xlu0 %v88, 6
    %v1644 = vpop.permute.xlu0 %1643
    %1645 = vrot.lane.b32.xlu0 %v89, 6
    %v1646 = vpop.permute.xlu0 %1645
    %1647 = vrot.lane.b32.xlu0 %v90, 6
    %v1648 = vpop.permute.xlu0 %1647
    %1649 = vrot.lane.b32.xlu0 %v91, 6
    %v1650 = vpop.permute.xlu0 %1649
    %1651 = vrot.lane.b32.xlu0 %v92, 6
    %v1652 = vpop.permute.xlu0 %1651
    %1653 = vrot.lane.b32.xlu0 %v93, 6
    %v1654 = vpop.permute.xlu0 %1653
    %1655 = vrot.lane.b32.xlu0 %v94, 6
    %v1656 = vpop.permute.xlu0 %1655
    %1657 = vrot.lane.b32.xlu0 %v95, 6
    %v1658 = vpop.permute.xlu0 %1657
    %1659 = vrot.lane.b32.xlu0 %v96, 6
    %v1660 = vpop.permute.xlu0 %1659
    %1661 = vrot.lane.b32.xlu0 %v97, 6
    %v1662 = vpop.permute.xlu0 %1661
    %1663 = vrot.lane.b32.xlu0 %v98, 6
    %v1664 = vpop.permute.xlu0 %1663
    %1665 = vrot.lane.b32.xlu0 %v99, 6
    %v1666 = vpop.permute.xlu0 %1665
    %1667 = vrot.lane.b32.xlu0 %v100, 6
    %v1668 = vpop.permute.xlu0 %1667
    %1669 = vrot.lane.b32.xlu0 %v101, 6
    %v1670 = vpop.permute.xlu0 %1669
    %1671 = vrot.lane.b32.xlu0 %v102, 6
    %v1672 = vpop.permute.xlu0 %1671
    %1673 = vrot.lane.b32.xlu0 %v103, 6
    %v1674 = vpop.permute.xlu0 %1673
    %vm1740 = vcmask 72754
    %1741 = vst.msk [vmem:[#allocation2 - $0x2] sm:$0xfc] %vm1740, %v1546
    %vm1742 = vcmask 72752
    %1743 = vst.msk [vmem:[#allocation2 + $0x6] sm:$0xff] %vm1742, %v1548
    %1744 = vst.msk [vmem:[#allocation2 + $0xe] sm:$0xff] %vm1742, %v1550
    %1745 = vst.msk [vmem:[#allocation2 + $0x16] sm:$0xff] %vm1742, %v1552
    %1746 = vst.msk [vmem:[#allocation2 + $0x1e] sm:$0xff] %vm1742, %v1554
    %1747 = vst.msk [vmem:[#allocation2 + $0x26] sm:$0xff] %vm1742, %v1556
    %1748 = vst.msk [vmem:[#allocation2 + $0x2e] sm:$0xff] %vm1742, %v1558
    %1749 = vst.msk [vmem:[#allocation2 + $0x36] sm:$0xff] %vm1742, %v1560
    %1750 = vst.msk [vmem:[#allocation2 + $0x3e] sm:$0xff] %vm1742, %v1562
    %1751 = vst.msk [vmem:[#allocation2 + $0x46] sm:$0xff] %vm1742, %v1564
    %1752 = vst.msk [vmem:[#allocation2 + $0x4e] sm:$0xff] %vm1742, %v1566
    %1753 = vst.msk [vmem:[#allocation2 + $0x56] sm:$0xff] %vm1742, %v1568
    %1754 = vst.msk [vmem:[#allocation2 + $0x5e] sm:$0xff] %vm1742, %v1570
    %1755 = vst.msk [vmem:[#allocation2 + $0x66] sm:$0xff] %vm1742, %v1572
    %1756 = vst.msk [vmem:[#allocation2 + $0x6e] sm:$0xff] %vm1742, %v1574
    %1757 = vst.msk [vmem:[#allocation2 + $0x76] sm:$0xff] %vm1742, %v1576
    %1758 = vst.msk [vmem:[#allocation2 + $0x7e] sm:$0xff] %vm1742, %v1578
    %1759 = vst.msk [vmem:[#allocation2 + $0x86] sm:$0xff] %vm1742, %v1580
    %1760 = vst.msk [vmem:[#allocation2 + $0x8e] sm:$0xff] %vm1742, %v1582
    %1761 = vst.msk [vmem:[#allocation2 + $0x96] sm:$0xff] %vm1742, %v1584
    %1762 = vst.msk [vmem:[#allocation2 + $0x9e] sm:$0xff] %vm1742, %v1586
    %1763 = vst.msk [vmem:[#allocation2 + $0xa6] sm:$0xff] %vm1742, %v1588
    %1764 = vst.msk [vmem:[#allocation2 + $0xae] sm:$0xff] %vm1742, %v1590
    %1765 = vst.msk [vmem:[#allocation2 + $0xb6] sm:$0xff] %vm1742, %v1592
    %1766 = vst.msk [vmem:[#allocation2 + $0xbe] sm:$0xff] %vm1742, %v1594
    %1767 = vst.msk [vmem:[#allocation2 + $0xc6] sm:$0xff] %vm1742, %v1596
    %1768 = vst.msk [vmem:[#allocation2 + $0xce] sm:$0xff] %vm1742, %v1598
    %1769 = vst.msk [vmem:[#allocation2 + $0xd6] sm:$0xff] %vm1742, %v1600
    %1770 = vst.msk [vmem:[#allocation2 + $0xde] sm:$0xff] %vm1742, %v1602
    %1771 = vst.msk [vmem:[#allocation2 + $0xe6] sm:$0xff] %vm1742, %v1604
    %1772 = vst.msk [vmem:[#allocation2 + $0xee] sm:$0xff] %vm1742, %v1606
    %1773 = vst.msk [vmem:[#allocation2 + $0xf6] sm:$0xff] %vm1742, %v1608
    %1774 = vst.msk [vmem:[#allocation2 + $0xfe] sm:$0xff] %vm1742, %v1610
    %1775 = vst.msk [vmem:[#allocation2 + $0x106] sm:$0xff] %vm1742, %v1612
    %1776 = vst.msk [vmem:[#allocation2 + $0x10e] sm:$0xff] %vm1742, %v1614
    %1777 = vst.msk [vmem:[#allocation2 + $0x116] sm:$0xff] %vm1742, %v1616
    %1778 = vst.msk [vmem:[#allocation2 + $0x11e] sm:$0xff] %vm1742, %v1618
    %1779 = vst.msk [vmem:[#allocation2 + $0x126] sm:$0xff] %vm1742, %v1620
    %1780 = vst.msk [vmem:[#allocation2 + $0x12e] sm:$0xff] %vm1742, %v1622
    %1781 = vst.msk [vmem:[#allocation2 + $0x136] sm:$0xff] %vm1742, %v1624
    %1782 = vst.msk [vmem:[#allocation2 + $0x13e] sm:$0xff] %vm1742, %v1626
    %1783 = vst.msk [vmem:[#allocation2 + $0x146] sm:$0xff] %vm1742, %v1628
    %1784 = vst.msk [vmem:[#allocation2 + $0x14e] sm:$0xff] %vm1742, %v1630
    %1785 = vst.msk [vmem:[#allocation2 + $0x156] sm:$0xff] %vm1742, %v1632
    %1786 = vst.msk [vmem:[#allocation2 + $0x15e] sm:$0xff] %vm1742, %v1634
    %1787 = vst.msk [vmem:[#allocation2 + $0x166] sm:$0xff] %vm1742, %v1636
    %1788 = vst.msk [vmem:[#allocation2 + $0x16e] sm:$0xff] %vm1742, %v1638
    %1789 = vst.msk [vmem:[#allocation2 + $0x176] sm:$0xff] %vm1742, %v1640
    %1790 = vst.msk [vmem:[#allocation2 + $0x17e] sm:$0xff] %vm1742, %v1642
    %1791 = vst.msk [vmem:[#allocation2 + $0x186] sm:$0xff] %vm1742, %v1644
    %1792 = vst.msk [vmem:[#allocation2 + $0x18e] sm:$0xff] %vm1742, %v1646
    %1793 = vst.msk [vmem:[#allocation2 + $0x196] sm:$0xff] %vm1742, %v1648
    %1794 = vst.msk [vmem:[#allocation2 + $0x19e] sm:$0xff] %vm1742, %v1650
    %1795 = vst.msk [vmem:[#allocation2 + $0x1a6] sm:$0xff] %vm1742, %v1652
    %1796 = vst.msk [vmem:[#allocation2 + $0x1ae] sm:$0xff] %vm1742, %v1654
    %1797 = vst.msk [vmem:[#allocation2 + $0x1b6] sm:$0xff] %vm1742, %v1656
    %1798 = vst.msk [vmem:[#allocation2 + $0x1be] sm:$0xff] %vm1742, %v1658
    %1799 = vst.msk [vmem:[#allocation2 + $0x1c6] sm:$0xff] %vm1742, %v1660
    %1800 = vst.msk [vmem:[#allocation2 + $0x1ce] sm:$0xff] %vm1742, %v1662
    %1801 = vst.msk [vmem:[#allocation2 + $0x1d6] sm:$0xff] %vm1742, %v1664
    %1802 = vst.msk [vmem:[#allocation2 + $0x1de] sm:$0xff] %vm1742, %v1666
    %1803 = vst.msk [vmem:[#allocation2 + $0x1e6] sm:$0xff] %vm1742, %v1668
    %1804 = vst.msk [vmem:[#allocation2 + $0x1ee] sm:$0xff] %vm1742, %v1670
    %1805 = vst.msk [vmem:[#allocation2 + $0x1f6] sm:$0xff] %vm1742, %v1672
    %vm1806 = vcmask 66608
    %1807 = vst.msk [vmem:[#allocation2 + $0x1fe] sm:$0x3] %vm1806, %v1674
    %1808 = vrot.lane.b32.xlu0 %v41, 15
    %v1809 = vpop.permute.xlu0 %1808
    %1810 = vrot.lane.b32.xlu0 %v42, 15
    %v1811 = vpop.permute.xlu0 %1810
    %1812 = vrot.lane.b32.xlu0 %v43, 15
    %v1813 = vpop.permute.xlu0 %1812
    %1814 = vrot.lane.b32.xlu0 %v44, 15
    %v1815 = vpop.permute.xlu0 %1814
    %1816 = vrot.lane.b32.xlu0 %v45, 15
    %v1817 = vpop.permute.xlu0 %1816
    %1818 = vrot.lane.b32.xlu0 %v46, 15
    %v1819 = vpop.permute.xlu0 %1818
    %1820 = vrot.lane.b32.xlu0 %v47, 15
    %v1821 = vpop.permute.xlu0 %1820
    %1822 = vrot.lane.b32.xlu0 %v48, 15
    %v1823 = vpop.permute.xlu0 %1822
    %1824 = vrot.lane.b32.xlu0 %v49, 15
    %v1825 = vpop.permute.xlu0 %1824
    %1826 = vrot.lane.b32.xlu0 %v50, 15
    %v1827 = vpop.permute.xlu0 %1826
    %1828 = vrot.lane.b32.xlu0 %v51, 15
    %v1829 = vpop.permute.xlu0 %1828
    %1830 = vrot.lane.b32.xlu0 %v52, 15
    %v1831 = vpop.permute.xlu0 %1830
    %1832 = vrot.lane.b32.xlu0 %v53, 15
    %v1833 = vpop.permute.xlu0 %1832
    %1834 = vrot.lane.b32.xlu0 %v54, 15
    %v1835 = vpop.permute.xlu0 %1834
    %1836 = vrot.lane.b32.xlu0 %v55, 15
    %v1837 = vpop.permute.xlu0 %1836
    %1838 = vrot.lane.b32.xlu0 %v56, 15
    %v1839 = vpop.permute.xlu0 %1838
    %1840 = vrot.lane.b32.xlu0 %v57, 15
    %v1841 = vpop.permute.xlu0 %1840
    %1842 = vrot.lane.b32.xlu0 %v58, 15
    %v1843 = vpop.permute.xlu0 %1842
    %1844 = vrot.lane.b32.xlu0 %v59, 15
    %v1845 = vpop.permute.xlu0 %1844
    %1846 = vrot.lane.b32.xlu0 %v60, 15
    %v1847 = vpop.permute.xlu0 %1846
    %1848 = vrot.lane.b32.xlu0 %v61, 15
    %v1849 = vpop.permute.xlu0 %1848
    %1850 = vrot.lane.b32.xlu0 %v62, 15
    %v1851 = vpop.permute.xlu0 %1850
    %1852 = vrot.lane.b32.xlu0 %v63, 15
    %v1853 = vpop.permute.xlu0 %1852
    %1854 = vrot.lane.b32.xlu0 %v64, 15
    %v1855 = vpop.permute.xlu0 %1854
    %1856 = vrot.lane.b32.xlu0 %v65, 15
    %v1857 = vpop.permute.xlu0 %1856
    %1858 = vrot.lane.b32.xlu0 %v66, 15
    %v1859 = vpop.permute.xlu0 %1858
    %1860 = vrot.lane.b32.xlu0 %v67, 15
    %v1861 = vpop.permute.xlu0 %1860
    %1862 = vrot.lane.b32.xlu0 %v68, 15
    %v1863 = vpop.permute.xlu0 %1862
    %1864 = vrot.lane.b32.xlu0 %v69, 15
    %v1865 = vpop.permute.xlu0 %1864
    %1866 = vrot.lane.b32.xlu0 %v70, 15
    %v1867 = vpop.permute.xlu0 %1866
    %1868 = vrot.lane.b32.xlu0 %v71, 15
    %v1869 = vpop.permute.xlu0 %1868
    %1870 = vrot.lane.b32.xlu0 %v72, 15
    %v1871 = vpop.permute.xlu0 %1870
    %1872 = vrot.lane.b32.xlu0 %v73, 15
    %v1873 = vpop.permute.xlu0 %1872
    %1874 = vrot.lane.b32.xlu0 %v74, 15
    %v1875 = vpop.permute.xlu0 %1874
    %1876 = vrot.lane.b32.xlu0 %v75, 15
    %v1877 = vpop.permute.xlu0 %1876
    %1878 = vrot.lane.b32.xlu0 %v76, 15
    %v1879 = vpop.permute.xlu0 %1878
    %1880 = vrot.lane.b32.xlu0 %v77, 15
    %v1881 = vpop.permute.xlu0 %1880
    %1882 = vrot.lane.b32.xlu0 %v78, 15
    %v1883 = vpop.permute.xlu0 %1882
    %1884 = vrot.lane.b32.xlu0 %v79, 15
    %v1885 = vpop.permute.xlu0 %1884
    %1886 = vrot.lane.b32.xlu0 %v80, 15
    %v1887 = vpop.permute.xlu0 %1886
    %1888 = vrot.lane.b32.xlu0 %v81, 15
    %v1889 = vpop.permute.xlu0 %1888
    %1890 = vrot.lane.b32.xlu0 %v82, 15
    %v1891 = vpop.permute.xlu0 %1890
    %1892 = vrot.lane.b32.xlu0 %v83, 15
    %v1893 = vpop.permute.xlu0 %1892
    %1894 = vrot.lane.b32.xlu0 %v84, 15
    %v1895 = vpop.permute.xlu0 %1894
    %1896 = vrot.lane.b32.xlu0 %v85, 15
    %v1897 = vpop.permute.xlu0 %1896
    %1898 = vrot.lane.b32.xlu0 %v86, 15
    %v1899 = vpop.permute.xlu0 %1898
    %1900 = vrot.lane.b32.xlu0 %v87, 15
    %v1901 = vpop.permute.xlu0 %1900
    %1902 = vrot.lane.b32.xlu0 %v88, 15
    %v1903 = vpop.permute.xlu0 %1902
    %1904 = vrot.lane.b32.xlu0 %v89, 15
    %v1905 = vpop.permute.xlu0 %1904
    %1906 = vrot.lane.b32.xlu0 %v90, 15
    %v1907 = vpop.permute.xlu0 %1906
    %1908 = vrot.lane.b32.xlu0 %v91, 15
    %v1909 = vpop.permute.xlu0 %1908
    %1910 = vrot.lane.b32.xlu0 %v92, 15
    %v1911 = vpop.permute.xlu0 %1910
    %1912 = vrot.lane.b32.xlu0 %v93, 15
    %v1913 = vpop.permute.xlu0 %1912
    %1914 = vrot.lane.b32.xlu0 %v94, 15
    %v1915 = vpop.permute.xlu0 %1914
    %1916 = vrot.lane.b32.xlu0 %v95, 15
    %v1917 = vpop.permute.xlu0 %1916
    %1918 = vrot.lane.b32.xlu0 %v96, 15
    %v1919 = vpop.permute.xlu0 %1918
    %1920 = vrot.lane.b32.xlu0 %v97, 15
    %v1921 = vpop.permute.xlu0 %1920
    %1922 = vrot.lane.b32.xlu0 %v98, 15
    %v1923 = vpop.permute.xlu0 %1922
    %1924 = vrot.lane.b32.xlu0 %v99, 15
    %v1925 = vpop.permute.xlu0 %1924
    %1926 = vrot.lane.b32.xlu0 %v100, 15
    %v1927 = vpop.permute.xlu0 %1926
    %1928 = vrot.lane.b32.xlu0 %v101, 15
    %v1929 = vpop.permute.xlu0 %1928
    %1930 = vrot.lane.b32.xlu0 %v102, 15
    %v1931 = vpop.permute.xlu0 %1930
    %1932 = vrot.lane.b32.xlu0 %v103, 15
    %v1933 = vpop.permute.xlu0 %1932
    %1934 = vrot.lane.b32.xlu0 %v104, 15
    %v1935 = vpop.permute.xlu0 %1934
    %1936 = vrot.lane.b32.xlu0 %v105, 15
    %v1937 = vpop.permute.xlu0 %1936
    %vm2003 = vcmask 146554
    %2004 = vst.msk [vmem:[#allocation2 - $0x2] sm:$0xfc] %vm2003, %v1809
    %vm2005 = vcmask 146552
    %2006 = vst.msk [vmem:[#allocation2 + $0x6] sm:$0xff] %vm2005, %v1811
    %2007 = vst.msk [vmem:[#allocation2 + $0xe] sm:$0xff] %vm2005, %v1813
    %2008 = vst.msk [vmem:[#allocation2 + $0x16] sm:$0xff] %vm2005, %v1815
    %2009 = vst.msk [vmem:[#allocation2 + $0x1e] sm:$0xff] %vm2005, %v1817
    %2010 = vst.msk [vmem:[#allocation2 + $0x26] sm:$0xff] %vm2005, %v1819
    %2011 = vst.msk [vmem:[#allocation2 + $0x2e] sm:$0xff] %vm2005, %v1821
    %2012 = vst.msk [vmem:[#allocation2 + $0x36] sm:$0xff] %vm2005, %v1823
    %2013 = vst.msk [vmem:[#allocation2 + $0x3e] sm:$0xff] %vm2005, %v1825
    %2014 = vst.msk [vmem:[#allocation2 + $0x46] sm:$0xff] %vm2005, %v1827
    %2015 = vst.msk [vmem:[#allocation2 + $0x4e] sm:$0xff] %vm2005, %v1829
    %2016 = vst.msk [vmem:[#allocation2 + $0x56] sm:$0xff] %vm2005, %v1831
    %2017 = vst.msk [vmem:[#allocation2 + $0x5e] sm:$0xff] %vm2005, %v1833
    %2018 = vst.msk [vmem:[#allocation2 + $0x66] sm:$0xff] %vm2005, %v1835
    %2019 = vst.msk [vmem:[#allocation2 + $0x6e] sm:$0xff] %vm2005, %v1837
    %2020 = vst.msk [vmem:[#allocation2 + $0x76] sm:$0xff] %vm2005, %v1839
    %2021 = vst.msk [vmem:[#allocation2 + $0x7e] sm:$0xff] %vm2005, %v1841
    %2022 = vst.msk [vmem:[#allocation2 + $0x86] sm:$0xff] %vm2005, %v1843
    %2023 = vst.msk [vmem:[#allocation2 + $0x8e] sm:$0xff] %vm2005, %v1845
    %2024 = vst.msk [vmem:[#allocation2 + $0x96] sm:$0xff] %vm2005, %v1847
    %2025 = vst.msk [vmem:[#allocation2 + $0x9e] sm:$0xff] %vm2005, %v1849
    %2026 = vst.msk [vmem:[#allocation2 + $0xa6] sm:$0xff] %vm2005, %v1851
    %2027 = vst.msk [vmem:[#allocation2 + $0xae] sm:$0xff] %vm2005, %v1853
    %2028 = vst.msk [vmem:[#allocation2 + $0xb6] sm:$0xff] %vm2005, %v1855
    %2029 = vst.msk [vmem:[#allocation2 + $0xbe] sm:$0xff] %vm2005, %v1857
    %2030 = vst.msk [vmem:[#allocation2 + $0xc6] sm:$0xff] %vm2005, %v1859
    %2031 = vst.msk [vmem:[#allocation2 + $0xce] sm:$0xff] %vm2005, %v1861
    %2032 = vst.msk [vmem:[#allocation2 + $0xd6] sm:$0xff] %vm2005, %v1863
    %2033 = vst.msk [vmem:[#allocation2 + $0xde] sm:$0xff] %vm2005, %v1865
    %2034 = vst.msk [vmem:[#allocation2 + $0xe6] sm:$0xff] %vm2005, %v1867
    %2035 = vst.msk [vmem:[#allocation2 + $0xee] sm:$0xff] %vm2005, %v1869
    %2036 = vst.msk [vmem:[#allocation2 + $0xf6] sm:$0xff] %vm2005, %v1871
    %2037 = vst.msk [vmem:[#allocation2 + $0xfe] sm:$0xff] %vm2005, %v1873
    %2038 = vst.msk [vmem:[#allocation2 + $0x106] sm:$0xff] %vm2005, %v1875
    %2039 = vst.msk [vmem:[#allocation2 + $0x10e] sm:$0xff] %vm2005, %v1877
    %2040 = vst.msk [vmem:[#allocation2 + $0x116] sm:$0xff] %vm2005, %v1879
    %2041 = vst.msk [vmem:[#allocation2 + $0x11e] sm:$0xff] %vm2005, %v1881
    %2042 = vst.msk [vmem:[#allocation2 + $0x126] sm:$0xff] %vm2005, %v1883
    %2043 = vst.msk [vmem:[#allocation2 + $0x12e] sm:$0xff] %vm2005, %v1885
    %2044 = vst.msk [vmem:[#allocation2 + $0x136] sm:$0xff] %vm2005, %v1887
    %2045 = vst.msk [vmem:[#allocation2 + $0x13e] sm:$0xff] %vm2005, %v1889
    %2046 = vst.msk [vmem:[#allocation2 + $0x146] sm:$0xff] %vm2005, %v1891
    %2047 = vst.msk [vmem:[#allocation2 + $0x14e] sm:$0xff] %vm2005, %v1893
    %2048 = vst.msk [vmem:[#allocation2 + $0x156] sm:$0xff] %vm2005, %v1895
    %2049 = vst.msk [vmem:[#allocation2 + $0x15e] sm:$0xff] %vm2005, %v1897
    %2050 = vst.msk [vmem:[#allocation2 + $0x166] sm:$0xff] %vm2005, %v1899
    %2051 = vst.msk [vmem:[#allocation2 + $0x16e] sm:$0xff] %vm2005, %v1901
    %2052 = vst.msk [vmem:[#allocation2 + $0x176] sm:$0xff] %vm2005, %v1903
    %2053 = vst.msk [vmem:[#allocation2 + $0x17e] sm:$0xff] %vm2005, %v1905
    %2054 = vst.msk [vmem:[#allocation2 + $0x186] sm:$0xff] %vm2005, %v1907
    %2055 = vst.msk [vmem:[#allocation2 + $0x18e] sm:$0xff] %vm2005, %v1909
    %2056 = vst.msk [vmem:[#allocation2 + $0x196] sm:$0xff] %vm2005, %v1911
    %2057 = vst.msk [vmem:[#allocation2 + $0x19e] sm:$0xff] %vm2005, %v1913
    %2058 = vst.msk [vmem:[#allocation2 + $0x1a6] sm:$0xff] %vm2005, %v1915
    %2059 = vst.msk [vmem:[#allocation2 + $0x1ae] sm:$0xff] %vm2005, %v1917
    %2060 = vst.msk [vmem:[#allocation2 + $0x1b6] sm:$0xff] %vm2005, %v1919
    %2061 = vst.msk [vmem:[#allocation2 + $0x1be] sm:$0xff] %vm2005, %v1921
    %2062 = vst.msk [vmem:[#allocation2 + $0x1c6] sm:$0xff] %vm2005, %v1923
    %2063 = vst.msk [vmem:[#allocation2 + $0x1ce] sm:$0xff] %vm2005, %v1925
    %2064 = vst.msk [vmem:[#allocation2 + $0x1d6] sm:$0xff] %vm2005, %v1927
    %2065 = vst.msk [vmem:[#allocation2 + $0x1de] sm:$0xff] %vm2005, %v1929
    %2066 = vst.msk [vmem:[#allocation2 + $0x1e6] sm:$0xff] %vm2005, %v1931
    %2067 = vst.msk [vmem:[#allocation2 + $0x1ee] sm:$0xff] %vm2005, %v1933
    %2068 = vst.msk [vmem:[#allocation2 + $0x1f6] sm:$0xff] %vm2005, %v1935
    %vm2069 = vcmask 140408
    %2070 = vst.msk [vmem:[#allocation2 + $0x1fe] sm:$0x3] %vm2069, %v1937
    %2071 = vrot.lane.b32.xlu0 %v43, 24
    %v2072 = vpop.permute.xlu0 %2071
    %2073 = vrot.lane.b32.xlu0 %v44, 24
    %v2074 = vpop.permute.xlu0 %2073
    %2075 = vrot.lane.b32.xlu0 %v45, 24
    %v2076 = vpop.permute.xlu0 %2075
    %2077 = vrot.lane.b32.xlu0 %v46, 24
    %v2078 = vpop.permute.xlu0 %2077
    %2079 = vrot.lane.b32.xlu0 %v47, 24
    %v2080 = vpop.permute.xlu0 %2079
    %2081 = vrot.lane.b32.xlu0 %v48, 24
    %v2082 = vpop.permute.xlu0 %2081
    %2083 = vrot.lane.b32.xlu0 %v49, 24
    %v2084 = vpop.permute.xlu0 %2083
    %2085 = vrot.lane.b32.xlu0 %v50, 24
    %v2086 = vpop.permute.xlu0 %2085
    %2087 = vrot.lane.b32.xlu0 %v51, 24
    %v2088 = vpop.permute.xlu0 %2087
    %2089 = vrot.lane.b32.xlu0 %v52, 24
    %v2090 = vpop.permute.xlu0 %2089
    %2091 = vrot.lane.b32.xlu0 %v53, 24
    %v2092 = vpop.permute.xlu0 %2091
    %2093 = vrot.lane.b32.xlu0 %v54, 24
    %v2094 = vpop.permute.xlu0 %2093
    %2095 = vrot.lane.b32.xlu0 %v55, 24
    %v2096 = vpop.permute.xlu0 %2095
    %2097 = vrot.lane.b32.xlu0 %v56, 24
    %v2098 = vpop.permute.xlu0 %2097
    %2099 = vrot.lane.b32.xlu0 %v57, 24
    %v2100 = vpop.permute.xlu0 %2099
    %2101 = vrot.lane.b32.xlu0 %v58, 24
    %v2102 = vpop.permute.xlu0 %2101
    %2103 = vrot.lane.b32.xlu0 %v59, 24
    %v2104 = vpop.permute.xlu0 %2103
    %2105 = vrot.lane.b32.xlu0 %v60, 24
    %v2106 = vpop.permute.xlu0 %2105
    %2107 = vrot.lane.b32.xlu0 %v61, 24
    %v2108 = vpop.permute.xlu0 %2107
    %2109 = vrot.lane.b32.xlu0 %v62, 24
    %v2110 = vpop.permute.xlu0 %2109
    %2111 = vrot.lane.b32.xlu0 %v63, 24
    %v2112 = vpop.permute.xlu0 %2111
    %2113 = vrot.lane.b32.xlu0 %v64, 24
    %v2114 = vpop.permute.xlu0 %2113
    %2115 = vrot.lane.b32.xlu0 %v65, 24
    %v2116 = vpop.permute.xlu0 %2115
    %2117 = vrot.lane.b32.xlu0 %v66, 24
    %v2118 = vpop.permute.xlu0 %2117
    %2119 = vrot.lane.b32.xlu0 %v67, 24
    %v2120 = vpop.permute.xlu0 %2119
    %2121 = vrot.lane.b32.xlu0 %v68, 24
    %v2122 = vpop.permute.xlu0 %2121
    %2123 = vrot.lane.b32.xlu0 %v69, 24
    %v2124 = vpop.permute.xlu0 %2123
    %2125 = vrot.lane.b32.xlu0 %v70, 24
    %v2126 = vpop.permute.xlu0 %2125
    %2127 = vrot.lane.b32.xlu0 %v71, 24
    %v2128 = vpop.permute.xlu0 %2127
    %2129 = vrot.lane.b32.xlu0 %v72, 24
    %v2130 = vpop.permute.xlu0 %2129
    %2131 = vrot.lane.b32.xlu0 %v73, 24
    %v2132 = vpop.permute.xlu0 %2131
    %2133 = vrot.lane.b32.xlu0 %v74, 24
    %v2134 = vpop.permute.xlu0 %2133
    %2135 = vrot.lane.b32.xlu0 %v75, 24
    %v2136 = vpop.permute.xlu0 %2135
    %2137 = vrot.lane.b32.xlu0 %v76, 24
    %v2138 = vpop.permute.xlu0 %2137
    %2139 = vrot.lane.b32.xlu0 %v77, 24
    %v2140 = vpop.permute.xlu0 %2139
    %2141 = vrot.lane.b32.xlu0 %v78, 24
    %v2142 = vpop.permute.xlu0 %2141
    %2143 = vrot.lane.b32.xlu0 %v79, 24
    %v2144 = vpop.permute.xlu0 %2143
    %2145 = vrot.lane.b32.xlu0 %v80, 24
    %v2146 = vpop.permute.xlu0 %2145
    %2147 = vrot.lane.b32.xlu0 %v81, 24
    %v2148 = vpop.permute.xlu0 %2147
    %2149 = vrot.lane.b32.xlu0 %v82, 24
    %v2150 = vpop.permute.xlu0 %2149
    %2151 = vrot.lane.b32.xlu0 %v83, 24
    %v2152 = vpop.permute.xlu0 %2151
    %2153 = vrot.lane.b32.xlu0 %v84, 24
    %v2154 = vpop.permute.xlu0 %2153
    %2155 = vrot.lane.b32.xlu0 %v85, 24
    %v2156 = vpop.permute.xlu0 %2155
    %2157 = vrot.lane.b32.xlu0 %v86, 24
    %v2158 = vpop.permute.xlu0 %2157
    %2159 = vrot.lane.b32.xlu0 %v87, 24
    %v2160 = vpop.permute.xlu0 %2159
    %2161 = vrot.lane.b32.xlu0 %v88, 24
    %v2162 = vpop.permute.xlu0 %2161
    %2163 = vrot.lane.b32.xlu0 %v89, 24
    %v2164 = vpop.permute.xlu0 %2163
    %2165 = vrot.lane.b32.xlu0 %v90, 24
    %v2166 = vpop.permute.xlu0 %2165
    %2167 = vrot.lane.b32.xlu0 %v91, 24
    %v2168 = vpop.permute.xlu0 %2167
    %2169 = vrot.lane.b32.xlu0 %v92, 24
    %v2170 = vpop.permute.xlu0 %2169
    %2171 = vrot.lane.b32.xlu0 %v93, 24
    %v2172 = vpop.permute.xlu0 %2171
    %2173 = vrot.lane.b32.xlu0 %v94, 24
    %v2174 = vpop.permute.xlu0 %2173
    %2175 = vrot.lane.b32.xlu0 %v95, 24
    %v2176 = vpop.permute.xlu0 %2175
    %2177 = vrot.lane.b32.xlu0 %v96, 24
    %v2178 = vpop.permute.xlu0 %2177
    %2179 = vrot.lane.b32.xlu0 %v97, 24
    %v2180 = vpop.permute.xlu0 %2179
    %2181 = vrot.lane.b32.xlu0 %v98, 24
    %v2182 = vpop.permute.xlu0 %2181
    %2183 = vrot.lane.b32.xlu0 %v99, 24
    %v2184 = vpop.permute.xlu0 %2183
    %2185 = vrot.lane.b32.xlu0 %v100, 24
    %v2186 = vpop.permute.xlu0 %2185
    %2187 = vrot.lane.b32.xlu0 %v101, 24
    %v2188 = vpop.permute.xlu0 %2187
    %2189 = vrot.lane.b32.xlu0 %v102, 24
    %v2190 = vpop.permute.xlu0 %2189
    %2191 = vrot.lane.b32.xlu0 %v103, 24
    %v2192 = vpop.permute.xlu0 %2191
    %2193 = vrot.lane.b32.xlu0 %v104, 24
    %v2194 = vpop.permute.xlu0 %2193
    %2195 = vrot.lane.b32.xlu0 %v105, 24
    %v2196 = vpop.permute.xlu0 %2195
    %2197 = vrot.lane.b32.xlu0 %v106, 24
    %v2198 = vpop.permute.xlu0 %2197
    %2199 = vrot.lane.b32.xlu0 %v107, 24
    %v2200 = vpop.permute.xlu0 %2199
    %vm2266 = vcmask 220354
    %2267 = vst.msk [vmem:[#allocation2 - $0x2] sm:$0xfc] %vm2266, %v2072
    %vm2268 = vcmask 220352
    %2269 = vst.msk [vmem:[#allocation2 + $0x6] sm:$0xff] %vm2268, %v2074
    %2270 = vst.msk [vmem:[#allocation2 + $0xe] sm:$0xff] %vm2268, %v2076
    %2271 = vst.msk [vmem:[#allocation2 + $0x16] sm:$0xff] %vm2268, %v2078
    %2272 = vst.msk [vmem:[#allocation2 + $0x1e] sm:$0xff] %vm2268, %v2080
    %2273 = vst.msk [vmem:[#allocation2 + $0x26] sm:$0xff] %vm2268, %v2082
    %2274 = vst.msk [vmem:[#allocation2 + $0x2e] sm:$0xff] %vm2268, %v2084
    %2275 = vst.msk [vmem:[#allocation2 + $0x36] sm:$0xff] %vm2268, %v2086
    %2276 = vst.msk [vmem:[#allocation2 + $0x3e] sm:$0xff] %vm2268, %v2088
    %2277 = vst.msk [vmem:[#allocation2 + $0x46] sm:$0xff] %vm2268, %v2090
    %2278 = vst.msk [vmem:[#allocation2 + $0x4e] sm:$0xff] %vm2268, %v2092
    %2279 = vst.msk [vmem:[#allocation2 + $0x56] sm:$0xff] %vm2268, %v2094
    %2280 = vst.msk [vmem:[#allocation2 + $0x5e] sm:$0xff] %vm2268, %v2096
    %2281 = vst.msk [vmem:[#allocation2 + $0x66] sm:$0xff] %vm2268, %v2098
    %2282 = vst.msk [vmem:[#allocation2 + $0x6e] sm:$0xff] %vm2268, %v2100
    %2283 = vst.msk [vmem:[#allocation2 + $0x76] sm:$0xff] %vm2268, %v2102
    %2284 = vst.msk [vmem:[#allocation2 + $0x7e] sm:$0xff] %vm2268, %v2104
    %2285 = vst.msk [vmem:[#allocation2 + $0x86] sm:$0xff] %vm2268, %v2106
    %2286 = vst.msk [vmem:[#allocation2 + $0x8e] sm:$0xff] %vm2268, %v2108
    %2287 = vst.msk [vmem:[#allocation2 + $0x96] sm:$0xff] %vm2268, %v2110
    %2288 = vst.msk [vmem:[#allocation2 + $0x9e] sm:$0xff] %vm2268, %v2112
    %2289 = vst.msk [vmem:[#allocation2 + $0xa6] sm:$0xff] %vm2268, %v2114
    %2290 = vst.msk [vmem:[#allocation2 + $0xae] sm:$0xff] %vm2268, %v2116
    %2291 = vst.msk [vmem:[#allocation2 + $0xb6] sm:$0xff] %vm2268, %v2118
    %2292 = vst.msk [vmem:[#allocation2 + $0xbe] sm:$0xff] %vm2268, %v2120
    %2293 = vst.msk [vmem:[#allocation2 + $0xc6] sm:$0xff] %vm2268, %v2122
    %2294 = vst.msk [vmem:[#allocation2 + $0xce] sm:$0xff] %vm2268, %v2124
    %2295 = vst.msk [vmem:[#allocation2 + $0xd6] sm:$0xff] %vm2268, %v2126
    %2296 = vst.msk [vmem:[#allocation2 + $0xde] sm:$0xff] %vm2268, %v2128
    %2297 = vst.msk [vmem:[#allocation2 + $0xe6] sm:$0xff] %vm2268, %v2130
    %2298 = vst.msk [vmem:[#allocation2 + $0xee] sm:$0xff] %vm2268, %v2132
    %2299 = vst.msk [vmem:[#allocation2 + $0xf6] sm:$0xff] %vm2268, %v2134
    %2300 = vst.msk [vmem:[#allocation2 + $0xfe] sm:$0xff] %vm2268, %v2136
    %2301 = vst.msk [vmem:[#allocation2 + $0x106] sm:$0xff] %vm2268, %v2138
    %2302 = vst.msk [vmem:[#allocation2 + $0x10e] sm:$0xff] %vm2268, %v2140
    %2303 = vst.msk [vmem:[#allocation2 + $0x116] sm:$0xff] %vm2268, %v2142
    %2304 = vst.msk [vmem:[#allocation2 + $0x11e] sm:$0xff] %vm2268, %v2144
    %2305 = vst.msk [vmem:[#allocation2 + $0x126] sm:$0xff] %vm2268, %v2146
    %2306 = vst.msk [vmem:[#allocation2 + $0x12e] sm:$0xff] %vm2268, %v2148
    %2307 = vst.msk [vmem:[#allocation2 + $0x136] sm:$0xff] %vm2268, %v2150
    %2308 = vst.msk [vmem:[#allocation2 + $0x13e] sm:$0xff] %vm2268, %v2152
    %2309 = vst.msk [vmem:[#allocation2 + $0x146] sm:$0xff] %vm2268, %v2154
    %2310 = vst.msk [vmem:[#allocation2 + $0x14e] sm:$0xff] %vm2268, %v2156
    %2311 = vst.msk [vmem:[#allocation2 + $0x156] sm:$0xff] %vm2268, %v2158
    %2312 = vst.msk [vmem:[#allocation2 + $0x15e] sm:$0xff] %vm2268, %v2160
    %2313 = vst.msk [vmem:[#allocation2 + $0x166] sm:$0xff] %vm2268, %v2162
    %2314 = vst.msk [vmem:[#allocation2 + $0x16e] sm:$0xff] %vm2268, %v2164
    %2315 = vst.msk [vmem:[#allocation2 + $0x176] sm:$0xff] %vm2268, %v2166
    %2316 = vst.msk [vmem:[#allocation2 + $0x17e] sm:$0xff] %vm2268, %v2168
    %2317 = vst.msk [vmem:[#allocation2 + $0x186] sm:$0xff] %vm2268, %v2170
    %2318 = vst.msk [vmem:[#allocation2 + $0x18e] sm:$0xff] %vm2268, %v2172
    %2319 = vst.msk [vmem:[#allocation2 + $0x196] sm:$0xff] %vm2268, %v2174
    %2320 = vst.msk [vmem:[#allocation2 + $0x19e] sm:$0xff] %vm2268, %v2176
    %2321 = vst.msk [vmem:[#allocation2 + $0x1a6] sm:$0xff] %vm2268, %v2178
    %2322 = vst.msk [vmem:[#allocation2 + $0x1ae] sm:$0xff] %vm2268, %v2180
    %2323 = vst.msk [vmem:[#allocation2 + $0x1b6] sm:$0xff] %vm2268, %v2182
    %2324 = vst.msk [vmem:[#allocation2 + $0x1be] sm:$0xff] %vm2268, %v2184
    %2325 = vst.msk [vmem:[#allocation2 + $0x1c6] sm:$0xff] %vm2268, %v2186
    %2326 = vst.msk [vmem:[#allocation2 + $0x1ce] sm:$0xff] %vm2268, %v2188
    %2327 = vst.msk [vmem:[#allocation2 + $0x1d6] sm:$0xff] %vm2268, %v2190
    %2328 = vst.msk [vmem:[#allocation2 + $0x1de] sm:$0xff] %vm2268, %v2192
    %2329 = vst.msk [vmem:[#allocation2 + $0x1e6] sm:$0xff] %vm2268, %v2194
    %2330 = vst.msk [vmem:[#allocation2 + $0x1ee] sm:$0xff] %vm2268, %v2196
    %2331 = vst.msk [vmem:[#allocation2 + $0x1f6] sm:$0xff] %vm2268, %v2198
    %vm2332 = vcmask 214208
    %2333 = vst.msk [vmem:[#allocation2 + $0x1fe] sm:$0x3] %vm2332, %v2200
    %v2334 = vld [vmem:[#allocation2] sm:$0xff]
    %v2335 = vld [vmem:[#allocation2 + $0x8] sm:$0xff]
    %v2336 = vld [vmem:[#allocation2 + $0x10] sm:$0xff]
    %v2337 = vld [vmem:[#allocation2 + $0x18] sm:$0xff]
    %v2338 = vld [vmem:[#allocation2 + $0x20] sm:$0xff]
    %v2339 = vld [vmem:[#allocation2 + $0x28] sm:$0xff]
    %v2340 = vld [vmem:[#allocation2 + $0x30] sm:$0xff]
    %v2341 = vld [vmem:[#allocation2 + $0x38] sm:$0xff]
    %v2342 = vld [vmem:[#allocation2 + $0x40] sm:$0xff]
    %v2343 = vld [vmem:[#allocation2 + $0x48] sm:$0xff]
    %v2344 = vld [vmem:[#allocation2 + $0x50] sm:$0xff]
    %v2345 = vld [vmem:[#allocation2 + $0x58] sm:$0xff]
    %v2346 = vld [vmem:[#allocation2 + $0x60] sm:$0xff]
    %v2347 = vld [vmem:[#allocation2 + $0x68] sm:$0xff]
    %v2348 = vld [vmem:[#allocation2 + $0x70] sm:$0xff]
    %v2349 = vld [vmem:[#allocation2 + $0x78] sm:$0xff]
    %v2350 = vld [vmem:[#allocation2 + $0x80] sm:$0xff]
    %v2351 = vld [vmem:[#allocation2 + $0x88] sm:$0xff]
    %v2352 = vld [vmem:[#allocation2 + $0x90] sm:$0xff]
    %v2353 = vld [vmem:[#allocation2 + $0x98] sm:$0xff]
    %v2354 = vld [vmem:[#allocation2 + $0xa0] sm:$0xff]
    %v2355 = vld [vmem:[#allocation2 + $0xa8] sm:$0xff]
    %v2356 = vld [vmem:[#allocation2 + $0xb0] sm:$0xff]
    %v2357 = vld [vmem:[#allocation2 + $0xb8] sm:$0xff]
    %v2358 = vld [vmem:[#allocation2 + $0xc0] sm:$0xff]
    %v2359 = vld [vmem:[#allocation2 + $0xc8] sm:$0xff]
    %v2360 = vld [vmem:[#allocation2 + $0xd0] sm:$0xff]
    %v2361 = vld [vmem:[#allocation2 + $0xd8] sm:$0xff]
    %v2362 = vld [vmem:[#allocation2 + $0xe0] sm:$0xff]
    %v2363 = vld [vmem:[#allocation2 + $0xe8] sm:$0xff]
    %v2364 = vld [vmem:[#allocation2 + $0xf0] sm:$0xff]
    %v2365 = vld [vmem:[#allocation2 + $0xf8] sm:$0xff]
    %v2366 = vld [vmem:[#allocation2 + $0x100] sm:$0xff]
    %v2367 = vld [vmem:[#allocation2 + $0x108] sm:$0xff]
    %v2368 = vld [vmem:[#allocation2 + $0x110] sm:$0xff]
    %v2369 = vld [vmem:[#allocation2 + $0x118] sm:$0xff]
    %v2370 = vld [vmem:[#allocation2 + $0x120] sm:$0xff]
    %v2371 = vld [vmem:[#allocation2 + $0x128] sm:$0xff]
    %v2372 = vld [vmem:[#allocation2 + $0x130] sm:$0xff]
    %v2373 = vld [vmem:[#allocation2 + $0x138] sm:$0xff]
    %v2374 = vld [vmem:[#allocation2 + $0x140] sm:$0xff]
    %v2375 = vld [vmem:[#allocation2 + $0x148] sm:$0xff]
    %v2376 = vld [vmem:[#allocation2 + $0x150] sm:$0xff]
    %v2377 = vld [vmem:[#allocation2 + $0x158] sm:$0xff]
    %v2378 = vld [vmem:[#allocation2 + $0x160] sm:$0xff]
    %v2379 = vld [vmem:[#allocation2 + $0x168] sm:$0xff]
    %v2380 = vld [vmem:[#allocation2 + $0x170] sm:$0xff]
    %v2381 = vld [vmem:[#allocation2 + $0x178] sm:$0xff]
    %v2382 = vld [vmem:[#allocation2 + $0x180] sm:$0xff]
    %v2383 = vld [vmem:[#allocation2 + $0x188] sm:$0xff]
    %v2384 = vld [vmem:[#allocation2 + $0x190] sm:$0xff]
    %v2385 = vld [vmem:[#allocation2 + $0x198] sm:$0xff]
    %v2386 = vld [vmem:[#allocation2 + $0x1a0] sm:$0xff]
    %v2387 = vld [vmem:[#allocation2 + $0x1a8] sm:$0xff]
    %v2388 = vld [vmem:[#allocation2 + $0x1b0] sm:$0xff]
    %v2389 = vld [vmem:[#allocation2 + $0x1b8] sm:$0xff]
    %v2390 = vld [vmem:[#allocation2 + $0x1c0] sm:$0xff]
    %v2391 = vld [vmem:[#allocation2 + $0x1c8] sm:$0xff]
    %v2392 = vld [vmem:[#allocation2 + $0x1d0] sm:$0xff]
    %v2393 = vld [vmem:[#allocation2 + $0x1d8] sm:$0xff]
    %v2394 = vld [vmem:[#allocation2 + $0x1e0] sm:$0xff]
    %v2395 = vld [vmem:[#allocation2 + $0x1e8] sm:$0xff]
    %v2396 = vld [vmem:[#allocation2 + $0x1f0] sm:$0xff]
    %v2397 = vld [vmem:[#allocation2 + $0x1f8] sm:$0xff]
    %v2398 = vld [vmem:[%s1] sm:$0xff]
    %v2399 = vld [vmem:[%s1 + $0x8] sm:$0xff]
    %v2400 = vld [vmem:[%s1 + $0x10] sm:$0xff]
    %v2401 = vld [vmem:[%s1 + $0x18] sm:$0x7]
    %v2402 = vld [vmem:[%s2] sm:$0x1]
    %v2404 = vperm.slane %v2402, 0
    %vm2406 = vcmask 220160
    %v2408 = vsel %vm2406, %v2334, 0
    %v2411 = vsel %vm2406, %v2335, 0
    %v2414 = vsel %vm2406, %v2336, 0
    %v2417 = vsel %vm2406, %v2337, 0
    %v2420 = vsel %vm2406, %v2338, 0
    %v2423 = vsel %vm2406, %v2339, 0
    %v2426 = vsel %vm2406, %v2340, 0
    %v2429 = vsel %vm2406, %v2341, 0
    %v2432 = vsel %vm2406, %v2342, 0
    %v2435 = vsel %vm2406, %v2343, 0
    %v2438 = vsel %vm2406, %v2344, 0
    %v2441 = vsel %vm2406, %v2345, 0
    %v2444 = vsel %vm2406, %v2346, 0
    %v2447 = vsel %vm2406, %v2347, 0
    %v2450 = vsel %vm2406, %v2348, 0
    %v2453 = vsel %vm2406, %v2349, 0
    %v2456 = vsel %vm2406, %v2350, 0
    %v2459 = vsel %vm2406, %v2351, 0
    %v2462 = vsel %vm2406, %v2352, 0
    %v2465 = vsel %vm2406, %v2353, 0
    %v2468 = vsel %vm2406, %v2354, 0
    %v2471 = vsel %vm2406, %v2355, 0
    %v2474 = vsel %vm2406, %v2356, 0
    %v2477 = vsel %vm2406, %v2357, 0
    %v2480 = vsel %vm2406, %v2358, 0
    %v2483 = vsel %vm2406, %v2359, 0
    %v2486 = vsel %vm2406, %v2360, 0
    %v2489 = vsel %vm2406, %v2361, 0
    %v2492 = vsel %vm2406, %v2362, 0
    %v2495 = vsel %vm2406, %v2363, 0
    %v2498 = vsel %vm2406, %v2364, 0
    %v2501 = vsel %vm2406, %v2365, 0
    %v2504 = vsel %vm2406, %v2366, 0
    %v2507 = vsel %vm2406, %v2367, 0
    %v2510 = vsel %vm2406, %v2368, 0
    %v2513 = vsel %vm2406, %v2369, 0
    %v2516 = vsel %vm2406, %v2370, 0
    %v2519 = vsel %vm2406, %v2371, 0
    %v2522 = vsel %vm2406, %v2372, 0
    %v2525 = vsel %vm2406, %v2373, 0
    %v2528 = vsel %vm2406, %v2374, 0
    %v2531 = vsel %vm2406, %v2375, 0
    %v2534 = vsel %vm2406, %v2376, 0
    %v2537 = vsel %vm2406, %v2377, 0
    %v2540 = vsel %vm2406, %v2378, 0
    %v2543 = vsel %vm2406, %v2379, 0
    %v2546 = vsel %vm2406, %v2380, 0
    %v2549 = vsel %vm2406, %v2381, 0
    %v2552 = vsel %vm2406, %v2382, 0
    %v2555 = vsel %vm2406, %v2383, 0
    %v2558 = vsel %vm2406, %v2384, 0
    %v2561 = vsel %vm2406, %v2385, 0
    %v2564 = vsel %vm2406, %v2386, 0
    %v2567 = vsel %vm2406, %v2387, 0
    %v2570 = vsel %vm2406, %v2388, 0
    %v2573 = vsel %vm2406, %v2389, 0
    %v2576 = vsel %vm2406, %v2390, 0
    %v2579 = vsel %vm2406, %v2391, 0
    %v2582 = vsel %vm2406, %v2392, 0
    %v2585 = vsel %vm2406, %v2393, 0
    %v2588 = vsel %vm2406, %v2394, 0
    %v2591 = vsel %vm2406, %v2395, 0
    %v2594 = vsel %vm2406, %v2396, 0
    %v2597 = vsel %vm2406, %v2397, 0
    %vm2599 = vcmask 1042432
    %v2601 = vsel %vm2599, %v2401, 0
    %2603 = vmatpush.msra.mxu0 0.0
    %2604 = vmatpush.msra.mxu0 0.0
    %2605 = vmatpush.msra.mxu0 0.0
    %2606 = vmatpush.msra.mxu0 0.0
    %2607 = vmatpush.msra.mxu0 0.0
    %2608 = vmatpush.msra.mxu0 0.0
    %2609 = vmatpush.msra.mxu0 0.0
    %2610 = vmatpush.msra.mxu0 0.0
    %2611 = vmatpush.msra.mxu0 0.0
    %2612 = vmatpush.msra.mxu0 0.0
    %2613 = vmatpush.msra.mxu0 0.0
    %2614 = vmatpush.msra.mxu0 0.0
    %2615 = vmatpush.msra.mxu0 %v2601
    %2616 = vmatpush.msra.mxu0 %v2400
    %2617 = vmatpush.msra.mxu0 %v2399
    %2618 = vmatpush.msra.mxu0 %v2398
    %2619 = vmatmul.f32.gmra.mxu0 %v2408
    %v2620 = vpop.f32.mrf.mxu0
    %v2621 = vadd.f32 %v2404, %v2620
    %2622 = vmatmul.f32.gmra.mxu0 %v2411
    %v2623 = vpop.f32.mrf.mxu0
    %v2624 = vadd.f32 %v2404, %v2623
    %2625 = vmatmul.f32.gmra.mxu0 %v2414
    %v2626 = vpop.f32.mrf.mxu0
    %v2627 = vadd.f32 %v2404, %v2626
    %2628 = vmatmul.f32.gmra.mxu0 %v2417
    %v2629 = vpop.f32.mrf.mxu0
    %v2630 = vadd.f32 %v2404, %v2629
    %2631 = vmatmul.f32.gmra.mxu0 %v2420
    %v2632 = vpop.f32.mrf.mxu0
    %v2633 = vadd.f32 %v2404, %v2632
    %2634 = vmatmul.f32.gmra.mxu0 %v2423
    %v2635 = vpop.f32.mrf.mxu0
    %v2636 = vadd.f32 %v2404, %v2635
    %2637 = vmatmul.f32.gmra.mxu0 %v2426
    %v2638 = vpop.f32.mrf.mxu0
    %v2639 = vadd.f32 %v2404, %v2638
    %2640 = vmatmul.f32.gmra.mxu0 %v2429
    %v2641 = vpop.f32.mrf.mxu0
    %v2642 = vadd.f32 %v2404, %v2641
    %2643 = vmatmul.f32.gmra.mxu0 %v2432
    %v2644 = vpop.f32.mrf.mxu0
    %v2645 = vadd.f32 %v2404, %v2644
    %2646 = vmatmul.f32.gmra.mxu0 %v2435
    %v2647 = vpop.f32.mrf.mxu0
    %v2648 = vadd.f32 %v2404, %v2647
    %2649 = vmatmul.f32.gmra.mxu0 %v2438
    %v2650 = vpop.f32.mrf.mxu0
    %v2651 = vadd.f32 %v2404, %v2650
    %2652 = vmatmul.f32.gmra.mxu0 %v2441
    %v2653 = vpop.f32.mrf.mxu0
    %v2654 = vadd.f32 %v2404, %v2653
    %2655 = vmatmul.f32.gmra.mxu0 %v2444
    %v2656 = vpop.f32.mrf.mxu0
    %v2657 = vadd.f32 %v2404, %v2656
    %2658 = vmatmul.f32.gmra.mxu0 %v2447
    %v2659 = vpop.f32.mrf.mxu0
    %v2660 = vadd.f32 %v2404, %v2659
    %2661 = vmatmul.f32.gmra.mxu0 %v2450
    %v2662 = vpop.f32.mrf.mxu0
    %v2663 = vadd.f32 %v2404, %v2662
    %2664 = vmatmul.f32.gmra.mxu0 %v2453
    %v2665 = vpop.f32.mrf.mxu0
    %v2666 = vadd.f32 %v2404, %v2665
    %2667 = vmatmul.f32.gmra.mxu0 %v2456
    %v2668 = vpop.f32.mrf.mxu0
    %v2669 = vadd.f32 %v2404, %v2668
    %2670 = vmatmul.f32.gmra.mxu0 %v2459
    %v2671 = vpop.f32.mrf.mxu0
    %v2672 = vadd.f32 %v2404, %v2671
    %2673 = vmatmul.f32.gmra.mxu0 %v2462
    %v2674 = vpop.f32.mrf.mxu0
    %v2675 = vadd.f32 %v2404, %v2674
    %2676 = vmatmul.f32.gmra.mxu0 %v2465
    %v2677 = vpop.f32.mrf.mxu0
    %v2678 = vadd.f32 %v2404, %v2677
    %2679 = vmatmul.f32.gmra.mxu0 %v2468
    %v2680 = vpop.f32.mrf.mxu0
    %v2681 = vadd.f32 %v2404, %v2680
    %2682 = vmatmul.f32.gmra.mxu0 %v2471
    %v2683 = vpop.f32.mrf.mxu0
    %v2684 = vadd.f32 %v2404, %v2683
    %2685 = vmatmul.f32.gmra.mxu0 %v2474
    %v2686 = vpop.f32.mrf.mxu0
    %v2687 = vadd.f32 %v2404, %v2686
    %2688 = vmatmul.f32.gmra.mxu0 %v2477
    %v2689 = vpop.f32.mrf.mxu0
    %v2690 = vadd.f32 %v2404, %v2689
    %2691 = vmatmul.f32.gmra.mxu0 %v2480
    %v2692 = vpop.f32.mrf.mxu0
    %v2693 = vadd.f32 %v2404, %v2692
    %2694 = vmatmul.f32.gmra.mxu0 %v2483
    %v2695 = vpop.f32.mrf.mxu0
    %v2696 = vadd.f32 %v2404, %v2695
    %2697 = vmatmul.f32.gmra.mxu0 %v2486
    %v2698 = vpop.f32.mrf.mxu0
    %v2699 = vadd.f32 %v2404, %v2698
    %2700 = vmatmul.f32.gmra.mxu0 %v2489
    %v2701 = vpop.f32.mrf.mxu0
    %v2702 = vadd.f32 %v2404, %v2701
    %2703 = vmatmul.f32.gmra.mxu0 %v2492
    %v2704 = vpop.f32.mrf.mxu0
    %v2705 = vadd.f32 %v2404, %v2704
    %2706 = vmatmul.f32.gmra.mxu0 %v2495
    %v2707 = vpop.f32.mrf.mxu0
    %v2708 = vadd.f32 %v2404, %v2707
    %2709 = vmatmul.f32.gmra.mxu0 %v2498
    %v2710 = vpop.f32.mrf.mxu0
    %v2711 = vadd.f32 %v2404, %v2710
    %2712 = vmatmul.f32.gmra.mxu0 %v2501
    %v2713 = vpop.f32.mrf.mxu0
    %v2714 = vadd.f32 %v2404, %v2713
    %2715 = vmatmul.f32.gmra.mxu0 %v2504
    %v2716 = vpop.f32.mrf.mxu0
    %v2717 = vadd.f32 %v2404, %v2716
    %2718 = vmatmul.f32.gmra.mxu0 %v2507
    %v2719 = vpop.f32.mrf.mxu0
    %v2720 = vadd.f32 %v2404, %v2719
    %2721 = vmatmul.f32.gmra.mxu0 %v2510
    %v2722 = vpop.f32.mrf.mxu0
    %v2723 = vadd.f32 %v2404, %v2722
    %2724 = vmatmul.f32.gmra.mxu0 %v2513
    %v2725 = vpop.f32.mrf.mxu0
    %v2726 = vadd.f32 %v2404, %v2725
    %2727 = vmatmul.f32.gmra.mxu0 %v2516
    %v2728 = vpop.f32.mrf.mxu0
    %v2729 = vadd.f32 %v2404, %v2728
    %2730 = vmatmul.f32.gmra.mxu0 %v2519
    %v2731 = vpop.f32.mrf.mxu0
    %v2732 = vadd.f32 %v2404, %v2731
    %2733 = vmatmul.f32.gmra.mxu0 %v2522
    %v2734 = vpop.f32.mrf.mxu0
    %v2735 = vadd.f32 %v2404, %v2734
    %2736 = vmatmul.f32.gmra.mxu0 %v2525
    %v2737 = vpop.f32.mrf.mxu0
    %v2738 = vadd.f32 %v2404, %v2737
    %2739 = vmatmul.f32.gmra.mxu0 %v2528
    %v2740 = vpop.f32.mrf.mxu0
    %v2741 = vadd.f32 %v2404, %v2740
    %2742 = vmatmul.f32.gmra.mxu0 %v2531
    %v2743 = vpop.f32.mrf.mxu0
    %v2744 = vadd.f32 %v2404, %v2743
    %2745 = vmatmul.f32.gmra.mxu0 %v2534
    %v2746 = vpop.f32.mrf.mxu0
    %v2747 = vadd.f32 %v2404, %v2746
    %2748 = vmatmul.f32.gmra.mxu0 %v2537
    %v2749 = vpop.f32.mrf.mxu0
    %v2750 = vadd.f32 %v2404, %v2749
    %2751 = vmatmul.f32.gmra.mxu0 %v2540
    %v2752 = vpop.f32.mrf.mxu0
    %v2753 = vadd.f32 %v2404, %v2752
    %2754 = vmatmul.f32.gmra.mxu0 %v2543
    %v2755 = vpop.f32.mrf.mxu0
    %v2756 = vadd.f32 %v2404, %v2755
    %2757 = vmatmul.f32.gmra.mxu0 %v2546
    %v2758 = vpop.f32.mrf.mxu0
    %v2759 = vadd.f32 %v2404, %v2758
    %2760 = vmatmul.f32.gmra.mxu0 %v2549
    %v2761 = vpop.f32.mrf.mxu0
    %v2762 = vadd.f32 %v2404, %v2761
    %2763 = vmatmul.f32.gmra.mxu0 %v2552
    %v2764 = vpop.f32.mrf.mxu0
    %v2765 = vadd.f32 %v2404, %v2764
    %2766 = vmatmul.f32.gmra.mxu0 %v2555
    %v2767 = vpop.f32.mrf.mxu0
    %v2768 = vadd.f32 %v2404, %v2767
    %2769 = vmatmul.f32.gmra.mxu0 %v2558
    %v2770 = vpop.f32.mrf.mxu0
    %v2771 = vadd.f32 %v2404, %v2770
    %2772 = vmatmul.f32.gmra.mxu0 %v2561
    %v2773 = vpop.f32.mrf.mxu0
    %v2774 = vadd.f32 %v2404, %v2773
    %2775 = vmatmul.f32.gmra.mxu0 %v2564
    %v2776 = vpop.f32.mrf.mxu0
    %v2777 = vadd.f32 %v2404, %v2776
    %2778 = vmatmul.f32.gmra.mxu0 %v2567
    %v2779 = vpop.f32.mrf.mxu0
    %v2780 = vadd.f32 %v2404, %v2779
    %2781 = vmatmul.f32.gmra.mxu0 %v2570
    %v2782 = vpop.f32.mrf.mxu0
    %v2783 = vadd.f32 %v2404, %v2782
    %2784 = vmatmul.f32.gmra.mxu0 %v2573
    %v2785 = vpop.f32.mrf.mxu0
    %v2786 = vadd.f32 %v2404, %v2785
    %2787 = vmatmul.f32.gmra.mxu0 %v2576
    %v2788 = vpop.f32.mrf.mxu0
    %v2789 = vadd.f32 %v2404, %v2788
    %2790 = vmatmul.f32.gmra.mxu0 %v2579
    %v2791 = vpop.f32.mrf.mxu0
    %v2792 = vadd.f32 %v2404, %v2791
    %2793 = vmatmul.f32.gmra.mxu0 %v2582
    %v2794 = vpop.f32.mrf.mxu0
    %v2795 = vadd.f32 %v2404, %v2794
    %2796 = vmatmul.f32.gmra.mxu0 %v2585
    %v2797 = vpop.f32.mrf.mxu0
    %v2798 = vadd.f32 %v2404, %v2797
    %2799 = vmatmul.f32.gmra.mxu0 %v2588
    %v2800 = vpop.f32.mrf.mxu0
    %v2801 = vadd.f32 %v2404, %v2800
    %2802 = vmatmul.f32.gmra.mxu0 %v2591
    %v2803 = vpop.f32.mrf.mxu0
    %v2804 = vadd.f32 %v2404, %v2803
    %2805 = vmatmul.f32.gmra.mxu0 %v2594
    %v2806 = vpop.f32.mrf.mxu0
    %v2807 = vadd.f32 %v2404, %v2806
    %2808 = vmatmul.f32.gmra.mxu0 %v2597
    %v2809 = vpop.f32.mrf.mxu0
    %v2810 = vadd.f32 %v2404, %v2809
    %2811 = vdwg.mxu0
    %v2812 = vmax.f32 %v2621, 0.0
    %v2813 = vmax.f32 %v2624, 0.0
    %v2814 = vmax.f32 %v2627, 0.0
    %v2815 = vmax.f32 %v2630, 0.0
    %v2816 = vmax.f32 %v2633, 0.0
    %v2817 = vmax.f32 %v2636, 0.0
    %v2818 = vmax.f32 %v2639, 0.0
    %v2819 = vmax.f32 %v2642, 0.0
    %v2820 = vmax.f32 %v2645, 0.0
    %v2821 = vmax.f32 %v2648, 0.0
    %v2822 = vmax.f32 %v2651, 0.0
    %v2823 = vmax.f32 %v2654, 0.0
    %v2824 = vmax.f32 %v2657, 0.0
    %v2825 = vmax.f32 %v2660, 0.0
    %v2826 = vmax.f32 %v2663, 0.0
    %v2827 = vmax.f32 %v2666, 0.0
    %v2828 = vmax.f32 %v2669, 0.0
    %v2829 = vmax.f32 %v2672, 0.0
    %v2830 = vmax.f32 %v2675, 0.0
    %v2831 = vmax.f32 %v2678, 0.0
    %v2832 = vmax.f32 %v2681, 0.0
    %v2833 = vmax.f32 %v2684, 0.0
    %v2834 = vmax.f32 %v2687, 0.0
    %v2835 = vmax.f32 %v2690, 0.0
    %v2836 = vmax.f32 %v2693, 0.0
    %v2837 = vmax.f32 %v2696, 0.0
    %v2838 = vmax.f32 %v2699, 0.0
    %v2839 = vmax.f32 %v2702, 0.0
    %v2840 = vmax.f32 %v2705, 0.0
    %v2841 = vmax.f32 %v2708, 0.0
    %v2842 = vmax.f32 %v2711, 0.0
    %v2843 = vmax.f32 %v2714, 0.0
    %v2844 = vmax.f32 %v2717, 0.0
    %v2845 = vmax.f32 %v2720, 0.0
    %v2846 = vmax.f32 %v2723, 0.0
    %v2847 = vmax.f32 %v2726, 0.0
    %v2848 = vmax.f32 %v2729, 0.0
    %v2849 = vmax.f32 %v2732, 0.0
    %v2850 = vmax.f32 %v2735, 0.0
    %v2851 = vmax.f32 %v2738, 0.0
    %v2852 = vmax.f32 %v2741, 0.0
    %v2853 = vmax.f32 %v2744, 0.0
    %v2854 = vmax.f32 %v2747, 0.0
    %v2855 = vmax.f32 %v2750, 0.0
    %v2856 = vmax.f32 %v2753, 0.0
    %v2857 = vmax.f32 %v2756, 0.0
    %v2858 = vmax.f32 %v2759, 0.0
    %v2859 = vmax.f32 %v2762, 0.0
    %v2860 = vmax.f32 %v2765, 0.0
    %v2861 = vmax.f32 %v2768, 0.0
    %v2862 = vmax.f32 %v2771, 0.0
    %v2863 = vmax.f32 %v2774, 0.0
    %v2864 = vmax.f32 %v2777, 0.0
    %v2865 = vmax.f32 %v2780, 0.0
    %v2866 = vmax.f32 %v2783, 0.0
    %v2867 = vmax.f32 %v2786, 0.0
    %v2868 = vmax.f32 %v2789, 0.0
    %v2869 = vmax.f32 %v2792, 0.0
    %v2870 = vmax.f32 %v2795, 0.0
    %v2871 = vmax.f32 %v2798, 0.0
    %v2872 = vmax.f32 %v2801, 0.0
    %v2873 = vmax.f32 %v2804, 0.0
    %v2874 = vmax.f32 %v2807, 0.0
    %v2875 = vmax.f32 %v2810, 0.0
    %vm2940 = vcmask 1046528
    %v2941 = vrot.slane %v2812, 1
    %v2942 = vrot.slane %v2813, 1
    %v2943 = vsel %vm2940, %v2941, %v2942
    %v2944 = vrot.slane %v2814, 1
    %v2945 = vsel %vm2940, %v2942, %v2944
    %v2946 = vrot.slane %v2815, 1
    %v2947 = vsel %vm2940, %v2944, %v2946
    %v2948 = vrot.slane %v2816, 1
    %v2949 = vsel %vm2940, %v2946, %v2948
    %v2950 = vrot.slane %v2817, 1
    %v2951 = vsel %vm2940, %v2948, %v2950
    %v2952 = vrot.slane %v2818, 1
    %v2953 = vsel %vm2940, %v2950, %v2952
    %v2954 = vrot.slane %v2819, 1
    %v2955 = vsel %vm2940, %v2952, %v2954
    %v2956 = vrot.slane %v2820, 1
    %v2957 = vsel %vm2940, %v2954, %v2956
    %v2958 = vrot.slane %v2821, 1
    %v2959 = vsel %vm2940, %v2956, %v2958
    %v2960 = vrot.slane %v2822, 1
    %v2961 = vsel %vm2940, %v2958, %v2960
    %v2962 = vrot.slane %v2823, 1
    %v2963 = vsel %vm2940, %v2960, %v2962
    %v2964 = vrot.slane %v2824, 1
    %v2965 = vsel %vm2940, %v2962, %v2964
    %v2966 = vrot.slane %v2825, 1
    %v2967 = vsel %vm2940, %v2964, %v2966
    %v2968 = vrot.slane %v2826, 1
    %v2969 = vsel %vm2940, %v2966, %v2968
    %v2970 = vrot.slane %v2827, 1
    %v2971 = vsel %vm2940, %v2968, %v2970
    %v2972 = vrot.slane %v2828, 1
    %v2973 = vsel %vm2940, %v2970, %v2972
    %v2974 = vrot.slane %v2829, 1
    %v2975 = vsel %vm2940, %v2972, %v2974
    %v2976 = vrot.slane %v2830, 1
    %v2977 = vsel %vm2940, %v2974, %v2976
    %v2978 = vrot.slane %v2831, 1
    %v2979 = vsel %vm2940, %v2976, %v2978
    %v2980 = vrot.slane %v2832, 1
    %v2981 = vsel %vm2940, %v2978, %v2980
    %v2982 = vrot.slane %v2833, 1
    %v2983 = vsel %vm2940, %v2980, %v2982
    %v2984 = vrot.slane %v2834, 1
    %v2985 = vsel %vm2940, %v2982, %v2984
    %v2986 = vrot.slane %v2835, 1
    %v2987 = vsel %vm2940, %v2984, %v2986
    %v2988 = vrot.slane %v2836, 1
    %v2989 = vsel %vm2940, %v2986, %v2988
    %v2990 = vrot.slane %v2837, 1
    %v2991 = vsel %vm2940, %v2988, %v2990
    %v2992 = vrot.slane %v2838, 1
    %v2993 = vsel %vm2940, %v2990, %v2992
    %v2994 = vrot.slane %v2839, 1
    %v2995 = vsel %vm2940, %v2992, %v2994
    %v2996 = vrot.slane %v2840, 1
    %v2997 = vsel %vm2940, %v2994, %v2996
    %v2998 = vrot.slane %v2841, 1
    %v2999 = vsel %vm2940, %v2996, %v2998
    %v3000 = vrot.slane %v2842, 1
    %v3001 = vsel %vm2940, %v2998, %v3000
    %v3002 = vrot.slane %v2843, 1
    %v3003 = vsel %vm2940, %v3000, %v3002
    %v3004 = vrot.slane %v2844, 1
    %v3005 = vsel %vm2940, %v3002, %v3004
    %v3006 = vrot.slane %v2845, 1
    %v3007 = vsel %vm2940, %v3004, %v3006
    %v3008 = vrot.slane %v2846, 1
    %v3009 = vsel %vm2940, %v3006, %v3008
    %v3010 = vrot.slane %v2847, 1
    %v3011 = vsel %vm2940, %v3008, %v3010
    %v3012 = vrot.slane %v2848, 1
    %v3013 = vsel %vm2940, %v3010, %v3012
    %v3014 = vrot.slane %v2849, 1
    %v3015 = vsel %vm2940, %v3012, %v3014
    %v3016 = vrot.slane %v2850, 1
    %v3017 = vsel %vm2940, %v3014, %v3016
    %v3018 = vrot.slane %v2851, 1
    %v3019 = vsel %vm2940, %v3016, %v3018
    %v3020 = vrot.slane %v2852, 1
    %v3021 = vsel %vm2940, %v3018, %v3020
    %v3022 = vrot.slane %v2853, 1
    %v3023 = vsel %vm2940, %v3020, %v3022
    %v3024 = vrot.slane %v2854, 1
    %v3025 = vsel %vm2940, %v3022, %v3024
    %v3026 = vrot.slane %v2855, 1
    %v3027 = vsel %vm2940, %v3024, %v3026
    %v3028 = vrot.slane %v2856, 1
    %v3029 = vsel %vm2940, %v3026, %v3028
    %v3030 = vrot.slane %v2857, 1
    %v3031 = vsel %vm2940, %v3028, %v3030
    %v3032 = vrot.slane %v2858, 1
    %v3033 = vsel %vm2940, %v3030, %v3032
    %v3034 = vrot.slane %v2859, 1
    %v3035 = vsel %vm2940, %v3032, %v3034
    %v3036 = vrot.slane %v2860, 1
    %v3037 = vsel %vm2940, %v3034, %v3036
    %v3038 = vrot.slane %v2861, 1
    %v3039 = vsel %vm2940, %v3036, %v3038
    %v3040 = vrot.slane %v2862, 1
    %v3041 = vsel %vm2940, %v3038, %v3040
    %v3042 = vrot.slane %v2863, 1
    %v3043 = vsel %vm2940, %v3040, %v3042
    %v3044 = vrot.slane %v2864, 1
    %v3045 = vsel %vm2940, %v3042, %v3044
    %v3046 = vrot.slane %v2865, 1
    %v3047 = vsel %vm2940, %v3044, %v3046
    %v3048 = vrot.slane %v2866, 1
    %v3049 = vsel %vm2940, %v3046, %v3048
    %v3050 = vrot.slane %v2867, 1
    %v3051 = vsel %vm2940, %v3048, %v3050
    %v3052 = vrot.slane %v2868, 1
    %v3053 = vsel %vm2940, %v3050, %v3052
    %v3054 = vrot.slane %v2869, 1
    %v3055 = vsel %vm2940, %v3052, %v3054
    %v3056 = vrot.slane %v2870, 1
    %v3057 = vsel %vm2940, %v3054, %v3056
    %v3058 = vrot.slane %v2871, 1
    %v3059 = vsel %vm2940, %v3056, %v3058
    %v3060 = vrot.slane %v2872, 1
    %v3061 = vsel %vm2940, %v3058, %v3060
    %v3062 = vrot.slane %v2873, 1
    %v3063 = vsel %vm2940, %v3060, %v3062
    %v3064 = vrot.slane %v2874, 1
    %v3065 = vsel %vm2940, %v3062, %v3064
    %v3066 = vrot.slane %v2875, 1
    %v3067 = vsel %vm2940, %v3064, %v3066
    %v3132 = vmax.f32 %v2812, %v2943
    %v3133 = vmax.f32 %v2813, %v2945
    %v3134 = vmax.f32 %v2814, %v2947
    %v3135 = vmax.f32 %v2815, %v2949
    %v3136 = vmax.f32 %v2816, %v2951
    %v3137 = vmax.f32 %v2817, %v2953
    %v3138 = vmax.f32 %v2818, %v2955
    %v3139 = vmax.f32 %v2819, %v2957
    %v3140 = vmax.f32 %v2820, %v2959
    %v3141 = vmax.f32 %v2821, %v2961
    %v3142 = vmax.f32 %v2822, %v2963
    %v3143 = vmax.f32 %v2823, %v2965
    %v3144 = vmax.f32 %v2824, %v2967
    %v3145 = vmax.f32 %v2825, %v2969
    %v3146 = vmax.f32 %v2826, %v2971
    %v3147 = vmax.f32 %v2827, %v2973
    %v3148 = vmax.f32 %v2828, %v2975
    %v3149 = vmax.f32 %v2829, %v2977
    %v3150 = vmax.f32 %v2830, %v2979
    %v3151 = vmax.f32 %v2831, %v2981
    %v3152 = vmax.f32 %v2832, %v2983
    %v3153 = vmax.f32 %v2833, %v2985
    %v3154 = vmax.f32 %v2834, %v2987
    %v3155 = vmax.f32 %v2835, %v2989
    %v3156 = vmax.f32 %v2836, %v2991
    %v3157 = vmax.f32 %v2837, %v2993
    %v3158 = vmax.f32 %v2838, %v2995
    %v3159 = vmax.f32 %v2839, %v2997
    %v3160 = vmax.f32 %v2840, %v2999
    %v3161 = vmax.f32 %v2841, %v3001
    %v3162 = vmax.f32 %v2842, %v3003
    %v3163 = vmax.f32 %v2843, %v3005
    %v3164 = vmax.f32 %v2844, %v3007
    %v3165 = vmax.f32 %v2845, %v3009
    %v3166 = vmax.f32 %v2846, %v3011
    %v3167 = vmax.f32 %v2847, %v3013
    %v3168 = vmax.f32 %v2848, %v3015
    %v3169 = vmax.f32 %v2849, %v3017
    %v3170 = vmax.f32 %v2850, %v3019
    %v3171 = vmax.f32 %v2851, %v3021
    %v3172 = vmax.f32 %v2852, %v3023
    %v3173 = vmax.f32 %v2853, %v3025
    %v3174 = vmax.f32 %v2854, %v3027
    %v3175 = vmax.f32 %v2855, %v3029
    %v3176 = vmax.f32 %v2856, %v3031
    %v3177 = vmax.f32 %v2857, %v3033
    %v3178 = vmax.f32 %v2858, %v3035
    %v3179 = vmax.f32 %v2859, %v3037
    %v3180 = vmax.f32 %v2860, %v3039
    %v3181 = vmax.f32 %v2861, %v3041
    %v3182 = vmax.f32 %v2862, %v3043
    %v3183 = vmax.f32 %v2863, %v3045
    %v3184 = vmax.f32 %v2864, %v3047
    %v3185 = vmax.f32 %v2865, %v3049
    %v3186 = vmax.f32 %v2866, %v3051
    %v3187 = vmax.f32 %v2867, %v3053
    %v3188 = vmax.f32 %v2868, %v3055
    %v3189 = vmax.f32 %v2869, %v3057
    %v3190 = vmax.f32 %v2870, %v3059
    %v3191 = vmax.f32 %v2871, %v3061
    %v3192 = vmax.f32 %v2872, %v3063
    %v3193 = vmax.f32 %v2873, %v3065
    %v3194 = vmax.f32 %v2874, %v3067
    %v3195 = vmax.f32 %v2875, %v3066
    %v3196 = vmax.f32 %v3132, %v3134
    %v3197 = vmax.f32 %v3133, %v3135
    %v3198 = vmax.f32 %v3134, %v3136
    %v3199 = vmax.f32 %v3135, %v3137
    %v3200 = vmax.f32 %v3136, %v3138
    %v3201 = vmax.f32 %v3137, %v3139
    %v3202 = vmax.f32 %v3138, %v3140
    %v3203 = vmax.f32 %v3139, %v3141
    %v3204 = vmax.f32 %v3140, %v3142
    %v3205 = vmax.f32 %v3141, %v3143
    %v3206 = vmax.f32 %v3142, %v3144
    %v3207 = vmax.f32 %v3143, %v3145
    %v3208 = vmax.f32 %v3144, %v3146
    %v3209 = vmax.f32 %v3145, %v3147
    %v3210 = vmax.f32 %v3146, %v3148
    %v3211 = vmax.f32 %v3147, %v3149
    %v3212 = vmax.f32 %v3148, %v3150
    %v3213 = vmax.f32 %v3149, %v3151
    %v3214 = vmax.f32 %v3150, %v3152
    %v3215 = vmax.f32 %v3151, %v3153
    %v3216 = vmax.f32 %v3152, %v3154
    %v3217 = vmax.f32 %v3153, %v3155
    %v3218 = vmax.f32 %v3154, %v3156
    %v3219 = vmax.f32 %v3155, %v3157
    %v3220 = vmax.f32 %v3156, %v3158
    %v3221 = vmax.f32 %v3157, %v3159
    %v3222 = vmax.f32 %v3158, %v3160
    %v3223 = vmax.f32 %v3159, %v3161
    %v3224 = vmax.f32 %v3160, %v3162
    %v3225 = vmax.f32 %v3161, %v3163
    %v3226 = vmax.f32 %v3162, %v3164
    %v3227 = vmax.f32 %v3163, %v3165
    %v3228 = vmax.f32 %v3164, %v3166
    %v3229 = vmax.f32 %v3165, %v3167
    %v3230 = vmax.f32 %v3166, %v3168
    %v3231 = vmax.f32 %v3167, %v3169
    %v3232 = vmax.f32 %v3168, %v3170
    %v3233 = vmax.f32 %v3169, %v3171
    %v3234 = vmax.f32 %v3170, %v3172
    %v3235 = vmax.f32 %v3171, %v3173
    %v3236 = vmax.f32 %v3172, %v3174
    %v3237 = vmax.f32 %v3173, %v3175
    %v3238 = vmax.f32 %v3174, %v3176
    %v3239 = vmax.f32 %v3175, %v3177
    %v3240 = vmax.f32 %v3176, %v3178
    %v3241 = vmax.f32 %v3177, %v3179
    %v3242 = vmax.f32 %v3178, %v3180
    %v3243 = vmax.f32 %v3179, %v3181
    %v3244 = vmax.f32 %v3180, %v3182
    %v3245 = vmax.f32 %v3181, %v3183
    %v3246 = vmax.f32 %v3182, %v3184
    %v3247 = vmax.f32 %v3183, %v3185
    %v3248 = vmax.f32 %v3184, %v3186
    %v3249 = vmax.f32 %v3185, %v3187
    %v3250 = vmax.f32 %v3186, %v3188
    %v3251 = vmax.f32 %v3187, %v3189
    %v3252 = vmax.f32 %v3188, %v3190
    %v3253 = vmax.f32 %v3189, %v3191
    %v3254 = vmax.f32 %v3190, %v3192
    %v3255 = vmax.f32 %v3191, %v3193
    %v3256 = vmax.f32 %v3192, %v3194
    %v3257 = vmax.f32 %v3193, %v3195
    %v3258 = vld [vmem:[%s3] sm:$0xff]
    %v3259 = vld [vmem:[%s3 + $0x8] sm:$0xff]
    %v3260 = vld [vmem:[%s3 + $0x10] sm:$0xff]
    %v3261 = vld [vmem:[%s3 + $0x18] sm:$0xff]
    %v3262 = vld [vmem:[%s3 + $0x20] sm:$0xff]
    %v3263 = vld [vmem:[%s3 + $0x28] sm:$0xff]
    %v3264 = vld [vmem:[%s3 + $0x30] sm:$0xff]
    %v3265 = vld [vmem:[%s3 + $0x38] sm:$0xff]
    %v3266 = vld [vmem:[%s3 + $0x40] sm:$0xff]
    %v3267 = vld [vmem:[%s3 + $0x48] sm:$0xff]
    %v3268 = vld [vmem:[%s3 + $0x50] sm:$0xff]
    %v3269 = vld [vmem:[%s3 + $0x58] sm:$0xff]
    %v3270 = vld [vmem:[%s3 + $0x60] sm:$0xff]
    %v3271 = vld [vmem:[%s3 + $0x68] sm:$0xff]
    %v3272 = vld [vmem:[%s3 + $0x70] sm:$0xff]
    %v3273 = vld [vmem:[%s3 + $0x78] sm:$0xff]
    %v3274 = vld [vmem:[%s3 + $0x80] sm:$0xff]
    %v3275 = vld [vmem:[%s3 + $0x88] sm:$0xff]
    %v3276 = vld [vmem:[%s3 + $0x90] sm:$0xff]
    %v3277 = vld [vmem:[%s3 + $0x98] sm:$0xff]
    %v3278 = vld [vmem:[%s3 + $0xa0] sm:$0xff]
    %v3279 = vld [vmem:[%s3 + $0xa8] sm:$0xff]
    %v3280 = vld [vmem:[%s3 + $0xb0] sm:$0xff]
    %v3281 = vld [vmem:[%s3 + $0xb8] sm:$0xff]
    %v3282 = vld [vmem:[%s3 + $0xc0] sm:$0xff]
    %v3283 = vld [vmem:[%s3 + $0xc8] sm:$0xff]
    %v3284 = vld [vmem:[%s3 + $0xd0] sm:$0xff]
    %v3285 = vld [vmem:[%s3 + $0xd8] sm:$0xff]
    %v3286 = vld [vmem:[%s3 + $0xe0] sm:$0xff]
    %v3287 = vld [vmem:[%s3 + $0xe8] sm:$0xff]
    %v3288 = vld [vmem:[%s3 + $0xf0] sm:$0xff]
    %v3289 = vld [vmem:[%s3 + $0xf8] sm:$0xff]
    %v3290 = vld [vmem:[%s3 + $0x100] sm:$0xff]
    %v3291 = vld [vmem:[%s3 + $0x108] sm:$0xff]
    %v3292 = vld [vmem:[%s3 + $0x110] sm:$0xff]
    %v3293 = vld [vmem:[%s3 + $0x118] sm:$0xff]
    %v3294 = vld [vmem:[%s3 + $0x120] sm:$0xff]
    %v3295 = vld [vmem:[%s3 + $0x128] sm:$0xff]
    %v3296 = vld [vmem:[%s3 + $0x130] sm:$0xff]
    %v3297 = vld [vmem:[%s3 + $0x138] sm:$0xff]
    %v3298 = vld [vmem:[%s3 + $0x140] sm:$0xff]
    %v3299 = vld [vmem:[%s3 + $0x148] sm:$0xff]
    %v3300 = vld [vmem:[%s3 + $0x150] sm:$0xff]
    %v3301 = vld [vmem:[%s3 + $0x158] sm:$0xff]
    %v3302 = vld [vmem:[%s3 + $0x160] sm:$0xff]
    %v3303 = vld [vmem:[%s3 + $0x168] sm:$0xff]
    %v3304 = vld [vmem:[%s3 + $0x170] sm:$0xff]
    %v3305 = vld [vmem:[%s3 + $0x178] sm:$0xff]
    %v3306 = vld [vmem:[%s3 + $0x180] sm:$0xff]
    %v3307 = vld [vmem:[%s3 + $0x188] sm:$0xff]
    %v3308 = vld [vmem:[%s3 + $0x190] sm:$0xff]
    %v3309 = vld [vmem:[%s3 + $0x198] sm:$0xff]
    %v3310 = vld [vmem:[%s3 + $0x1a0] sm:$0xff]
    %v3311 = vld [vmem:[%s3 + $0x1a8] sm:$0xff]
    %v3312 = vld [vmem:[%s3 + $0x1b0] sm:$0xff]
    %v3313 = vld [vmem:[%s3 + $0x1b8] sm:$0xff]
    %v3314 = vld [vmem:[%s3 + $0x1c0] sm:$0x3]
    %v3315 = vld [vmem:[%s3 + $0x1c8] sm:$0x3]
    %v3316 = vld [vmem:[%s3 + $0x1d0] sm:$0x3]
    %v3317 = vld [vmem:[%s3 + $0x1d8] sm:$0x3]
    %vm3318 = vcmask 908288
    %v3320 = vsel %vm3318, %v3261, 0
    %v3323 = vsel %vm3318, %v3265, 0
    %v3326 = vsel %vm3318, %v3269, 0
    %v3329 = vsel %vm3318, %v3273, 0
    %v3332 = vsel %vm3318, %v3277, 0
    %v3335 = vsel %vm3318, %v3281, 0
    %v3338 = vsel %vm3318, %v3285, 0
    %v3341 = vsel %vm3318, %v3289, 0
    %v3344 = vsel %vm3318, %v3293, 0
    %v3347 = vsel %vm3318, %v3297, 0
    %v3350 = vsel %vm3318, %v3301, 0
    %v3353 = vsel %vm3318, %v3305, 0
    %v3356 = vsel %vm3318, %v3309, 0
    %v3359 = vsel %vm3318, %v3313, 0
    %v3362 = vsel %vm3318, %v3317, 0
    %v3365 = vsel %vm2940, %v3257, 0
    %3367 = vmatpush.msra.mxu0 %v3211
    %3368 = vmatpush.msra.mxu0 %v3210
    %3369 = vmatpush.msra.mxu0 %v3209
    %3370 = vmatpush.msra.mxu0 %v3208
    %3371 = vmatpush.msra.mxu0 %v3207
    %3372 = vmatpush.msra.mxu0 %v3206
    %3373 = vmatpush.msra.mxu0 %v3205
    %3374 = vmatpush.msra.mxu0 %v3204
    %3375 = vmatpush.msra.mxu0 %v3203
    %3376 = vmatpush.msra.mxu0 %v3202
    %3377 = vmatpush.msra.mxu0 %v3201
    %3378 = vmatpush.msra.mxu0 %v3200
    %3379 = vmatpush.msra.mxu0 %v3199
    %3380 = vmatpush.msra.mxu0 %v3198
    %3381 = vmatpush.msra.mxu0 %v3197
    %3382 = vmatpush.msra.mxu0 %v3196
    %3383 = vmatmul.f32.gmra.mxu0 %v3258
    %v3384 = vpop.f32.mrf.mxu0
    %v3385 = vadd.f32 0.0, %v3384
    %3386 = vmatmul.f32.gmra.mxu0 %v3262
    %v3387 = vpop.f32.mrf.mxu0
    %v3388 = vadd.f32 0.0, %v3387
    %3389 = vmatmul.f32.gmra.mxu0 %v3266
    %v3390 = vpop.f32.mrf.mxu0
    %v3391 = vadd.f32 0.0, %v3390
    %3392 = vmatmul.f32.gmra.mxu0 %v3270
    %v3393 = vpop.f32.mrf.mxu0
    %v3394 = vadd.f32 0.0, %v3393
    %3395 = vmatmul.f32.gmra.mxu0 %v3274
    %v3396 = vpop.f32.mrf.mxu0
    %v3397 = vadd.f32 0.0, %v3396
    %3398 = vmatmul.f32.gmra.mxu0 %v3278
    %v3399 = vpop.f32.mrf.mxu0
    %v3400 = vadd.f32 0.0, %v3399
    %3401 = vmatmul.f32.gmra.mxu0 %v3282
    %v3402 = vpop.f32.mrf.mxu0
    %v3403 = vadd.f32 0.0, %v3402
    %3404 = vmatmul.f32.gmra.mxu0 %v3286
    %v3405 = vpop.f32.mrf.mxu0
    %v3406 = vadd.f32 0.0, %v3405
    %3407 = vmatmul.f32.gmra.mxu0 %v3290
    %v3408 = vpop.f32.mrf.mxu0
    %v3409 = vadd.f32 0.0, %v3408
    %3410 = vmatmul.f32.gmra.mxu0 %v3294
    %v3411 = vpop.f32.mrf.mxu0
    %v3412 = vadd.f32 0.0, %v3411
    %3413 = vmatmul.f32.gmra.mxu0 %v3298
    %v3414 = vpop.f32.mrf.mxu0
    %v3415 = vadd.f32 0.0, %v3414
    %3416 = vmatmul.f32.gmra.mxu0 %v3302
    %v3417 = vpop.f32.mrf.mxu0
    %v3418 = vadd.f32 0.0, %v3417
    %3419 = vmatmul.f32.gmra.mxu0 %v3306
    %v3420 = vpop.f32.mrf.mxu0
    %v3421 = vadd.f32 0.0, %v3420
    %3422 = vmatmul.f32.gmra.mxu0 %v3310
    %v3423 = vpop.f32.mrf.mxu0
    %v3424 = vadd.f32 0.0, %v3423
    %3425 = vmatmul.f32.gmra.mxu0 %v3314
    %v3426 = vpop.f32.mrf.mxu0
    %v3427 = vadd.f32 0.0, %v3426
    %3428 = vdwg.mxu0
    %3429 = vmatpush.msra.mxu0 %v3227
    %3430 = vmatpush.msra.mxu0 %v3226
    %3431 = vmatpush.msra.mxu0 %v3225
    %3432 = vmatpush.msra.mxu0 %v3224
    %3433 = vmatpush.msra.mxu0 %v3223
    %3434 = vmatpush.msra.mxu0 %v3222
    %3435 = vmatpush.msra.mxu0 %v3221
    %3436 = vmatpush.msra.mxu0 %v3220
    %3437 = vmatpush.msra.mxu0 %v3219
    %3438 = vmatpush.msra.mxu0 %v3218
    %3439 = vmatpush.msra.mxu0 %v3217
    %3440 = vmatpush.msra.mxu0 %v3216
    %3441 = vmatpush.msra.mxu0 %v3215
    %3442 = vmatpush.msra.mxu0 %v3214
    %3443 = vmatpush.msra.mxu0 %v3213
    %3444 = vmatpush.msra.mxu0 %v3212
    %3445 = vmatmul.f32.gmra.mxu0 %v3259
    %v3446 = vpop.f32.mrf.mxu0
    %v3447 = vadd.f32 %v3385, %v3446
    %3448 = vmatmul.f32.gmra.mxu0 %v3263
    %v3449 = vpop.f32.mrf.mxu0
    %v3450 = vadd.f32 %v3388, %v3449
    %3451 = vmatmul.f32.gmra.mxu0 %v3267
    %v3452 = vpop.f32.mrf.mxu0
    %v3453 = vadd.f32 %v3391, %v3452
    %3454 = vmatmul.f32.gmra.mxu0 %v3271
    %v3455 = vpop.f32.mrf.mxu0
    %v3456 = vadd.f32 %v3394, %v3455
    %3457 = vmatmul.f32.gmra.mxu0 %v3275
    %v3458 = vpop.f32.mrf.mxu0
    %v3459 = vadd.f32 %v3397, %v3458
    %3460 = vmatmul.f32.gmra.mxu0 %v3279
    %v3461 = vpop.f32.mrf.mxu0
    %v3462 = vadd.f32 %v3400, %v3461
    %3463 = vmatmul.f32.gmra.mxu0 %v3283
    %v3464 = vpop.f32.mrf.mxu0
    %v3465 = vadd.f32 %v3403, %v3464
    %3466 = vmatmul.f32.gmra.mxu0 %v3287
    %v3467 = vpop.f32.mrf.mxu0
    %v3468 = vadd.f32 %v3406, %v3467
    %3469 = vmatmul.f32.gmra.mxu0 %v3291
    %v3470 = vpop.f32.mrf.mxu0
    %v3471 = vadd.f32 %v3409, %v3470
    %3472 = vmatmul.f32.gmra.mxu0 %v3295
    %v3473 = vpop.f32.mrf.mxu0
    %v3474 = vadd.f32 %v3412, %v3473
    %3475 = vmatmul.f32.gmra.mxu0 %v3299
    %v3476 = vpop.f32.mrf.mxu0
    %v3477 = vadd.f32 %v3415, %v3476
    %3478 = vmatmul.f32.gmra.mxu0 %v3303
    %v3479 = vpop.f32.mrf.mxu0
    %v3480 = vadd.f32 %v3418, %v3479
    %3481 = vmatmul.f32.gmra.mxu0 %v3307
    %v3482 = vpop.f32.mrf.mxu0
    %v3483 = vadd.f32 %v3421, %v3482
    %3484 = vmatmul.f32.gmra.mxu0 %v3311
    %v3485 = vpop.f32.mrf.mxu0
    %v3486 = vadd.f32 %v3424, %v3485
    %3487 = vmatmul.f32.gmra.mxu0 %v3315
    %v3488 = vpop.f32.mrf.mxu0
    %v3489 = vadd.f32 %v3427, %v3488
    %3490 = vdwg.mxu0
    %3491 = vmatpush.msra.mxu0 %v3243
    %3492 = vmatpush.msra.mxu0 %v3242
    %3493 = vmatpush.msra.mxu0 %v3241
    %3494 = vmatpush.msra.mxu0 %v3240
    %3495 = vmatpush.msra.mxu0 %v3239
    %3496 = vmatpush.msra.mxu0 %v3238
    %3497 = vmatpush.msra.mxu0 %v3237
    %3498 = vmatpush.msra.mxu0 %v3236
    %3499 = vmatpush.msra.mxu0 %v3235
    %3500 = vmatpush.msra.mxu0 %v3234
    %3501 = vmatpush.msra.mxu0 %v3233
    %3502 = vmatpush.msra.mxu0 %v3232
    %3503 = vmatpush.msra.mxu0 %v3231
    %3504 = vmatpush.msra.mxu0 %v3230
    %3505 = vmatpush.msra.mxu0 %v3229
    %3506 = vmatpush.msra.mxu0 %v3228
    %3507 = vmatmul.f32.gmra.mxu0 %v3260
    %v3508 = vpop.f32.mrf.mxu0
    %v3509 = vadd.f32 %v3447, %v3508
    %3510 = vmatmul.f32.gmra.mxu0 %v3264
    %v3511 = vpop.f32.mrf.mxu0
    %v3512 = vadd.f32 %v3450, %v3511
    %3513 = vmatmul.f32.gmra.mxu0 %v3268
    %v3514 = vpop.f32.mrf.mxu0
    %v3515 = vadd.f32 %v3453, %v3514
    %3516 = vmatmul.f32.gmra.mxu0 %v3272
    %v3517 = vpop.f32.mrf.mxu0
    %v3518 = vadd.f32 %v3456, %v3517
    %3519 = vmatmul.f32.gmra.mxu0 %v3276
    %v3520 = vpop.f32.mrf.mxu0
    %v3521 = vadd.f32 %v3459, %v3520
    %3522 = vmatmul.f32.gmra.mxu0 %v3280
    %v3523 = vpop.f32.mrf.mxu0
    %v3524 = vadd.f32 %v3462, %v3523
    %3525 = vmatmul.f32.gmra.mxu0 %v3284
    %v3526 = vpop.f32.mrf.mxu0
    %v3527 = vadd.f32 %v3465, %v3526
    %3528 = vmatmul.f32.gmra.mxu0 %v3288
    %v3529 = vpop.f32.mrf.mxu0
    %v3530 = vadd.f32 %v3468, %v3529
    %3531 = vmatmul.f32.gmra.mxu0 %v3292
    %v3532 = vpop.f32.mrf.mxu0
    %v3533 = vadd.f32 %v3471, %v3532
    %3534 = vmatmul.f32.gmra.mxu0 %v3296
    %v3535 = vpop.f32.mrf.mxu0
    %v3536 = vadd.f32 %v3474, %v3535
    %3537 = vmatmul.f32.gmra.mxu0 %v3300
    %v3538 = vpop.f32.mrf.mxu0
    %v3539 = vadd.f32 %v3477, %v3538
    %3540 = vmatmul.f32.gmra.mxu0 %v3304
    %v3541 = vpop.f32.mrf.mxu0
    %v3542 = vadd.f32 %v3480, %v3541
    %3543 = vmatmul.f32.gmra.mxu0 %v3308
    %v3544 = vpop.f32.mrf.mxu0
    %v3545 = vadd.f32 %v3483, %v3544
    %3546 = vmatmul.f32.gmra.mxu0 %v3312
    %v3547 = vpop.f32.mrf.mxu0
    %v3548 = vadd.f32 %v3486, %v3547
    %3549 = vmatmul.f32.gmra.mxu0 %v3316
    %v3550 = vpop.f32.mrf.mxu0
    %v3551 = vadd.f32 %v3489, %v3550
    %3552 = vdwg.mxu0
    %3553 = vmatpush.msra.mxu0 0.0
    %3554 = vmatpush.msra.mxu0 0.0
    %3555 = vmatpush.msra.mxu0 %v3365
    %3556 = vmatpush.msra.mxu0 %v3256
    %3557 = vmatpush.msra.mxu0 %v3255
    %3558 = vmatpush.msra.mxu0 %v3254
    %3559 = vmatpush.msra.mxu0 %v3253
    %3560 = vmatpush.msra.mxu0 %v3252
    %3561 = vmatpush.msra.mxu0 %v3251
    %3562 = vmatpush.msra.mxu0 %v3250
    %3563 = vmatpush.msra.mxu0 %v3249
    %3564 = vmatpush.msra.mxu0 %v3248
    %3565 = vmatpush.msra.mxu0 %v3247
    %3566 = vmatpush.msra.mxu0 %v3246
    %3567 = vmatpush.msra.mxu0 %v3245
    %3568 = vmatpush.msra.mxu0 %v3244
    %3569 = vmatmul.f32.gmra.mxu0 %v3320
    %v3570 = vpop.f32.mrf.mxu0
    %v3571 = vadd.f32 %v3509, %v3570
    %3572 = vmatmul.f32.gmra.mxu0 %v3323
    %v3573 = vpop.f32.mrf.mxu0
    %v3574 = vadd.f32 %v3512, %v3573
    %3575 = vmatmul.f32.gmra.mxu0 %v3326
    %v3576 = vpop.f32.mrf.mxu0
    %v3577 = vadd.f32 %v3515, %v3576
    %3578 = vmatmul.f32.gmra.mxu0 %v3329
    %v3579 = vpop.f32.mrf.mxu0
    %v3580 = vadd.f32 %v3518, %v3579
    %3581 = vmatmul.f32.gmra.mxu0 %v3332
    %v3582 = vpop.f32.mrf.mxu0
    %v3583 = vadd.f32 %v3521, %v3582
    %3584 = vmatmul.f32.gmra.mxu0 %v3335
    %v3585 = vpop.f32.mrf.mxu0
    %v3586 = vadd.f32 %v3524, %v3585
    %3587 = vmatmul.f32.gmra.mxu0 %v3338
    %v3588 = vpop.f32.mrf.mxu0
    %v3589 = vadd.f32 %v3527, %v3588
    %3590 = vmatmul.f32.gmra.mxu0 %v3341
    %v3591 = vpop.f32.mrf.mxu0
    %v3592 = vadd.f32 %v3530, %v3591
    %3593 = vmatmul.f32.gmra.mxu0 %v3344
    %v3594 = vpop.f32.mrf.mxu0
    %v3595 = vadd.f32 %v3533, %v3594
    %3596 = vmatmul.f32.gmra.mxu0 %v3347
    %v3597 = vpop.f32.mrf.mxu0
    %v3598 = vadd.f32 %v3536, %v3597
    %3599 = vmatmul.f32.gmra.mxu0 %v3350
    %v3600 = vpop.f32.mrf.mxu0
    %v3601 = vadd.f32 %v3539, %v3600
    %3602 = vmatmul.f32.gmra.mxu0 %v3353
    %v3603 = vpop.f32.mrf.mxu0
    %v3604 = vadd.f32 %v3542, %v3603
    %3605 = vmatmul.f32.gmra.mxu0 %v3356
    %v3606 = vpop.f32.mrf.mxu0
    %v3607 = vadd.f32 %v3545, %v3606
    %3608 = vmatmul.f32.gmra.mxu0 %v3359
    %v3609 = vpop.f32.mrf.mxu0
    %v3610 = vadd.f32 %v3548, %v3609
    %3611 = vmatmul.f32.gmra.mxu0 %v3362
    %v3612 = vpop.f32.mrf.mxu0
    %v3613 = vadd.f32 %v3551, %v3612
    %3614 = vdwg.mxu0
    %vm3615 = vcmask 31744
    %3616 = vst.msk [vmem:[#allocation3] sm:$0xff] %vm3615, %v3571
    %3617 = vst.msk [vmem:[#allocation3 + $0x8] sm:$0xff] %vm3615, %v3574
    %3618 = vst.msk [vmem:[#allocation3 + $0x10] sm:$0xff] %vm3615, %v3577
    %3619 = vst.msk [vmem:[#allocation3 + $0x18] sm:$0xff] %vm3615, %v3580
    %3620 = vst.msk [vmem:[#allocation3 + $0x20] sm:$0xff] %vm3615, %v3583
    %3621 = vst.msk [vmem:[#allocation3 + $0x28] sm:$0xff] %vm3615, %v3586
    %3622 = vst.msk [vmem:[#allocation3 + $0x30] sm:$0xff] %vm3615, %v3589
    %3623 = vst.msk [vmem:[#allocation3 + $0x38] sm:$0xff] %vm3615, %v3592
    %3624 = vst.msk [vmem:[#allocation3 + $0x40] sm:$0xff] %vm3615, %v3595
    %3625 = vst.msk [vmem:[#allocation3 + $0x48] sm:$0xff] %vm3615, %v3598
    %3626 = vst.msk [vmem:[#allocation3 + $0x50] sm:$0xff] %vm3615, %v3601
    %3627 = vst.msk [vmem:[#allocation3 + $0x58] sm:$0xff] %vm3615, %v3604
    %vm3628 = vcmask 25600
    %3629 = vst.msk [vmem:[#allocation3 + $0x60] sm:$0x3] %vm3628, %v3607
    %3644 = vrot.lane.b32.xlu0 %v3571, 12
    %v3645 = vpop.permute.xlu0 %3644
    %3646 = vrot.lane.b32.xlu0 %v3574, 12
    %v3647 = vpop.permute.xlu0 %3646
    %3648 = vrot.lane.b32.xlu0 %v3577, 12
    %v3649 = vpop.permute.xlu0 %3648
    %3650 = vrot.lane.b32.xlu0 %v3580, 12
    %v3651 = vpop.permute.xlu0 %3650
    %3652 = vrot.lane.b32.xlu0 %v3583, 12
    %v3653 = vpop.permute.xlu0 %3652
    %3654 = vrot.lane.b32.xlu0 %v3586, 12
    %v3655 = vpop.permute.xlu0 %3654
    %3656 = vrot.lane.b32.xlu0 %v3589, 12
    %v3657 = vpop.permute.xlu0 %3656
    %3658 = vrot.lane.b32.xlu0 %v3592, 12
    %v3659 = vpop.permute.xlu0 %3658
    %3660 = vrot.lane.b32.xlu0 %v3595, 12
    %v3661 = vpop.permute.xlu0 %3660
    %3662 = vrot.lane.b32.xlu0 %v3598, 12
    %v3663 = vpop.permute.xlu0 %3662
    %3664 = vrot.lane.b32.xlu0 %v3601, 12
    %v3665 = vpop.permute.xlu0 %3664
    %3666 = vrot.lane.b32.xlu0 %v3604, 12
    %v3667 = vpop.permute.xlu0 %3666
    %3668 = vrot.lane.b32.xlu0 %v3607, 12
    %v3669 = vpop.permute.xlu0 %3668
    %3670 = vrot.lane.b32.xlu0 %v3610, 12
    %v3671 = vpop.permute.xlu0 %3670
    %vm3686 = vcmask 130151
    %3687 = vst.msk [vmem:[#allocation3 - $0x7] sm:$0x80] %vm3686, %v3645
    %vm3688 = vcmask 130144
    %3689 = vst.msk [vmem:[#allocation3 + $0x1] sm:$0xff] %vm3688, %v3647
    %3690 = vst.msk [vmem:[#allocation3 + $0x9] sm:$0xff] %vm3688, %v3649
    %3691 = vst.msk [vmem:[#allocation3 + $0x11] sm:$0xff] %vm3688, %v3651
    %3692 = vst.msk [vmem:[#allocation3 + $0x19] sm:$0xff] %vm3688, %v3653
    %3693 = vst.msk [vmem:[#allocation3 + $0x21] sm:$0xff] %vm3688, %v3655
    %3694 = vst.msk [vmem:[#allocation3 + $0x29] sm:$0xff] %vm3688, %v3657
    %3695 = vst.msk [vmem:[#allocation3 + $0x31] sm:$0xff] %vm3688, %v3659
    %3696 = vst.msk [vmem:[#allocation3 + $0x39] sm:$0xff] %vm3688, %v3661
    %3697 = vst.msk [vmem:[#allocation3 + $0x41] sm:$0xff] %vm3688, %v3663
    %3698 = vst.msk [vmem:[#allocation3 + $0x49] sm:$0xff] %vm3688, %v3665
    %3699 = vst.msk [vmem:[#allocation3 + $0x51] sm:$0xff] %vm3688, %v3667
    %3700 = vst.msk [vmem:[#allocation3 + $0x59] sm:$0xff] %vm3688, %v3669
    %vm3701 = vcmask 122976
    %3702 = vst.msk [vmem:[#allocation3 + $0x61] sm:$0x1] %vm3701, %v3671
    %3703 = vrot.lane.b32.xlu0 %v3574, 24
    %v3704 = vpop.permute.xlu0 %3703
    %3705 = vrot.lane.b32.xlu0 %v3577, 24
    %v3706 = vpop.permute.xlu0 %3705
    %3707 = vrot.lane.b32.xlu0 %v3580, 24
    %v3708 = vpop.permute.xlu0 %3707
    %3709 = vrot.lane.b32.xlu0 %v3583, 24
    %v3710 = vpop.permute.xlu0 %3709
    %3711 = vrot.lane.b32.xlu0 %v3586, 24
    %v3712 = vpop.permute.xlu0 %3711
    %3713 = vrot.lane.b32.xlu0 %v3589, 24
    %v3714 = vpop.permute.xlu0 %3713
    %3715 = vrot.lane.b32.xlu0 %v3592, 24
    %v3716 = vpop.permute.xlu0 %3715
    %3717 = vrot.lane.b32.xlu0 %v3595, 24
    %v3718 = vpop.permute.xlu0 %3717
    %3719 = vrot.lane.b32.xlu0 %v3598, 24
    %v3720 = vpop.permute.xlu0 %3719
    %3721 = vrot.lane.b32.xlu0 %v3601, 24
    %v3722 = vpop.permute.xlu0 %3721
    %3723 = vrot.lane.b32.xlu0 %v3604, 24
    %v3724 = vpop.permute.xlu0 %3723
    %3725 = vrot.lane.b32.xlu0 %v3607, 24
    %v3726 = vpop.permute.xlu0 %3725
    %3727 = vrot.lane.b32.xlu0 %v3610, 24
    %v3728 = vpop.permute.xlu0 %3727
    %vm3742 = vcmask 228550
    %3743 = vst.msk [vmem:[#allocation3 - $0x6] sm:$0xc0] %vm3742, %v3704
    %vm3744 = vcmask 228544
    %3745 = vst.msk [vmem:[#allocation3 + $0x2] sm:$0xff] %vm3744, %v3706
    %3746 = vst.msk [vmem:[#allocation3 + $0xa] sm:$0xff] %vm3744, %v3708
    %3747 = vst.msk [vmem:[#allocation3 + $0x12] sm:$0xff] %vm3744, %v3710
    %3748 = vst.msk [vmem:[#allocation3 + $0x1a] sm:$0xff] %vm3744, %v3712
    %3749 = vst.msk [vmem:[#allocation3 + $0x22] sm:$0xff] %vm3744, %v3714
    %3750 = vst.msk [vmem:[#allocation3 + $0x2a] sm:$0xff] %vm3744, %v3716
    %3751 = vst.msk [vmem:[#allocation3 + $0x32] sm:$0xff] %vm3744, %v3718
    %3752 = vst.msk [vmem:[#allocation3 + $0x3a] sm:$0xff] %vm3744, %v3720
    %3753 = vst.msk [vmem:[#allocation3 + $0x42] sm:$0xff] %vm3744, %v3722
    %3754 = vst.msk [vmem:[#allocation3 + $0x4a] sm:$0xff] %vm3744, %v3724
    %3755 = vst.msk [vmem:[#allocation3 + $0x52] sm:$0xff] %vm3744, %v3726
    %3756 = vst.msk [vmem:[#allocation3 + $0x5a] sm:$0xff] %vm3744, %v3728
    %3757 = vrot.lane.b32.xlu0 %v3571, 4
    %v3758 = vpop.permute.xlu0 %3757
    %3759 = vrot.lane.b32.xlu0 %v3574, 4
    %v3760 = vpop.permute.xlu0 %3759
    %3761 = vrot.lane.b32.xlu0 %v3577, 4
    %v3762 = vpop.permute.xlu0 %3761
    %3763 = vrot.lane.b32.xlu0 %v3580, 4
    %v3764 = vpop.permute.xlu0 %3763
    %3765 = vrot.lane.b32.xlu0 %v3583, 4
    %v3766 = vpop.permute.xlu0 %3765
    %3767 = vrot.lane.b32.xlu0 %v3586, 4
    %v3768 = vpop.permute.xlu0 %3767
    %3769 = vrot.lane.b32.xlu0 %v3589, 4
    %v3770 = vpop.permute.xlu0 %3769
    %3771 = vrot.lane.b32.xlu0 %v3592, 4
    %v3772 = vpop.permute.xlu0 %3771
    %3773 = vrot.lane.b32.xlu0 %v3595, 4
    %v3774 = vpop.permute.xlu0 %3773
    %3775 = vrot.lane.b32.xlu0 %v3598, 4
    %v3776 = vpop.permute.xlu0 %3775
    %3777 = vrot.lane.b32.xlu0 %v3601, 4
    %v3778 = vpop.permute.xlu0 %3777
    %3779 = vrot.lane.b32.xlu0 %v3604, 4
    %v3780 = vpop.permute.xlu0 %3779
    %3781 = vrot.lane.b32.xlu0 %v3607, 4
    %v3782 = vpop.permute.xlu0 %3781
    %vm3796 = vcmask 64545
    %3797 = vst.msk [vmem:[#allocation3 - $0x1] sm:$0xfe] %vm3796, %v3758
    %vm3798 = vcmask 64544
    %3799 = vst.msk [vmem:[#allocation3 + $0x7] sm:$0xff] %vm3798, %v3760
    %3800 = vst.msk [vmem:[#allocation3 + $0xf] sm:$0xff] %vm3798, %v3762
    %3801 = vst.msk [vmem:[#allocation3 + $0x17] sm:$0xff] %vm3798, %v3764
    %3802 = vst.msk [vmem:[#allocation3 + $0x1f] sm:$0xff] %vm3798, %v3766
    %3803 = vst.msk [vmem:[#allocation3 + $0x27] sm:$0xff] %vm3798, %v3768
    %3804 = vst.msk [vmem:[#allocation3 + $0x2f] sm:$0xff] %vm3798, %v3770
    %3805 = vst.msk [vmem:[#allocation3 + $0x37] sm:$0xff] %vm3798, %v3772
    %3806 = vst.msk [vmem:[#allocation3 + $0x3f] sm:$0xff] %vm3798, %v3774
    %3807 = vst.msk [vmem:[#allocation3 + $0x47] sm:$0xff] %vm3798, %v3776
    %3808 = vst.msk [vmem:[#allocation3 + $0x4f] sm:$0xff] %vm3798, %v3778
    %3809 = vst.msk [vmem:[#allocation3 + $0x57] sm:$0xff] %vm3798, %v3780
    %vm3810 = vcmask 59424
    %3811 = vst.msk [vmem:[#allocation3 + $0x5f] sm:$0x7] %vm3810, %v3782
    %3812 = vrot.lane.b32.xlu0 %v3574, 16
    %v3813 = vpop.permute.xlu0 %3812
    %3814 = vrot.lane.b32.xlu0 %v3577, 16
    %v3815 = vpop.permute.xlu0 %3814
    %3816 = vrot.lane.b32.xlu0 %v3580, 16
    %v3817 = vpop.permute.xlu0 %3816
    %3818 = vrot.lane.b32.xlu0 %v3583, 16
    %v3819 = vpop.permute.xlu0 %3818
    %3820 = vrot.lane.b32.xlu0 %v3586, 16
    %v3821 = vpop.permute.xlu0 %3820
    %3822 = vrot.lane.b32.xlu0 %v3589, 16
    %v3823 = vpop.permute.xlu0 %3822
    %3824 = vrot.lane.b32.xlu0 %v3592, 16
    %v3825 = vpop.permute.xlu0 %3824
    %3826 = vrot.lane.b32.xlu0 %v3595, 16
    %v3827 = vpop.permute.xlu0 %3826
    %3828 = vrot.lane.b32.xlu0 %v3598, 16
    %v3829 = vpop.permute.xlu0 %3828
    %3830 = vrot.lane.b32.xlu0 %v3601, 16
    %v3831 = vpop.permute.xlu0 %3830
    %3832 = vrot.lane.b32.xlu0 %v3604, 16
    %v3833 = vpop.permute.xlu0 %3832
    %3834 = vrot.lane.b32.xlu0 %v3607, 16
    %v3835 = vpop.permute.xlu0 %3834
    %3836 = vrot.lane.b32.xlu0 %v3610, 16
    %v3837 = vpop.permute.xlu0 %3836
    %vm3851 = vcmask 162944
    %3852 = vst.msk [vmem:[#allocation3] sm:$0xff] %vm3851, %v3813
    %3853 = vst.msk [vmem:[#allocation3 + $0x8] sm:$0xff] %vm3851, %v3815
    %3854 = vst.msk [vmem:[#allocation3 + $0x10] sm:$0xff] %vm3851, %v3817
    %3855 = vst.msk [vmem:[#allocation3 + $0x18] sm:$0xff] %vm3851, %v3819
    %3856 = vst.msk [vmem:[#allocation3 + $0x20] sm:$0xff] %vm3851, %v3821
    %3857 = vst.msk [vmem:[#allocation3 + $0x28] sm:$0xff] %vm3851, %v3823
    %3858 = vst.msk [vmem:[#allocation3 + $0x30] sm:$0xff] %vm3851, %v3825
    %3859 = vst.msk [vmem:[#allocation3 + $0x38] sm:$0xff] %vm3851, %v3827
    %3860 = vst.msk [vmem:[#allocation3 + $0x40] sm:$0xff] %vm3851, %v3829
    %3861 = vst.msk [vmem:[#allocation3 + $0x48] sm:$0xff] %vm3851, %v3831
    %3862 = vst.msk [vmem:[#allocation3 + $0x50] sm:$0xff] %vm3851, %v3833
    %3863 = vst.msk [vmem:[#allocation3 + $0x58] sm:$0xff] %vm3851, %v3835
    %vm3864 = vcmask 156800
    %3865 = vst.msk [vmem:[#allocation3 + $0x60] sm:$0x3] %vm3864, %v3837
    %3867 = vrot.lane.b32.xlu0 %v3574, 28
    %v3868 = vpop.permute.xlu0 %3867
    %3869 = vrot.lane.b32.xlu0 %v3577, 28
    %v3870 = vpop.permute.xlu0 %3869
    %3871 = vrot.lane.b32.xlu0 %v3580, 28
    %v3872 = vpop.permute.xlu0 %3871
    %3873 = vrot.lane.b32.xlu0 %v3583, 28
    %v3874 = vpop.permute.xlu0 %3873
    %3875 = vrot.lane.b32.xlu0 %v3586, 28
    %v3876 = vpop.permute.xlu0 %3875
    %3877 = vrot.lane.b32.xlu0 %v3589, 28
    %v3878 = vpop.permute.xlu0 %3877
    %3879 = vrot.lane.b32.xlu0 %v3592, 28
    %v3880 = vpop.permute.xlu0 %3879
    %3881 = vrot.lane.b32.xlu0 %v3595, 28
    %v3882 = vpop.permute.xlu0 %3881
    %3883 = vrot.lane.b32.xlu0 %v3598, 28
    %v3884 = vpop.permute.xlu0 %3883
    %3885 = vrot.lane.b32.xlu0 %v3601, 28
    %v3886 = vpop.permute.xlu0 %3885
    %3887 = vrot.lane.b32.xlu0 %v3604, 28
    %v3888 = vpop.permute.xlu0 %3887
    %3889 = vrot.lane.b32.xlu0 %v3607, 28
    %v3890 = vpop.permute.xlu0 %3889
    %3891 = vrot.lane.b32.xlu0 %v3610, 28
    %v3892 = vpop.permute.xlu0 %3891
    %3893 = vrot.lane.b32.xlu0 %v3613, 28
    %v3894 = vpop.permute.xlu0 %3893
    %vm3909 = vcmask 261351
    %3910 = vst.msk [vmem:[#allocation3 - $0x7] sm:$0x80] %vm3909, %v3868
    %vm3911 = vcmask 261344
    %3912 = vst.msk [vmem:[#allocation3 + $0x1] sm:$0xff] %vm3911, %v3870
    %3913 = vst.msk [vmem:[#allocation3 + $0x9] sm:$0xff] %vm3911, %v3872
    %3914 = vst.msk [vmem:[#allocation3 + $0x11] sm:$0xff] %vm3911, %v3874
    %3915 = vst.msk [vmem:[#allocation3 + $0x19] sm:$0xff] %vm3911, %v3876
    %3916 = vst.msk [vmem:[#allocation3 + $0x21] sm:$0xff] %vm3911, %v3878
    %3917 = vst.msk [vmem:[#allocation3 + $0x29] sm:$0xff] %vm3911, %v3880
    %3918 = vst.msk [vmem:[#allocation3 + $0x31] sm:$0xff] %vm3911, %v3882
    %3919 = vst.msk [vmem:[#allocation3 + $0x39] sm:$0xff] %vm3911, %v3884
    %3920 = vst.msk [vmem:[#allocation3 + $0x41] sm:$0xff] %vm3911, %v3886
    %3921 = vst.msk [vmem:[#allocation3 + $0x49] sm:$0xff] %vm3911, %v3888
    %3922 = vst.msk [vmem:[#allocation3 + $0x51] sm:$0xff] %vm3911, %v3890
    %3923 = vst.msk [vmem:[#allocation3 + $0x59] sm:$0xff] %vm3911, %v3892
    %vm3924 = vcmask 254176
    %3925 = vst.msk [vmem:[#allocation3 + $0x61] sm:$0x1] %vm3924, %v3894
    %3926 = vrot.lane.b32.xlu0 %v3571, 8
    %v3927 = vpop.permute.xlu0 %3926
    %3928 = vrot.lane.b32.xlu0 %v3574, 8
    %v3929 = vpop.permute.xlu0 %3928
    %3930 = vrot.lane.b32.xlu0 %v3577, 8
    %v3931 = vpop.permute.xlu0 %3930
    %3932 = vrot.lane.b32.xlu0 %v3580, 8
    %v3933 = vpop.permute.xlu0 %3932
    %3934 = vrot.lane.b32.xlu0 %v3583, 8
    %v3935 = vpop.permute.xlu0 %3934
    %3936 = vrot.lane.b32.xlu0 %v3586, 8
    %v3937 = vpop.permute.xlu0 %3936
    %3938 = vrot.lane.b32.xlu0 %v3589, 8
    %v3939 = vpop.permute.xlu0 %3938
    %3940 = vrot.lane.b32.xlu0 %v3592, 8
    %v3941 = vpop.permute.xlu0 %3940
    %3942 = vrot.lane.b32.xlu0 %v3595, 8
    %v3943 = vpop.permute.xlu0 %3942
    %3944 = vrot.lane.b32.xlu0 %v3598, 8
    %v3945 = vpop.permute.xlu0 %3944
    %3946 = vrot.lane.b32.xlu0 %v3601, 8
    %v3947 = vpop.permute.xlu0 %3946
    %3948 = vrot.lane.b32.xlu0 %v3604, 8
    %v3949 = vpop.permute.xlu0 %3948
    %3950 = vrot.lane.b32.xlu0 %v3607, 8
    %v3951 = vpop.permute.xlu0 %3950
    %vm3965 = vcmask 97346
    %3966 = vst.msk [vmem:[#allocation3 - $0x2] sm:$0xfc] %vm3965, %v3927
    %vm3967 = vcmask 97344
    %3968 = vst.msk [vmem:[#allocation3 + $0x6] sm:$0xff] %vm3967, %v3929
    %3969 = vst.msk [vmem:[#allocation3 + $0xe] sm:$0xff] %vm3967, %v3931
    %3970 = vst.msk [vmem:[#allocation3 + $0x16] sm:$0xff] %vm3967, %v3933
    %3971 = vst.msk [vmem:[#allocation3 + $0x1e] sm:$0xff] %vm3967, %v3935
    %3972 = vst.msk [vmem:[#allocation3 + $0x26] sm:$0xff] %vm3967, %v3937
    %3973 = vst.msk [vmem:[#allocation3 + $0x2e] sm:$0xff] %vm3967, %v3939
    %3974 = vst.msk [vmem:[#allocation3 + $0x36] sm:$0xff] %vm3967, %v3941
    %3975 = vst.msk [vmem:[#allocation3 + $0x3e] sm:$0xff] %vm3967, %v3943
    %3976 = vst.msk [vmem:[#allocation3 + $0x46] sm:$0xff] %vm3967, %v3945
    %3977 = vst.msk [vmem:[#allocation3 + $0x4e] sm:$0xff] %vm3967, %v3947
    %3978 = vst.msk [vmem:[#allocation3 + $0x56] sm:$0xff] %vm3967, %v3949
    %vm3979 = vcmask 93248
    %3980 = vst.msk [vmem:[#allocation3 + $0x5e] sm:$0xf] %vm3979, %v3951
    %3981 = vrot.lane.b32.xlu0 %v3574, 20
    %v3982 = vpop.permute.xlu0 %3981
    %3983 = vrot.lane.b32.xlu0 %v3577, 20
    %v3984 = vpop.permute.xlu0 %3983
    %3985 = vrot.lane.b32.xlu0 %v3580, 20
    %v3986 = vpop.permute.xlu0 %3985
    %3987 = vrot.lane.b32.xlu0 %v3583, 20
    %v3988 = vpop.permute.xlu0 %3987
    %3989 = vrot.lane.b32.xlu0 %v3586, 20
    %v3990 = vpop.permute.xlu0 %3989
    %3991 = vrot.lane.b32.xlu0 %v3589, 20
    %v3992 = vpop.permute.xlu0 %3991
    %3993 = vrot.lane.b32.xlu0 %v3592, 20
    %v3994 = vpop.permute.xlu0 %3993
    %3995 = vrot.lane.b32.xlu0 %v3595, 20
    %v3996 = vpop.permute.xlu0 %3995
    %3997 = vrot.lane.b32.xlu0 %v3598, 20
    %v3998 = vpop.permute.xlu0 %3997
    %3999 = vrot.lane.b32.xlu0 %v3601, 20
    %v4000 = vpop.permute.xlu0 %3999
    %4001 = vrot.lane.b32.xlu0 %v3604, 20
    %v4002 = vpop.permute.xlu0 %4001
    %4003 = vrot.lane.b32.xlu0 %v3607, 20
    %v4004 = vpop.permute.xlu0 %4003
    %4005 = vrot.lane.b32.xlu0 %v3610, 20
    %v4006 = vpop.permute.xlu0 %4005
    %vm4020 = vcmask 195745
    %4021 = vst.msk [vmem:[#allocation3 - $0x1] sm:$0xfe] %vm4020, %v3982
    %vm4022 = vcmask 195744
    %4023 = vst.msk [vmem:[#allocation3 + $0x7] sm:$0xff] %vm4022, %v3984
    %4024 = vst.msk [vmem:[#allocation3 + $0xf] sm:$0xff] %vm4022, %v3986
    %4025 = vst.msk [vmem:[#allocation3 + $0x17] sm:$0xff] %vm4022, %v3988
    %4026 = vst.msk [vmem:[#allocation3 + $0x1f] sm:$0xff] %vm4022, %v3990
    %4027 = vst.msk [vmem:[#allocation3 + $0x27] sm:$0xff] %vm4022, %v3992
    %4028 = vst.msk [vmem:[#allocation3 + $0x2f] sm:$0xff] %vm4022, %v3994
    %4029 = vst.msk [vmem:[#allocation3 + $0x37] sm:$0xff] %vm4022, %v3996
    %4030 = vst.msk [vmem:[#allocation3 + $0x3f] sm:$0xff] %vm4022, %v3998
    %4031 = vst.msk [vmem:[#allocation3 + $0x47] sm:$0xff] %vm4022, %v4000
    %4032 = vst.msk [vmem:[#allocation3 + $0x4f] sm:$0xff] %vm4022, %v4002
    %4033 = vst.msk [vmem:[#allocation3 + $0x57] sm:$0xff] %vm4022, %v4004
    %vm4034 = vcmask 190624
    %4035 = vst.msk [vmem:[#allocation3 + $0x5f] sm:$0x7] %vm4034, %v4006
    %4036 = vrot.lane.b32.xlu0 %v3577, 32
    %v4037 = vpop.permute.xlu0 %4036
    %4038 = vrot.lane.b32.xlu0 %v3580, 32
    %v4039 = vpop.permute.xlu0 %4038
    %4040 = vrot.lane.b32.xlu0 %v3583, 32
    %v4041 = vpop.permute.xlu0 %4040
    %4042 = vrot.lane.b32.xlu0 %v3586, 32
    %v4043 = vpop.permute.xlu0 %4042
    %4044 = vrot.lane.b32.xlu0 %v3589, 32
    %v4045 = vpop.permute.xlu0 %4044
    %4046 = vrot.lane.b32.xlu0 %v3592, 32
    %v4047 = vpop.permute.xlu0 %4046
    %4048 = vrot.lane.b32.xlu0 %v3595, 32
    %v4049 = vpop.permute.xlu0 %4048
    %4050 = vrot.lane.b32.xlu0 %v3598, 32
    %v4051 = vpop.permute.xlu0 %4050
    %4052 = vrot.lane.b32.xlu0 %v3601, 32
    %v4053 = vpop.permute.xlu0 %4052
    %4054 = vrot.lane.b32.xlu0 %v3604, 32
    %v4055 = vpop.permute.xlu0 %4054
    %4056 = vrot.lane.b32.xlu0 %v3607, 32
    %v4057 = vpop.permute.xlu0 %4056
    %4058 = vrot.lane.b32.xlu0 %v3610, 32
    %v4059 = vpop.permute.xlu0 %4058
    %4060 = vrot.lane.b32.xlu0 %v3613, 32
    %v4061 = vpop.permute.xlu0 %4060
    %vm4075 = vcmask 294144
    %4076 = vst.msk [vmem:[#allocation3] sm:$0xff] %vm4075, %v4037
    %4077 = vst.msk [vmem:[#allocation3 + $0x8] sm:$0xff] %vm4075, %v4039
    %4078 = vst.msk [vmem:[#allocation3 + $0x10] sm:$0xff] %vm4075, %v4041
    %4079 = vst.msk [vmem:[#allocation3 + $0x18] sm:$0xff] %vm4075, %v4043
    %4080 = vst.msk [vmem:[#allocation3 + $0x20] sm:$0xff] %vm4075, %v4045
    %4081 = vst.msk [vmem:[#allocation3 + $0x28] sm:$0xff] %vm4075, %v4047
    %4082 = vst.msk [vmem:[#allocation3 + $0x30] sm:$0xff] %vm4075, %v4049
    %4083 = vst.msk [vmem:[#allocation3 + $0x38] sm:$0xff] %vm4075, %v4051
    %4084 = vst.msk [vmem:[#allocation3 + $0x40] sm:$0xff] %vm4075, %v4053
    %4085 = vst.msk [vmem:[#allocation3 + $0x48] sm:$0xff] %vm4075, %v4055
    %4086 = vst.msk [vmem:[#allocation3 + $0x50] sm:$0xff] %vm4075, %v4057
    %4087 = vst.msk [vmem:[#allocation3 + $0x58] sm:$0xff] %vm4075, %v4059
    %vm4088 = vcmask 288000
    %4089 = vst.msk [vmem:[#allocation3 + $0x60] sm:$0x3] %vm4088, %v4061
    %v4090 = vld [vmem:[#allocation3] sm:$0xff]
    %v4091 = vld [vmem:[#allocation3 + $0x8] sm:$0xff]
    %v4092 = vld [vmem:[#allocation3 + $0x10] sm:$0xff]
    %v4093 = vld [vmem:[#allocation3 + $0x18] sm:$0xff]
    %v4094 = vld [vmem:[#allocation3 + $0x20] sm:$0xff]
    %v4095 = vld [vmem:[#allocation3 + $0x28] sm:$0xff]
    %v4096 = vld [vmem:[#allocation3 + $0x30] sm:$0xff]
    %v4097 = vld [vmem:[#allocation3 + $0x38] sm:$0xff]
    %v4098 = vld [vmem:[#allocation3 + $0x40] sm:$0xff]
    %v4099 = vld [vmem:[#allocation3 + $0x48] sm:$0xff]
    %v4100 = vld [vmem:[#allocation3 + $0x50] sm:$0xff]
    %v4101 = vld [vmem:[#allocation3 + $0x58] sm:$0xff]
    %v4102 = vld [vmem:[#allocation3 + $0x60] sm:$0x3]
    %v4103 = vld [vmem:[%s4] sm:$0xff]
    %v4104 = vld [vmem:[%s4 + $0x8] sm:$0xff]
    %v4105 = vld [vmem:[%s4 + $0x10] sm:$0xff]
    %v4106 = vld [vmem:[%s4 + $0x18] sm:$0xff]
    %v4107 = vld [vmem:[%s4 + $0x20] sm:$0xf]
    %v4108 = vld [vmem:[%s5] sm:$0x1]
    %v4110 = vperm.slane %v4108, 0
    %vm4112 = vcmask 293888
    %v4114 = vsel %vm4112, %v4090, 0
    %v4117 = vsel %vm4112, %v4091, 0
    %v4120 = vsel %vm4112, %v4092, 0
    %v4123 = vsel %vm4112, %v4093, 0
    %v4126 = vsel %vm4112, %v4094, 0
    %v4129 = vsel %vm4112, %v4095, 0
    %v4132 = vsel %vm4112, %v4096, 0
    %v4135 = vsel %vm4112, %v4097, 0
    %v4138 = vsel %vm4112, %v4098, 0
    %v4141 = vsel %vm4112, %v4099, 0
    %v4144 = vsel %vm4112, %v4100, 0
    %v4147 = vsel %vm4112, %v4101, 0
    %v4150 = vsel %vm4112, %v4102, 0
    %vm4152 = vcmask 1043456
    %v4154 = vsel %vm4152, %v4107, 0
    %4156 = vmatpush.msra.mxu0 0.0
    %4157 = vmatpush.msra.mxu0 0.0
    %4158 = vmatpush.msra.mxu0 0.0
    %4159 = vmatpush.msra.mxu0 0.0
    %4160 = vmatpush.msra.mxu0 0.0
    %4161 = vmatpush.msra.mxu0 0.0
    %4162 = vmatpush.msra.mxu0 0.0
    %4163 = vmatpush.msra.mxu0 0.0
    %4164 = vmatpush.msra.mxu0 0.0
    %4165 = vmatpush.msra.mxu0 0.0
    %4166 = vmatpush.msra.mxu0 0.0
    %4167 = vmatpush.msra.mxu0 %v4154
    %4168 = vmatpush.msra.mxu0 %v4106
    %4169 = vmatpush.msra.mxu0 %v4105
    %4170 = vmatpush.msra.mxu0 %v4104
    %4171 = vmatpush.msra.mxu0 %v4103
    %4172 = vmatmul.f32.gmra.mxu0 %v4114
    %v4173 = vpop.f32.mrf.mxu0
    %v4174 = vadd.f32 %v4110, %v4173
    %4175 = vmatmul.f32.gmra.mxu0 %v4117
    %v4176 = vpop.f32.mrf.mxu0
    %v4177 = vadd.f32 %v4110, %v4176
    %4178 = vmatmul.f32.gmra.mxu0 %v4120
    %v4179 = vpop.f32.mrf.mxu0
    %v4180 = vadd.f32 %v4110, %v4179
    %4181 = vmatmul.f32.gmra.mxu0 %v4123
    %v4182 = vpop.f32.mrf.mxu0
    %v4183 = vadd.f32 %v4110, %v4182
    %4184 = vmatmul.f32.gmra.mxu0 %v4126
    %v4185 = vpop.f32.mrf.mxu0
    %v4186 = vadd.f32 %v4110, %v4185
    %4187 = vmatmul.f32.gmra.mxu0 %v4129
    %v4188 = vpop.f32.mrf.mxu0
    %v4189 = vadd.f32 %v4110, %v4188
    %4190 = vmatmul.f32.gmra.mxu0 %v4132
    %v4191 = vpop.f32.mrf.mxu0
    %v4192 = vadd.f32 %v4110, %v4191
    %4193 = vmatmul.f32.gmra.mxu0 %v4135
    %v4194 = vpop.f32.mrf.mxu0
    %v4195 = vadd.f32 %v4110, %v4194
    %4196 = vmatmul.f32.gmra.mxu0 %v4138
    %v4197 = vpop.f32.mrf.mxu0
    %v4198 = vadd.f32 %v4110, %v4197
    %4199 = vmatmul.f32.gmra.mxu0 %v4141
    %v4200 = vpop.f32.mrf.mxu0
    %v4201 = vadd.f32 %v4110, %v4200
    %4202 = vmatmul.f32.gmra.mxu0 %v4144
    %v4203 = vpop.f32.mrf.mxu0
    %v4204 = vadd.f32 %v4110, %v4203
    %4205 = vmatmul.f32.gmra.mxu0 %v4147
    %v4206 = vpop.f32.mrf.mxu0
    %v4207 = vadd.f32 %v4110, %v4206
    %4208 = vmatmul.f32.gmra.mxu0 %v4150
    %v4209 = vpop.f32.mrf.mxu0
    %v4210 = vadd.f32 %v4110, %v4209
    %4211 = vdwg.mxu0
    %v4212 = vmax.f32 %v4174, 0.0
    %v4213 = vmax.f32 %v4177, 0.0
    %v4214 = vmax.f32 %v4180, 0.0
    %v4215 = vmax.f32 %v4183, 0.0
    %v4216 = vmax.f32 %v4186, 0.0
    %v4217 = vmax.f32 %v4189, 0.0
    %v4218 = vmax.f32 %v4192, 0.0
    %v4219 = vmax.f32 %v4195, 0.0
    %v4220 = vmax.f32 %v4198, 0.0
    %v4221 = vmax.f32 %v4201, 0.0
    %v4222 = vmax.f32 %v4204, 0.0
    %v4223 = vmax.f32 %v4207, 0.0
    %v4224 = vmax.f32 %v4210, 0.0
    %v4238 = vrot.slane %v4212, 1
    %v4239 = vrot.slane %v4213, 1
    %v4240 = vsel %vm2940, %v4238, %v4239
    %v4241 = vrot.slane %v4214, 1
    %v4242 = vsel %vm2940, %v4239, %v4241
    %v4243 = vrot.slane %v4215, 1
    %v4244 = vsel %vm2940, %v4241, %v4243
    %v4245 = vrot.slane %v4216, 1
    %v4246 = vsel %vm2940, %v4243, %v4245
    %v4247 = vrot.slane %v4217, 1
    %v4248 = vsel %vm2940, %v4245, %v4247
    %v4249 = vrot.slane %v4218, 1
    %v4250 = vsel %vm2940, %v4247, %v4249
    %v4251 = vrot.slane %v4219, 1
    %v4252 = vsel %vm2940, %v4249, %v4251
    %v4253 = vrot.slane %v4220, 1
    %v4254 = vsel %vm2940, %v4251, %v4253
    %v4255 = vrot.slane %v4221, 1
    %v4256 = vsel %vm2940, %v4253, %v4255
    %v4257 = vrot.slane %v4222, 1
    %v4258 = vsel %vm2940, %v4255, %v4257
    %v4259 = vrot.slane %v4223, 1
    %v4260 = vsel %vm2940, %v4257, %v4259
    %v4261 = vrot.slane %v4224, 1
    %v4262 = vsel %vm2940, %v4259, %v4261
    %v4276 = vmax.f32 %v4212, %v4240
    %v4277 = vmax.f32 %v4213, %v4242
    %v4278 = vmax.f32 %v4214, %v4244
    %v4279 = vmax.f32 %v4215, %v4246
    %v4280 = vmax.f32 %v4216, %v4248
    %v4281 = vmax.f32 %v4217, %v4250
    %v4282 = vmax.f32 %v4218, %v4252
    %v4283 = vmax.f32 %v4219, %v4254
    %v4284 = vmax.f32 %v4220, %v4256
    %v4285 = vmax.f32 %v4221, %v4258
    %v4286 = vmax.f32 %v4222, %v4260
    %v4287 = vmax.f32 %v4223, %v4262
    %v4288 = vmax.f32 %v4224, %v4261
    %vm4302 = vcmask 1040384
    %v4303 = vrot.slane %v4276, 7
    %v4304 = vrot.slane %v4277, 7
    %v4305 = vsel %vm4302, %v4303, %v4304
    %v4306 = vrot.slane %v4278, 7
    %v4307 = vsel %vm4302, %v4304, %v4306
    %v4308 = vrot.slane %v4279, 7
    %v4309 = vsel %vm4302, %v4306, %v4308
    %v4310 = vrot.slane %v4280, 7
    %v4311 = vsel %vm4302, %v4308, %v4310
    %v4312 = vrot.slane %v4281, 7
    %v4313 = vsel %vm4302, %v4310, %v4312
    %v4314 = vrot.slane %v4282, 7
    %v4315 = vsel %vm4302, %v4312, %v4314
    %v4316 = vrot.slane %v4283, 7
    %v4317 = vsel %vm4302, %v4314, %v4316
    %v4318 = vrot.slane %v4284, 7
    %v4319 = vsel %vm4302, %v4316, %v4318
    %v4320 = vrot.slane %v4285, 7
    %v4321 = vsel %vm4302, %v4318, %v4320
    %v4322 = vrot.slane %v4286, 7
    %v4323 = vsel %vm4302, %v4320, %v4322
    %v4324 = vrot.slane %v4287, 7
    %v4325 = vsel %vm4302, %v4322, %v4324
    %v4326 = vrot.slane %v4288, 7
    %v4327 = vsel %vm4302, %v4324, %v4326
    %v4340 = vmax.f32 %v4276, %v4305
    %v4341 = vmax.f32 %v4277, %v4307
    %v4342 = vmax.f32 %v4278, %v4309
    %v4343 = vmax.f32 %v4279, %v4311
    %v4344 = vmax.f32 %v4280, %v4313
    %v4345 = vmax.f32 %v4281, %v4315
    %v4346 = vmax.f32 %v4282, %v4317
    %v4347 = vmax.f32 %v4283, %v4319
    %v4348 = vmax.f32 %v4284, %v4321
    %v4349 = vmax.f32 %v4285, %v4323
    %v4350 = vmax.f32 %v4286, %v4325
    %v4351 = vmax.f32 %v4287, %v4327
    %v4352 = vld [vmem:[%s6] sm:$0xff]
    %vm4353 = vcmask 736256
    %v4355 = vsel %vm4353, %v4352, 0
    %vm4357 = vcmask 1041408
    %v4359 = vsel %vm4357, %v4351, 0
    %4361 = vmatpush.msra.mxu0 0.0
    %4362 = vmatpush.msra.mxu0 0.0
    %4363 = vmatpush.msra.mxu0 0.0
    %4364 = vmatpush.msra.mxu0 0.0
    %4365 = vmatpush.msra.mxu0 %v4359
    %4366 = vmatpush.msra.mxu0 %v4350
    %4367 = vmatpush.msra.mxu0 %v4349
    %4368 = vmatpush.msra.mxu0 %v4348
    %4369 = vmatpush.msra.mxu0 %v4347
    %4370 = vmatpush.msra.mxu0 %v4346
    %4371 = vmatpush.msra.mxu0 %v4345
    %4372 = vmatpush.msra.mxu0 %v4344
    %4373 = vmatpush.msra.mxu0 %v4343
    %4374 = vmatpush.msra.mxu0 %v4342
    %4375 = vmatpush.msra.mxu0 %v4341
    %4376 = vmatpush.msra.mxu0 %v4340
    %4377 = vmatmul.f32.gmra.mxu0 %v4355
    %v4378 = vpop.f32.mrf.mxu0
    %v4379 = vadd.f32 0.0, %v4378
    %4380 = vdwg.mxu0
    %v4381 = vld [vmem:[%s7] sm:$0xff]
    %v4382 = vld [vmem:[%s7 + $0x8] sm:$0xff]
    %v4384 = vrot.slane %v4379, 2
    %vm4385 = vcmask 64512
    %v4386 = vsel %vm4385, %v4384, 0
    %4388 = vmatpush.msra.mxu0 0.0
    %4389 = vmatpush.msra.mxu0 0.0
    %4390 = vmatpush.msra.mxu0 0.0
    %4391 = vmatpush.msra.mxu0 0.0
    %4392 = vmatpush.msra.mxu0 0.0
    %4393 = vmatpush.msra.mxu0 0.0
    %4394 = vmatpush.msra.mxu0 0.0
    %4395 = vmatpush.msra.mxu0 0.0
    %4396 = vmatpush.msra.mxu0 0.0
    %4397 = vmatpush.msra.mxu0 0.0
    %4398 = vmatpush.msra.mxu0 0.0
    %4399 = vmatpush.msra.mxu0 0.0
    %4400 = vmatpush.msra.mxu0 0.0
    %4401 = vmatpush.msra.mxu0 0.0
    %4402 = vmatpush.msra.mxu0 0.0
    %4403 = vmatpush.msra.mxu0 %v4382
    %4404 = vmatmul.f32.gmra.mxu0 %v4386
    %v4405 = vpop.f32.mrf.mxu0
    %v4406 = vadd.f32 0.0, %v4405
    %4407 = vdwg.mxu0
    %v4408 = vsel %vm4385, %v4379, 0
    %4410 = vmatpush.msra.mxu0 0.0
    %4411 = vmatpush.msra.mxu0 0.0
    %4412 = vmatpush.msra.mxu0 0.0
    %4413 = vmatpush.msra.mxu0 0.0
    %4414 = vmatpush.msra.mxu0 0.0
    %4415 = vmatpush.msra.mxu0 0.0
    %4416 = vmatpush.msra.mxu0 0.0
    %4417 = vmatpush.msra.mxu0 0.0
    %4418 = vmatpush.msra.mxu0 0.0
    %4419 = vmatpush.msra.mxu0 0.0
    %4420 = vmatpush.msra.mxu0 0.0
    %4421 = vmatpush.msra.mxu0 0.0
    %4422 = vmatpush.msra.mxu0 0.0
    %4423 = vmatpush.msra.mxu0 0.0
    %4424 = vmatpush.msra.mxu0 0.0
    %4425 = vmatpush.msra.mxu0 %v4381
    %4426 = vmatmul.f32.gmra.mxu0 %v4408
    %v4427 = vpop.f32.mrf.mxu0
    %v4428 = vadd.f32 %v4406, %v4427
    %4429 = vdwg.mxu0
    %v4430 = vld [vmem:[%s7 + $0x10] sm:$0xff]
    %v4431 = vrot.slane %v4379, 4
    %v4432 = vsel %vm4385, %v4431, 0
    %4434 = vmatpush.msra.mxu0 0.0
    %4435 = vmatpush.msra.mxu0 0.0
    %4436 = vmatpush.msra.mxu0 0.0
    %4437 = vmatpush.msra.mxu0 0.0
    %4438 = vmatpush.msra.mxu0 0.0
    %4439 = vmatpush.msra.mxu0 0.0
    %4440 = vmatpush.msra.mxu0 0.0
    %4441 = vmatpush.msra.mxu0 0.0
    %4442 = vmatpush.msra.mxu0 0.0
    %4443 = vmatpush.msra.mxu0 0.0
    %4444 = vmatpush.msra.mxu0 0.0
    %4445 = vmatpush.msra.mxu0 0.0
    %4446 = vmatpush.msra.mxu0 0.0
    %4447 = vmatpush.msra.mxu0 0.0
    %4448 = vmatpush.msra.mxu0 0.0
    %4449 = vmatpush.msra.mxu0 %v4430
    %4450 = vmatmul.f32.gmra.mxu0 %v4432
    %v4451 = vpop.f32.mrf.mxu0
    %v4452 = vadd.f32 0.0, %v4451
    %4453 = vdwg.mxu0
    %v4454 = vadd.f32 %v4428, %v4452
    %v4455 = vld [vmem:[%s7 + $0x18] sm:$0xff]
    %v4456 = vrot.slane %v4379, 6
    %v4457 = vsel %vm4385, %v4456, 0
    %4459 = vmatpush.msra.mxu0 0.0
    %4460 = vmatpush.msra.mxu0 0.0
    %4461 = vmatpush.msra.mxu0 0.0
    %4462 = vmatpush.msra.mxu0 0.0
    %4463 = vmatpush.msra.mxu0 0.0
    %4464 = vmatpush.msra.mxu0 0.0
    %4465 = vmatpush.msra.mxu0 0.0
    %4466 = vmatpush.msra.mxu0 0.0
    %4467 = vmatpush.msra.mxu0 0.0
    %4468 = vmatpush.msra.mxu0 0.0
    %4469 = vmatpush.msra.mxu0 0.0
    %4470 = vmatpush.msra.mxu0 0.0
    %4471 = vmatpush.msra.mxu0 0.0
    %4472 = vmatpush.msra.mxu0 0.0
    %4473 = vmatpush.msra.mxu0 0.0
    %4474 = vmatpush.msra.mxu0 %v4455
    %4475 = vmatmul.f32.gmra.mxu0 %v4457
    %v4476 = vpop.f32.mrf.mxu0
    %v4477 = vadd.f32 0.0, %v4476
    %4478 = vdwg.mxu0
    %v4479 = vadd.f32 %v4454, %v4477
    %v4480 = vld [vmem:[%s8] sm:$0x1]
    %v4482 = vperm.slane %v4480, 0
    %v4484 = vadd.f32 %v4479, %v4482
    %v4485 = vmax.f32 %v4484, 0.0
    %v4486 = vld [vmem:[%s9] sm:$0xff]
    %v4487 = vld [vmem:[%s9 + $0x8] sm:$0xff]
    %v4488 = vld [vmem:[%s9 + $0x10] sm:$0xff]
    %v4489 = vld [vmem:[%s9 + $0x18] sm:$0xff]
    %v4490 = vld [vmem:[%s10] sm:$0x1]
    %v4492 = vperm.slane %v4490, 0
    %vm4494 = vcmask 261120
    %v4496 = vsel %vm4494, %v4485, 0
    %4498 = vmatpush.msra.mxu0 0.0
    %4499 = vmatpush.msra.mxu0 0.0
    %4500 = vmatpush.msra.mxu0 0.0
    %4501 = vmatpush.msra.mxu0 0.0
    %4502 = vmatpush.msra.mxu0 0.0
    %4503 = vmatpush.msra.mxu0 0.0
    %4504 = vmatpush.msra.mxu0 0.0
    %4505 = vmatpush.msra.mxu0 0.0
    %4506 = vmatpush.msra.mxu0 0.0
    %4507 = vmatpush.msra.mxu0 0.0
    %4508 = vmatpush.msra.mxu0 0.0
    %4509 = vmatpush.msra.mxu0 0.0
    %4510 = vmatpush.msra.mxu0 %v4489
    %4511 = vmatpush.msra.mxu0 %v4488
    %4512 = vmatpush.msra.mxu0 %v4487
    %4513 = vmatpush.msra.mxu0 %v4486
    %4514 = vmatmul.f32.gmra.mxu0 %v4496
    %v4515 = vpop.f32.mrf.mxu0
    %v4516 = vadd.f32 %v4492, %v4515
    %4517 = vdwg.mxu0
    %4518 = vst [vmem:[#allocation4] sm:$0x3] %v4516
    // Predicated region
    $region46: #{flexible_cnn_forward.1} parent=1 // pred_check
      _
    $region47: #{flexible_cnn_forward.1} parent=1 // pred_check_branch
      %4520 = sbr.rel (0) target = $region49
    $region48: #{flexible_cnn_forward.1} parent=1 // pred_region
      %4522 = vsyncadd [#allocation5], 0
      %s4524 = sshll.u32 [#allocation4], 4
      %s4525 = int_to_ptr.vmem [resolvable:$true] %s4524
      %s4526 = sshll.u32 %s11, 4
      %s4527 = int_to_ptr.hbm [resolvable:$true] %s4526
      %4529 = dma.vmem_to_hbm [thread:$0]  %s4525, 32, %s4527, [#allocation5]
    $region49: #{flexible_cnn_forward.1} parent=1 // pred_fallthru
      _
    // Predicated region
    $region50: #{flexible_cnn_forward.1} parent=1 // pred_check
      _
    $region51: #{flexible_cnn_forward.1} parent=1 // pred_check_branch
      %4531 = sbr.rel (0) target = $region53
    $region52: #{flexible_cnn_forward.1} parent=1 // pred_region
      %4533 = dma.done [#allocation5], 32
    $region53: #{flexible_cnn_forward.1} parent=1 // pred_fallthru
      _
    %4534 = vsyncpa [#allocation5], 1

</llo_original>
